<compile_context>
chip_gen: v6e
topology: v6e:2x2x1
jax: 0.10.0
libtpu: 0.0.40
codegen_flags: <defaults>
</compile_context>

<pallas_src>
import numpy as np
import jax
import jax.numpy as jnp
from jax.experimental import pallas as pl
from jax.experimental.pallas import tpu as pltpu

F32 = jnp.float32


def _vmem_spec():
  return pl.BlockSpec(memory_space=pltpu.MemorySpace.VMEM)


# ------------------------- fused decoder-step kernel -------------------------
def _make_fused_decoder_kernel(B, Lq, Lf, E, V, H, num_layers, n_scales, inv_sqrt_dk):
  N = B * Lq

  def kernel(*refs):
    it = iter(refs)
    # -------- data --------
    em_ref, emb_ref, h_ref, c_ref, vis_ref, phr_ref = (next(it) for _ in range(6))
    # -------- params --------
    alW, alU, alb, alw = (next(it) for _ in range(4))
    pool, seg, dynM, dynWo, dynbo = (next(it) for _ in range(5))
    polW, polb, gW, gb = (next(it) for _ in range(4))
    aWq, aU, ab, aw, expand_bq = (next(it) for _ in range(5))
    lstm_p = [tuple(next(it) for _ in range(3)) for _ in range(num_layers)]
    outW, outb = next(it), next(it)
    # -------- outputs --------
    logp_ref, hout_ref, cout_ref, alw_ref, allog_ref, emout_ref = (next(it) for _ in range(6))

    # Flatten batch onto rows by sublane concatenation (no reshapes needed in-kernel).
    em2 = jnp.concatenate([em_ref[b] for b in range(B)], axis=0)    # (N, E)
    vis2 = jnp.concatenate([vis_ref[b] for b in range(B)], axis=0)  # (N, V)

    # ---- SemanticAlignment (query=vis_feats, keys/values=phr_feats) + dynamic pooling ----
    Whal = jnp.dot(vis2, alW[...], preferred_element_type=F32)      # (N, Bka)
    emM = jnp.dot(em2, dynM[...], preferred_element_type=F32)       # (N, E)  folded Wq @ Wk^T
    grp_rows, ctx_rows = [], []
    for b in range(B):
      phr_b = phr_ref[b]                                            # (Lf, E)

      # additive alignment attention
      Uv = jnp.dot(phr_b, alU[...], preferred_element_type=F32)     # (Lf, Bka)
      Wh_b = Whal[b * Lq:(b + 1) * Lq, :]                           # (Lq, Bka)
      t = jnp.tanh(Wh_b[:, None, :] + Uv[None, :, :] + alb[...])    # (Lq, Lf, Bka)
      energies = jnp.sum(t * alw[...], axis=-1)                     # (Lq, Lf)
      m = jnp.max(energies, axis=-1, keepdims=True)
      e = jnp.exp(energies - m)
      w_al = e / jnp.sum(e, axis=-1, keepdims=True)
      alw_ref[b] = w_al.astype(alw_ref.dtype)
      allog_ref[b] = energies.astype(allog_ref.dtype)
      grp_rows.append(jnp.dot(w_al, phr_b, preferred_element_type=F32))   # (Lq, E)

      # DynamicSemanticModule: all scales pooled with one constant matrix, per-scale softmax
      # realized via a global row-max (shift-invariant) + block-diag segment-sum matmul.
      pooled = jnp.dot(pool[...], phr_b, preferred_element_type=F32)      # (S, E)
      scores = jax.lax.dot_general(
          emM[b * Lq:(b + 1) * Lq, :], pooled, (((1,), (1,)), ((), ())),
          preferred_element_type=F32) * inv_sqrt_dk                       # (Lq, S)
      ms = jnp.max(scores, axis=-1, keepdims=True)
      es = jnp.exp(scores - ms)
      segsum = jnp.dot(es, seg[...], preferred_element_type=F32)          # (Lq, S)
      a = es / segsum
      ctx_rows.append(jnp.dot(a, pooled, preferred_element_type=F32))     # (Lq, E)

    grp2 = jnp.concatenate(grp_rows, axis=0)                              # (N, E)
    ctx2 = jnp.concatenate(ctx_rows, axis=0) * (1.0 / n_scales)           # (N, E)
    emdyn2 = em2 + jnp.tanh(jnp.dot(ctx2, dynWo[...], preferred_element_type=F32)
                            + dynbo[...])                                 # (N, E)
    for b in range(B):
      emout_ref[b] = emdyn2[b * Lq:(b + 1) * Lq, :].astype(emout_ref.dtype)

    # ---- emotion heads: polar head + (inte_head o gating_w) folded into one linear ----
    polar = jnp.dot(emdyn2, polW[...], preferred_element_type=F32) + polb[...]   # (N, E)
    g = jnp.dot(emdyn2, gW[...], preferred_element_type=F32) + gb[...]           # (N, 1)
    gate = jnp.where(g >= 0, g, 0.01 * g)                                        # LeakyReLU(0.01)
    ev = gate * polar                                                            # (N, E)

    # ---- semantic_attention_all over concat([gate*polar, group_feats, vis_feats]) ----
    cat = jnp.concatenate([ev, grp2, vis2], axis=1)                              # (N, 2V+E)
    last_h = h_ref[num_layers - 1]                                               # (B, H)
    Whq = jnp.dot(last_h, aWq[...], preferred_element_type=F32)                  # (B, Ba)
    Whq_rows = jnp.dot(expand_bq[...], Whq, preferred_element_type=F32)          # (N, Ba)
    Uv2 = jnp.dot(cat, aU[...], preferred_element_type=F32)                      # (N, Ba)
    t2 = jnp.tanh(Whq_rows + Uv2 + ab[...])
    energ = jnp.dot(t2, aw[...], preferred_element_type=F32)                     # (N, 1) MXU reduce

    att_rows = []
    for b in range(B):
      e_b = energ[b * Lq:(b + 1) * Lq, :]                                        # (Lq, 1)
      m = jnp.max(e_b, axis=0, keepdims=True)
      ee = jnp.exp(e_b - m)
      attw = ee / jnp.sum(ee, axis=0, keepdims=True)
      cat_b = cat[b * Lq:(b + 1) * Lq, :]
      att_rows.append(jnp.sum(attw * cat_b, axis=0, keepdims=True))              # (1, 2V+E)
    att = jnp.concatenate(att_rows, axis=0)                                      # (B, 2V+E)

    # ---- LSTM (layer-0 input weights fused over [feat_evw, embedded] = 128 lanes) ----
    x = jnp.concatenate([att, emb_ref[...]], axis=1)                             # (B, 2V+2E)

    def cell(gates, c_prev):
      i = jax.nn.sigmoid(gates[:, 0 * H:1 * H])
      f = jax.nn.sigmoid(gates[:, 1 * H:2 * H])
      gg = jnp.tanh(gates[:, 2 * H:3 * H])
      o = jax.nn.sigmoid(gates[:, 3 * H:4 * H])
      c_new = f * c_prev + i * gg
      h_new = o * jnp.tanh(c_new)
      return h_new, c_new

    for l in range(num_layers):
      Wih, Whh, bl = lstm_p[l]
      gates = (jnp.dot(x, Wih[...], preferred_element_type=F32)
               + jnp.dot(h_ref[l], Whh[...], preferred_element_type=F32) + bl[...])
      h_new, c_new = cell(gates, c_ref[l])
      hout_ref[l] = h_new.astype(hout_ref.dtype)
      cout_ref[l] = c_new.astype(cout_ref.dtype)
      x = h_new

    # ---- output projection + log_softmax over vocab ----
    logits = jnp.dot(x, outW[...], preferred_element_type=F32) + outb[...]       # (B, O)
    mx = jnp.max(logits, axis=-1, keepdims=True)
    z = logits - mx
    lse = jnp.log(jnp.sum(jnp.exp(z), axis=-1, keepdims=True))
    logp_ref[...] = (z - lse).astype(logp_ref.dtype)

  return kernel


# ------------------------------- parameters -----------------------------------
def init_decoder_params(key, *, num_layers, vis_feat_size, embedding_size,
                        sem_align_hidden_size, sem_attn_hidden_size,
                        hidden_size, output_size, dyn_hidden=100):
  E, V, H = embedding_size, vis_feat_size, hidden_size
  assert E == V, ("semantic_attention_all key_size (2*V + E) only matches the concat "
                  "[gate*polar(E), group_feats(E), vis_feats(V)] when E == V")

  state = {"key": key}

  def rnd(shape, scale=0.08):
    state["key"], k = jax.random.split(state["key"])
    return scale * jax.random.normal(k, shape, dtype=F32)

  p = {}
  p["align"] = dict(W=rnd((V, sem_align_hidden_size)), U=rnd((E, sem_align_hidden_size)),
                    b=rnd((1, sem_align_hidden_size)), w=rnd((1, sem_align_hidden_size)))
  p["dyn"] = dict(Wq=rnd((E, dyn_hidden)), Wk=rnd((E, dyn_hidden)),
                  Wo=rnd((E, E)), bo=rnd((1, E)))
  p["inte_W"], p["inte_b"] = rnd((E, E)), rnd((1, E))
  p["polar_W"], p["polar_b"] = rnd((E, E)), rnd((1, E))
  p["gate_W"], p["gate_b"] = rnd((E, 1)), rnd((1, 1))
  Ba = sem_attn_hidden_size
  p["attn_Wq"], p["attn_U_ev"] = rnd((H, Ba)), rnd((E, Ba))
  p["attn_U_grp"], p["attn_U_vis"] = rnd((E, Ba)), rnd((V, Ba))
  p["attn_b"], p["attn_w"] = rnd((1, Ba)), rnd((1, Ba))
  lstm = []
  for l in range(num_layers):
    if l == 0:
      lstm.append((rnd((E, 4 * H)), rnd((E, 4 * H)), rnd((V, 4 * H)), rnd((E, 4 * H)),
                   rnd((1, 4 * H)), rnd((H, 4 * H)), rnd((1, 4 * H))))
    else:
      lstm.append((rnd((H, 4 * H)), rnd((1, 4 * H)), rnd((H, 4 * H)), rnd((1, 4 * H))))
  p["lstm"] = lstm
  p["out_W"], p["out_b"] = rnd((H, output_size)), rnd((1, output_size))
  return p


def prepare_fused_params(p, *, batch_size, feat_len, n_phr, scales, num_layers):
  """One-time host-side folding / fusing of parameters and constant matrices."""
  for s in scales:
    assert n_phr % s == 0, "phrase length must be divisible by every dynamic scale"
  S = int(sum(scales))
  pool = np.zeros((S, n_phr), np.float32)       # stacked average-pooling matrices
  seg = np.zeros((S, S), np.float32)            # block-diag segment-sum (per-scale softmax)
  off = 0
  for s in scales:
    w = n_phr // s
    for r in range(s):
      pool[off + r, r * w:(r + 1) * w] = 1.0 / float(w)
    seg[off:off + s, off:off + s] = 1.0
    off += s
  expand = np.zeros((batch_size * feat_len, batch_size), np.float32)  # batch -> rows expansion
  for b in range(batch_size):
    expand[b * feat_len:(b + 1) * feat_len, b] = 1.0

  fp = {}
  fp["al_W"], fp["al_U"] = p["align"]["W"], p["align"]["U"]
  fp["al_b"], fp["al_w"] = p["align"]["b"], p["align"]["w"]
  fp["pool_all"] = jnp.asarray(pool)
  fp["seg_ones"] = jnp.asarray(seg)
  fp["expand_bq"] = jnp.asarray(expand)
  fp["dyn_M"] = jnp.dot(p["dyn"]["Wq"], p["dyn"]["Wk"].T)        # fold Wq @ Wk^T
  fp["dyn_Wo"], fp["dyn_bo"] = p["dyn"]["Wo"], p["dyn"]["bo"]
  fp["polar_W"], fp["polar_b"] = p["polar_W"], p["polar_b"]
  fp["gfold_W"] = jnp.dot(p["inte_W"], p["gate_W"])              # fold inte_head -> gating_w
  fp["gfold_b"] = jnp.dot(p["inte_b"], p["gate_W"]) + p["gate_b"]
  fp["attn_Wq"], fp["attn_b"] = p["attn_Wq"], p["attn_b"]
  fp["attn_U"] = jnp.concatenate([p["attn_U_ev"], p["attn_U_grp"], p["attn_U_vis"]], axis=0)
  fp["attn_w"] = jnp.transpose(p["attn_w"])                      # (Ba, 1) column for MXU reduce
  lstm_flat = []
  Wev, Wgr, Wvi, Wem, b_ih0, Whh0, b_hh0 = p["lstm"][0]
  lstm_flat += [jnp.concatenate([Wev, Wgr, Wvi, Wem], axis=0), Whh0, b_ih0 + b_hh0]
  for l in range(1, num_layers):
    Wih, b_ih, Whh, b_hh = p["lstm"][l]
    lstm_flat += [Wih, Whh, b_ih + b_hh]
  fp["lstm_flat"] = lstm_flat
  fp["out_W"], fp["out_b"] = p["out_W"], p["out_b"]
  fp["_n_scales"] = float(len(scales))
  fp["_inv_sqrt_dk"] = float(1.0 / np.sqrt(p["dyn"]["Wq"].shape[-1]))
  return fp


# --------------------------------- forward ------------------------------------
def decoder_forward(fp, em_embedding, embedded, hidden, vis_feats, phr_feats,
                    t, emotion_vocab_feats, emotion_cate_feats, *, num_layers):
  # t, emotion_vocab_feats, emotion_cate_feats are accepted but unused (as in the PyTorch forward).
  h0, c0 = hidden                           # (num_layers, B, H) PyTorch layout, used as-is
  B, Lq, E = em_embedding.shape
  _, Lf, _ = phr_feats.shape
  V = vis_feats.shape[-1]
  H = h0.shape[-1]
  O = fp["out_b"].shape[-1]

  inputs = [em_embedding, embedded, h0, c0, vis_feats, phr_feats,
            fp["al_W"], fp["al_U"], fp["al_b"], fp["al_w"],
            fp["pool_all"], fp["seg_ones"], fp["dyn_M"], fp["dyn_Wo"], fp["dyn_bo"],
            fp["polar_W"], fp["polar_b"], fp["gfold_W"], fp["gfold_b"],
            fp["attn_Wq"], fp["attn_U"], fp["attn_b"], fp["attn_w"], fp["expand_bq"]]
  inputs += list(fp["lstm_flat"])
  inputs += [fp["out_W"], fp["out_b"]]

  kernel = _make_fused_decoder_kernel(B, Lq, Lf, E, V, H, num_layers,
                                      fp["_n_scales"], fp["_inv_sqrt_dk"])

  out_shape = (jax.ShapeDtypeStruct((B, O), F32),
               jax.ShapeDtypeStruct((num_layers, B, H), F32),
               jax.ShapeDtypeStruct((num_layers, B, H), F32),
               jax.ShapeDtypeStruct((B, Lq, Lf), F32),
               jax.ShapeDtypeStruct((B, Lq, Lf), F32),
               jax.ShapeDtypeStruct((B, Lq, E), F32))

  logp, h1, c1, align_w, align_logits, em_out = pl.pallas_call(
      kernel,
      out_shape=out_shape,
      in_specs=[_vmem_spec() for _ in inputs],
      out_specs=tuple(_vmem_spec() for _ in out_shape),
  )(*inputs)

  return logp, (h1, c1), align_w, align_logits, em_out


# ----------------------------------- main --------------------------------------
if __name__ == "__main__":
  num_layers = 2
  B, feat_len, n_phr = 2, 8, 30          # n_phr divisible by all dynamic scales [2,3,5,6,10]
  E = V = 32                             # embedding_size == vis_feat_size (required, see above)
  H = 32                                 # hidden_size
  O = 40                                 # output_size (vocab)
  scales = (2, 3, 5, 6, 10)

  key = jax.random.PRNGKey(0)
  kp, k1, k2, k3, k4, k5, k6 = jax.random.split(key, 7)
  raw = init_decoder_params(kp, num_layers=num_layers, vis_feat_size=V,
                            embedding_size=E, sem_align_hidden_size=32,
                            sem_attn_hidden_size=32, hidden_size=H, output_size=O)
  fp = prepare_fused_params(raw, batch_size=B, feat_len=feat_len, n_phr=n_phr,
                            scales=scales, num_layers=num_layers)

  em_embedding = jax.random.normal(k1, (B, feat_len, E), dtype=F32)
  embedded = jax.random.normal(k2, (B, E), dtype=F32)
  h0 = jax.random.normal(k3, (num_layers, B, H), dtype=F32)
  c0 = jax.random.normal(k4, (num_layers, B, H), dtype=F32)
  vis_feats = jax.random.normal(k5, (B, feat_len, V), dtype=F32)
  phr_feats = jax.random.normal(k6, (B, n_phr, E), dtype=F32)
  emotion_vocab_feats = jnp.zeros((B, 5, E), dtype=F32)   # unused by forward
  emotion_cate_feats = jnp.zeros((B, 8), dtype=F32)       # unused by forward

  out = decoder_forward(fp, em_embedding, embedded, (h0, c0), vis_feats, phr_feats,
                        0, emotion_vocab_feats, emotion_cate_feats, num_layers=num_layers)
  logp, (h1, c1), align_w, align_logits, em_out = jax.block_until_ready(out)

  assert logp.shape == (B, O)
  assert h1.shape == (num_layers, B, H) and c1.shape == (num_layers, B, H)
  assert align_w.shape == (B, feat_len, n_phr) and align_logits.shape == (B, feat_len, n_phr)
  assert em_out.shape == (B, feat_len, E)
  assert bool(jnp.isfinite(logp).all())
  print("KERNEL_OK")
</pallas_src>

<mosaic_0001>
module attributes {stable_mosaic.version = 11 : i64} {
  func.func @kernel(%arg0: memref<2x8x32xf32, #tpu.memory_space<vmem>>, %arg1: memref<2x32xf32, #tpu.memory_space<vmem>>, %arg2: memref<2x2x32xf32, #tpu.memory_space<vmem>>, %arg3: memref<2x2x32xf32, #tpu.memory_space<vmem>>, %arg4: memref<2x8x32xf32, #tpu.memory_space<vmem>>, %arg5: memref<2x30x32xf32, #tpu.memory_space<vmem>>, %arg6: memref<32x32xf32, #tpu.memory_space<vmem>>, %arg7: memref<32x32xf32, #tpu.memory_space<vmem>>, %arg8: memref<1x32xf32, #tpu.memory_space<vmem>>, %arg9: memref<1x32xf32, #tpu.memory_space<vmem>>, %arg10: memref<26x30xf32, #tpu.memory_space<vmem>>, %arg11: memref<26x26xf32, #tpu.memory_space<vmem>>, %arg12: memref<32x32xf32, #tpu.memory_space<vmem>>, %arg13: memref<32x32xf32, #tpu.memory_space<vmem>>, %arg14: memref<1x32xf32, #tpu.memory_space<vmem>>, %arg15: memref<32x32xf32, #tpu.memory_space<vmem>>, %arg16: memref<1x32xf32, #tpu.memory_space<vmem>>, %arg17: memref<32x1xf32, #tpu.memory_space<vmem>>, %arg18: memref<1x1xf32, #tpu.memory_space<vmem>>, %arg19: memref<32x32xf32, #tpu.memory_space<vmem>>, %arg20: memref<96x32xf32, #tpu.memory_space<vmem>>, %arg21: memref<1x32xf32, #tpu.memory_space<vmem>>, %arg22: memref<32x1xf32, #tpu.memory_space<vmem>>, %arg23: memref<16x2xf32, #tpu.memory_space<vmem>>, %arg24: memref<128x128xf32, #tpu.memory_space<vmem>>, %arg25: memref<32x128xf32, #tpu.memory_space<vmem>>, %arg26: memref<1x128xf32, #tpu.memory_space<vmem>>, %arg27: memref<32x128xf32, #tpu.memory_space<vmem>>, %arg28: memref<32x128xf32, #tpu.memory_space<vmem>>, %arg29: memref<1x128xf32, #tpu.memory_space<vmem>>, %arg30: memref<32x40xf32, #tpu.memory_space<vmem>>, %arg31: memref<1x40xf32, #tpu.memory_space<vmem>>, %arg32: memref<2x40xf32, #tpu.memory_space<vmem>>, %arg33: memref<2x2x32xf32, #tpu.memory_space<vmem>>, %arg34: memref<2x2x32xf32, #tpu.memory_space<vmem>>, %arg35: memref<2x8x30xf32, #tpu.memory_space<vmem>>, %arg36: memref<2x8x30xf32, #tpu.memory_space<vmem>>, %arg37: memref<2x8x32xf32, #tpu.memory_space<vmem>>) attributes {dimension_semantics = [], scalar_prefetch = 0 : i64, scratch_operands = 0 : i64, tpu.core_type = #tpu.core_type<tc>} {
    %c0 = arith.constant 0 : index
    %c0_0 = arith.constant 0 : index
    %c0_1 = arith.constant 0 : index
    %0 = vector.load %arg0[%c0, %c0_0, %c0_1] : memref<2x8x32xf32, #tpu.memory_space<vmem>>, vector<1x8x32xf32>
    %1 = vector.shape_cast %0 : vector<1x8x32xf32> to vector<8x32xf32>
    %c1 = arith.constant 1 : index
    %c0_2 = arith.constant 0 : index
    %c0_3 = arith.constant 0 : index
    %2 = vector.load %arg0[%c1, %c0_2, %c0_3] : memref<2x8x32xf32, #tpu.memory_space<vmem>>, vector<1x8x32xf32>
    %3 = vector.shape_cast %2 : vector<1x8x32xf32> to vector<8x32xf32>
    %4 = tpu.concatenate %1, %3 in 0 : vector<8x32xf32>, vector<8x32xf32> -> vector<16x32xf32>
    %c0_4 = arith.constant 0 : index
    %c0_5 = arith.constant 0 : index
    %c0_6 = arith.constant 0 : index
    %5 = vector.load %arg4[%c0_4, %c0_5, %c0_6] : memref<2x8x32xf32, #tpu.memory_space<vmem>>, vector<1x8x32xf32>
    %6 = vector.shape_cast %5 : vector<1x8x32xf32> to vector<8x32xf32>
    %c1_7 = arith.constant 1 : index
    %c0_8 = arith.constant 0 : index
    %c0_9 = arith.constant 0 : index
    %7 = vector.load %arg4[%c1_7, %c0_8, %c0_9] : memref<2x8x32xf32, #tpu.memory_space<vmem>>, vector<1x8x32xf32>
    %8 = vector.shape_cast %7 : vector<1x8x32xf32> to vector<8x32xf32>
    %9 = tpu.concatenate %6, %8 in 0 : vector<8x32xf32>, vector<8x32xf32> -> vector<16x32xf32>
    %c0_10 = arith.constant 0 : index
    %c0_11 = arith.constant 0 : index
    %10 = vector.load %arg6[%c0_10, %c0_11] : memref<32x32xf32, #tpu.memory_space<vmem>>, vector<32x32xf32>
    %cst = arith.constant dense<0.000000e+00> : vector<16x32xf32>
    %11 = tpu.matmul %9, %10, %cst {dimension_numbers = #tpu.dot_dimension_numbers<[1], [0], [0], [1], [0, 0, 1, 1], [], []>} : vector<16x32xf32>, vector<32x32xf32>, vector<16x32xf32> -> vector<16x32xf32>
    %c0_12 = arith.constant 0 : index
    %c0_13 = arith.constant 0 : index
    %12 = vector.load %arg12[%c0_12, %c0_13] : memref<32x32xf32, #tpu.memory_space<vmem>>, vector<32x32xf32>
    %cst_14 = arith.constant dense<0.000000e+00> : vector<16x32xf32>
    %13 = tpu.matmul %4, %12, %cst_14 {dimension_numbers = #tpu.dot_dimension_numbers<[1], [0], [0], [1], [0, 0, 1, 1], [], []>} : vector<16x32xf32>, vector<32x32xf32>, vector<16x32xf32> -> vector<16x32xf32>
    %c0_15 = arith.constant 0 : index
    %c0_16 = arith.constant 0 : index
    %c0_17 = arith.constant 0 : index
    %14 = vector.load %arg5[%c0_15, %c0_16, %c0_17] : memref<2x30x32xf32, #tpu.memory_space<vmem>>, vector<1x30x32xf32>
    %15 = vector.shape_cast %14 : vector<1x30x32xf32> to vector<30x32xf32>
    %c0_18 = arith.constant 0 : index
    %c0_19 = arith.constant 0 : index
    %16 = vector.load %arg7[%c0_18, %c0_19] : memref<32x32xf32, #tpu.memory_space<vmem>>, vector<32x32xf32>
    %cst_20 = arith.constant dense<0.000000e+00> : vector<30x32xf32>
    %17 = tpu.matmul %15, %16, %cst_20 {dimension_numbers = #tpu.dot_dimension_numbers<[1], [0], [0], [1], [0, 0, 1, 1], [], []>} : vector<30x32xf32>, vector<32x32xf32>, vector<30x32xf32> -> vector<30x32xf32>
    %18 = vector.extract_strided_slice %11 {offsets = [0, 0], sizes = [8, 32], strides = [1, 1]} : vector<16x32xf32> to vector<8x32xf32>
    %19 = vector.shape_cast %18 : vector<8x32xf32> to vector<8x1x32xf32>
    %20 = vector.shape_cast %17 : vector<30x32xf32> to vector<1x30x32xf32>
    %21 = vector.broadcast %19 : vector<8x1x32xf32> to vector<8x30x32xf32>
    %22 = vector.broadcast %20 : vector<1x30x32xf32> to vector<8x30x32xf32>
    %23 = arith.addf %21, %22 : vector<8x30x32xf32>
    %c0_21 = arith.constant 0 : index
    %c0_22 = arith.constant 0 : index
    %24 = vector.load %arg8[%c0_21, %c0_22] : memref<1x32xf32, #tpu.memory_space<vmem>>, vector<1x32xf32>
    %25 = vector.shape_cast %24 : vector<1x32xf32> to vector<1x1x32xf32>
    %26 = vector.broadcast %25 : vector<1x1x32xf32> to vector<8x30x32xf32>
    %27 = arith.addf %23, %26 : vector<8x30x32xf32>
    %28 = math.tanh %27 : vector<8x30x32xf32>
    %c0_23 = arith.constant 0 : index
    %c0_24 = arith.constant 0 : index
    %29 = vector.load %arg9[%c0_23, %c0_24] : memref<1x32xf32, #tpu.memory_space<vmem>>, vector<1x32xf32>
    %30 = vector.shape_cast %29 : vector<1x32xf32> to vector<1x1x32xf32>
    %31 = vector.broadcast %30 : vector<1x1x32xf32> to vector<8x30x32xf32>
    %32 = arith.mulf %28, %31 : vector<8x30x32xf32>
    %cst_25 = arith.constant dense<0.000000e+00> : vector<8x30xf32>
    %33 = vector.multi_reduction <add>, %32, %cst_25 [2] : vector<8x30x32xf32> to vector<8x30xf32>
    %cst_26 = arith.constant dense<0xFF800000> : vector<8xf32>
    %34 = vector.multi_reduction <maximumf>, %33, %cst_26 [1] : vector<8x30xf32> to vector<8xf32>
    %35 = vector.shape_cast %34 : vector<8xf32> to vector<8x1xf32>
    %36 = vector.broadcast %35 : vector<8x1xf32> to vector<8x30xf32>
    %37 = arith.subf %33, %36 : vector<8x30xf32>
    %38 = math.exp %37 : vector<8x30xf32>
    %cst_27 = arith.constant dense<0.000000e+00> : vector<8xf32>
    %39 = vector.multi_reduction <add>, %38, %cst_27 [1] : vector<8x30xf32> to vector<8xf32>
    %40 = vector.shape_cast %39 : vector<8xf32> to vector<8x1xf32>
    %41 = vector.broadcast %40 : vector<8x1xf32> to vector<8x30xf32>
    %42 = arith.divf %38, %41 : vector<8x30xf32>
    %c0_28 = arith.constant 0 : index
    %c0_29 = arith.constant 0 : index
    %c0_30 = arith.constant 0 : index
    %43 = vector.load %arg35[%c0_28, %c0_29, %c0_30] : memref<2x8x30xf32, #tpu.memory_space<vmem>>, vector<1x8x30xf32>
    %44 = vector.shape_cast %43 : vector<1x8x30xf32> to vector<8x30xf32>
    %45 = vector.shape_cast %42 : vector<8x30xf32> to vector<1x8x30xf32>
    tpu.vector_store %arg35[%c0_28, %c0_29, %c0_30], %45 {strides = array<i32>} : memref<2x8x30xf32, #tpu.memory_space<vmem>>, vector<1x8x30xf32>,
    %c0_31 = arith.constant 0 : index
    %c0_32 = arith.constant 0 : index
    %c0_33 = arith.constant 0 : index
    %46 = vector.load %arg36[%c0_31, %c0_32, %c0_33] : memref<2x8x30xf32, #tpu.memory_space<vmem>>, vector<1x8x30xf32>
    %47 = vector.shape_cast %46 : vector<1x8x30xf32> to vector<8x30xf32>
    %48 = vector.shape_cast %33 : vector<8x30xf32> to vector<1x8x30xf32>
    tpu.vector_store %arg36[%c0_31, %c0_32, %c0_33], %48 {strides = array<i32>} : memref<2x8x30xf32, #tpu.memory_space<vmem>>, vector<1x8x30xf32>,
    %cst_34 = arith.constant dense<0.000000e+00> : vector<8x32xf32>
    %49 = tpu.matmul %42, %15, %cst_34 {dimension_numbers = #tpu.dot_dimension_numbers<[1], [0], [0], [1], [0, 0, 1, 1], [], []>} : vector<8x30xf32>, vector<30x32xf32>, vector<8x32xf32> -> vector<8x32xf32>
    %c0_35 = arith.constant 0 : index
    %c0_36 = arith.constant 0 : index
    %50 = vector.load %arg10[%c0_35, %c0_36] : memref<26x30xf32, #tpu.memory_space<vmem>>, vector<26x30xf32>
    %cst_37 = arith.constant dense<0.000000e+00> : vector<26x32xf32>
    %51 = tpu.matmul %50, %15, %cst_37 {dimension_numbers = #tpu.dot_dimension_numbers<[1], [0], [0], [1], [0, 0, 1, 1], [], []>} : vector<26x30xf32>, vector<30x32xf32>, vector<26x32xf32> -> vector<26x32xf32>
    %52 = vector.extract_strided_slice %13 {offsets = [0, 0], sizes = [8, 32], strides = [1, 1]} : vector<16x32xf32> to vector<8x32xf32>
    %cst_38 = arith.constant dense<0.000000e+00> : vector<8x26xf32>
    %53 = tpu.matmul %52, %51, %cst_38 {dimension_numbers = #tpu.dot_dimension_numbers<[1], [1], [0], [0], [0, 0, 1, 0], [], []>} : vector<8x32xf32>, vector<26x32xf32>, vector<8x26xf32> -> vector<8x26xf32>
    %cst_39 = arith.constant 1.000000e-01 : f32
    %54 = vector.broadcast %cst_39 : f32 to vector<8x26xf32>
    %55 = arith.mulf %53, %54 : vector<8x26xf32>
    %cst_40 = arith.constant dense<0xFF800000> : vector<8xf32>
    %56 = vector.multi_reduction <maximumf>, %55, %cst_40 [1] : vector<8x26xf32> to vector<8xf32>
    %57 = vector.shape_cast %56 : vector<8xf32> to vector<8x1xf32>
    %58 = vector.broadcast %57 : vector<8x1xf32> to vector<8x26xf32>
    %59 = arith.subf %55, %58 : vector<8x26xf32>
    %60 = math.exp %59 : vector<8x26xf32>
    %c0_41 = arith.constant 0 : index
    %c0_42 = arith.constant 0 : index
    %61 = vector.load %arg11[%c0_41, %c0_42] : memref<26x26xf32, #tpu.memory_space<vmem>>, vector<26x26xf32>
    %cst_43 = arith.constant dense<0.000000e+00> : vector<8x26xf32>
    %62 = tpu.matmul %60, %61, %cst_43 {dimension_numbers = #tpu.dot_dimension_numbers<[1], [0], [0], [1], [0, 0, 1, 1], [], []>} : vector<8x26xf32>, vector<26x26xf32>, vector<8x26xf32> -> vector<8x26xf32>
    %63 = arith.divf %60, %62 : vector<8x26xf32>
    %cst_44 = arith.constant dense<0.000000e+00> : vector<8x32xf32>
    %64 = tpu.matmul %63, %51, %cst_44 {dimension_numbers = #tpu.dot_dimension_numbers<[1], [0], [0], [1], [0, 0, 1, 1], [], []>} : vector<8x26xf32>, vector<26x32xf32>, vector<8x32xf32> -> vector<8x32xf32>
    %c1_45 = arith.constant 1 : index
    %c0_46 = arith.constant 0 : index
    %c0_47 = arith.constant 0 : index
    %65 = vector.load %arg5[%c1_45, %c0_46, %c0_47] : memref<2x30x32xf32, #tpu.memory_space<vmem>>, vector<1x30x32xf32>
    %66 = vector.shape_cast %65 : vector<1x30x32xf32> to vector<30x32xf32>
    %c0_48 = arith.constant 0 : index
    %c0_49 = arith.constant 0 : index
    %67 = vector.load %arg7[%c0_48, %c0_49] : memref<32x32xf32, #tpu.memory_space<vmem>>, vector<32x32xf32>
    %cst_50 = arith.constant dense<0.000000e+00> : vector<30x32xf32>
    %68 = tpu.matmul %66, %67, %cst_50 {dimension_numbers = #tpu.dot_dimension_numbers<[1], [0], [0], [1], [0, 0, 1, 1], [], []>} : vector<30x32xf32>, vector<32x32xf32>, vector<30x32xf32> -> vector<30x32xf32>
    %69 = vector.extract_strided_slice %11 {offsets = [8, 0], sizes = [8, 32], strides = [1, 1]} : vector<16x32xf32> to vector<8x32xf32>
    %70 = vector.shape_cast %69 : vector<8x32xf32> to vector<8x1x32xf32>
    %71 = vector.shape_cast %68 : vector<30x32xf32> to vector<1x30x32xf32>
    %72 = vector.broadcast %70 : vector<8x1x32xf32> to vector<8x30x32xf32>
    %73 = vector.broadcast %71 : vector<1x30x32xf32> to vector<8x30x32xf32>
    %74 = arith.addf %72, %73 : vector<8x30x32xf32>
    %c0_51 = arith.constant 0 : index
    %c0_52 = arith.constant 0 : index
    %75 = vector.load %arg8[%c0_51, %c0_52] : memref<1x32xf32, #tpu.memory_space<vmem>>, vector<1x32xf32>
    %76 = vector.shape_cast %75 : vector<1x32xf32> to vector<1x1x32xf32>
    %77 = vector.broadcast %76 : vector<1x1x32xf32> to vector<8x30x32xf32>
    %78 = arith.addf %74, %77 : vector<8x30x32xf32>
    %79 = math.tanh %78 : vector<8x30x32xf32>
    %c0_53 = arith.constant 0 : index
    %c0_54 = arith.constant 0 : index
    %80 = vector.load %arg9[%c0_53, %c0_54] : memref<1x32xf32, #tpu.memory_space<vmem>>, vector<1x32xf32>
    %81 = vector.shape_cast %80 : vector<1x32xf32> to vector<1x1x32xf32>
    %82 = vector.broadcast %81 : vector<1x1x32xf32> to vector<8x30x32xf32>
    %83 = arith.mulf %79, %82 : vector<8x30x32xf32>
    %cst_55 = arith.constant dense<0.000000e+00> : vector<8x30xf32>
    %84 = vector.multi_reduction <add>, %83, %cst_55 [2] : vector<8x30x32xf32> to vector<8x30xf32>
    %cst_56 = arith.constant dense<0xFF800000> : vector<8xf32>
    %85 = vector.multi_reduction <maximumf>, %84, %cst_56 [1] : vector<8x30xf32> to vector<8xf32>
    %86 = vector.shape_cast %85 : vector<8xf32> to vector<8x1xf32>
    %87 = vector.broadcast %86 : vector<8x1xf32> to vector<8x30xf32>
    %88 = arith.subf %84, %87 : vector<8x30xf32>
    %89 = math.exp %88 : vector<8x30xf32>
    %cst_57 = arith.constant dense<0.000000e+00> : vector<8xf32>
    %90 = vector.multi_reduction <add>, %89, %cst_57 [1] : vector<8x30xf32> to vector<8xf32>
    %91 = vector.shape_cast %90 : vector<8xf32> to vector<8x1xf32>
    %92 = vector.broadcast %91 : vector<8x1xf32> to vector<8x30xf32>
    %93 = arith.divf %89, %92 : vector<8x30xf32>
    %c1_58 = arith.constant 1 : index
    %c0_59 = arith.constant 0 : index
    %c0_60 = arith.constant 0 : index
    %94 = vector.load %arg35[%c1_58, %c0_59, %c0_60] : memref<2x8x30xf32, #tpu.memory_space<vmem>>, vector<1x8x30xf32>
    %95 = vector.shape_cast %94 : vector<1x8x30xf32> to vector<8x30xf32>
    %96 = vector.shape_cast %93 : vector<8x30xf32> to vector<1x8x30xf32>
    tpu.vector_store %arg35[%c1_58, %c0_59, %c0_60], %96 {strides = array<i32>} : memref<2x8x30xf32, #tpu.memory_space<vmem>>, vector<1x8x30xf32>,
    %c1_61 = arith.constant 1 : index
    %c0_62 = arith.constant 0 : index
    %c0_63 = arith.constant 0 : index
    %97 = vector.load %arg36[%c1_61, %c0_62, %c0_63] : memref<2x8x30xf32, #tpu.memory_space<vmem>>, vector<1x8x30xf32>
    %98 = vector.shape_cast %97 : vector<1x8x30xf32> to vector<8x30xf32>
    %99 = vector.shape_cast %84 : vector<8x30xf32> to vector<1x8x30xf32>
    tpu.vector_store %arg36[%c1_61, %c0_62, %c0_63], %99 {strides = array<i32>} : memref<2x8x30xf32, #tpu.memory_space<vmem>>, vector<1x8x30xf32>,
    %cst_64 = arith.constant dense<0.000000e+00> : vector<8x32xf32>
    %100 = tpu.matmul %93, %66, %cst_64 {dimension_numbers = #tpu.dot_dimension_numbers<[1], [0], [0], [1], [0, 0, 1, 1], [], []>} : vector<8x30xf32>, vector<30x32xf32>, vector<8x32xf32> -> vector<8x32xf32>
    %c0_65 = arith.constant 0 : index
    %c0_66 = arith.constant 0 : index
    %101 = vector.load %arg10[%c0_65, %c0_66] : memref<26x30xf32, #tpu.memory_space<vmem>>, vector<26x30xf32>
    %cst_67 = arith.constant dense<0.000000e+00> : vector<26x32xf32>
    %102 = tpu.matmul %101, %66, %cst_67 {dimension_numbers = #tpu.dot_dimension_numbers<[1], [0], [0], [1], [0, 0, 1, 1], [], []>} : vector<26x30xf32>, vector<30x32xf32>, vector<26x32xf32> -> vector<26x32xf32>
    %103 = vector.extract_strided_slice %13 {offsets = [8, 0], sizes = [8, 32], strides = [1, 1]} : vector<16x32xf32> to vector<8x32xf32>
    %cst_68 = arith.constant dense<0.000000e+00> : vector<8x26xf32>
    %104 = tpu.matmul %103, %102, %cst_68 {dimension_numbers = #tpu.dot_dimension_numbers<[1], [1], [0], [0], [0, 0, 1, 0], [], []>} : vector<8x32xf32>, vector<26x32xf32>, vector<8x26xf32> -> vector<8x26xf32>
    %cst_69 = arith.constant 1.000000e-01 : f32
    %105 = vector.broadcast %cst_69 : f32 to vector<8x26xf32>
    %106 = arith.mulf %104, %105 : vector<8x26xf32>
    %cst_70 = arith.constant dense<0xFF800000> : vector<8xf32>
    %107 = vector.multi_reduction <maximumf>, %106, %cst_70 [1] : vector<8x26xf32> to vector<8xf32>
    %108 = vector.shape_cast %107 : vector<8xf32> to vector<8x1xf32>
    %109 = vector.broadcast %108 : vector<8x1xf32> to vector<8x26xf32>
    %110 = arith.subf %106, %109 : vector<8x26xf32>
    %111 = math.exp %110 : vector<8x26xf32>
    %c0_71 = arith.constant 0 : index
    %c0_72 = arith.constant 0 : index
    %112 = vector.load %arg11[%c0_71, %c0_72] : memref<26x26xf32, #tpu.memory_space<vmem>>, vector<26x26xf32>
    %cst_73 = arith.constant dense<0.000000e+00> : vector<8x26xf32>
    %113 = tpu.matmul %111, %112, %cst_73 {dimension_numbers = #tpu.dot_dimension_numbers<[1], [0], [0], [1], [0, 0, 1, 1], [], []>} : vector<8x26xf32>, vector<26x26xf32>, vector<8x26xf32> -> vector<8x26xf32>
    %114 = arith.divf %111, %113 : vector<8x26xf32>
    %cst_74 = arith.constant dense<0.000000e+00> : vector<8x32xf32>
    %115 = tpu.matmul %114, %102, %cst_74 {dimension_numbers = #tpu.dot_dimension_numbers<[1], [0], [0], [1], [0, 0, 1, 1], [], []>} : vector<8x26xf32>, vector<26x32xf32>, vector<8x32xf32> -> vector<8x32xf32>
    %116 = tpu.concatenate %49, %100 in 0 : vector<8x32xf32>, vector<8x32xf32> -> vector<16x32xf32>
    %117 = tpu.concatenate %64, %115 in 0 : vector<8x32xf32>, vector<8x32xf32> -> vector<16x32xf32>
    %cst_75 = arith.constant 2.000000e-01 : f32
    %118 = vector.broadcast %cst_75 : f32 to vector<16x32xf32>
    %119 = arith.mulf %117, %118 : vector<16x32xf32>
    %c0_76 = arith.constant 0 : index
    %c0_77 = arith.constant 0 : index
    %120 = vector.load %arg13[%c0_76, %c0_77] : memref<32x32xf32, #tpu.memory_space<vmem>>, vector<32x32xf32>
    %cst_78 = arith.constant dense<0.000000e+00> : vector<16x32xf32>
    %121 = tpu.matmul %119, %120, %cst_78 {dimension_numbers = #tpu.dot_dimension_numbers<[1], [0], [0], [1], [0, 0, 1, 1], [], []>} : vector<16x32xf32>, vector<32x32xf32>, vector<16x32xf32> -> vector<16x32xf32>
    %c0_79 = arith.constant 0 : index
    %c0_80 = arith.constant 0 : index
    %122 = vector.load %arg14[%c0_79, %c0_80] : memref<1x32xf32, #tpu.memory_space<vmem>>, vector<1x32xf32>
    %123 = vector.broadcast %122 : vector<1x32xf32> to vector<16x32xf32>
    %124 = arith.addf %121, %123 : vector<16x32xf32>
    %125 = math.tanh %124 : vector<16x32xf32>
    %126 = arith.addf %4, %125 : vector<16x32xf32>
    %127 = vector.extract_strided_slice %126 {offsets = [0, 0], sizes = [8, 32], strides = [1, 1]} : vector<16x32xf32> to vector<8x32xf32>
    %c0_81 = arith.constant 0 : index
    %c0_82 = arith.constant 0 : index
    %c0_83 = arith.constant 0 : index
    %128 = vector.load %arg37[%c0_81, %c0_82, %c0_83] : memref<2x8x32xf32, #tpu.memory_space<vmem>>, vector<1x8x32xf32>
    %129 = vector.shape_cast %128 : vector<1x8x32xf32> to vector<8x32xf32>
    %130 = vector.shape_cast %127 : vector<8x32xf32> to vector<1x8x32xf32>
    tpu.vector_store %arg37[%c0_81, %c0_82, %c0_83], %130 {strides = array<i32>} : memref<2x8x32xf32, #tpu.memory_space<vmem>>, vector<1x8x32xf32>,
    %131 = vector.extract_strided_slice %126 {offsets = [8, 0], sizes = [8, 32], strides = [1, 1]} : vector<16x32xf32> to vector<8x32xf32>
    %c1_84 = arith.constant 1 : index
    %c0_85 = arith.constant 0 : index
    %c0_86 = arith.constant 0 : index
    %132 = vector.load %arg37[%c1_84, %c0_85, %c0_86] : memref<2x8x32xf32, #tpu.memory_space<vmem>>, vector<1x8x32xf32>
    %133 = vector.shape_cast %132 : vector<1x8x32xf32> to vector<8x32xf32>
    %134 = vector.shape_cast %131 : vector<8x32xf32> to vector<1x8x32xf32>
    tpu.vector_store %arg37[%c1_84, %c0_85, %c0_86], %134 {strides = array<i32>} : memref<2x8x32xf32, #tpu.memory_space<vmem>>, vector<1x8x32xf32>,
    %c0_87 = arith.constant 0 : index
    %c0_88 = arith.constant 0 : index
    %135 = vector.load %arg15[%c0_87, %c0_88] : memref<32x32xf32, #tpu.memory_space<vmem>>, vector<32x32xf32>
    %cst_89 = arith.constant dense<0.000000e+00> : vector<16x32xf32>
    %136 = tpu.matmul %126, %135, %cst_89 {dimension_numbers = #tpu.dot_dimension_numbers<[1], [0], [0], [1], [0, 0, 1, 1], [], []>} : vector<16x32xf32>, vector<32x32xf32>, vector<16x32xf32> -> vector<16x32xf32>
    %c0_90 = arith.constant 0 : index
    %c0_91 = arith.constant 0 : index
    %137 = vector.load %arg16[%c0_90, %c0_91] : memref<1x32xf32, #tpu.memory_space<vmem>>, vector<1x32xf32>
    %138 = vector.broadcast %137 : vector<1x32xf32> to vector<16x32xf32>
    %139 = arith.addf %136, %138 : vector<16x32xf32>
    %c0_92 = arith.constant 0 : index
    %c0_93 = arith.constant 0 : index
    %140 = vector.load %arg17[%c0_92, %c0_93] : memref<32x1xf32, #tpu.memory_space<vmem>>, vector<32x1xf32>
    %cst_94 = arith.constant dense<0.000000e+00> : vector<16x1xf32>
    %141 = tpu.matmul %126, %140, %cst_94 {dimension_numbers = #tpu.dot_dimension_numbers<[1], [0], [0], [1], [0, 0, 1, 1], [], []>} : vector<16x32xf32>, vector<32x1xf32>, vector<16x1xf32> -> vector<16x1xf32>
    %c0_95 = arith.constant 0 : index
    %c0_96 = arith.constant 0 : index
    %142 = vector.load %arg18[%c0_95, %c0_96] : memref<1x1xf32, #tpu.memory_space<vmem>>, vector<1x1xf32>
    %143 = vector.broadcast %142 : vector<1x1xf32> to vector<16x1xf32>
    %144 = arith.addf %141, %143 : vector<16x1xf32>
    %cst_97 = arith.constant 0.000000e+00 : f32
    %145 = vector.broadcast %cst_97 : f32 to vector<16x1xf32>
    %146 = arith.cmpf oge, %144, %145 : vector<16x1xf32>
    %cst_98 = arith.constant 0.00999999977 : f32
    %147 = vector.broadcast %cst_98 : f32 to vector<16x1xf32>
    %148 = arith.mulf %147, %144 : vector<16x1xf32>
    %149 = arith.select %146, %144, %148 : vector<16x1xi1>, vector<16x1xf32>
    %150 = vector.broadcast %149 : vector<16x1xf32> to vector<16x32xf32>
    %151 = arith.mulf %150, %139 : vector<16x32xf32>
    %152 = tpu.concatenate %151, %116, %9 in 1 : vector<16x32xf32>, vector<16x32xf32>, vector<16x32xf32> -> vector<16x96xf32>
    %c1_99 = arith.constant 1 : index
    %c0_100 = arith.constant 0 : index
    %c0_101 = arith.constant 0 : index
    %153 = vector.load %arg2[%c1_99, %c0_100, %c0_101] : memref<2x2x32xf32, #tpu.memory_space<vmem>>, vector<1x2x32xf32>
    %154 = vector.shape_cast %153 : vector<1x2x32xf32> to vector<2x32xf32>
    %c0_102 = arith.constant 0 : index
    %c0_103 = arith.constant 0 : index
    %155 = vector.load %arg19[%c0_102, %c0_103] : memref<32x32xf32, #tpu.memory_space<vmem>>, vector<32x32xf32>
    %cst_104 = arith.constant dense<0.000000e+00> : vector<2x32xf32>
    %156 = tpu.matmul %154, %155, %cst_104 {dimension_numbers = #tpu.dot_dimension_numbers<[1], [0], [0], [1], [0, 0, 1, 1], [], []>} : vector<2x32xf32>, vector<32x32xf32>, vector<2x32xf32> -> vector<2x32xf32>
    %c0_105 = arith.constant 0 : index
    %c0_106 = arith.constant 0 : index
    %157 = vector.load %arg23[%c0_105, %c0_106] : memref<16x2xf32, #tpu.memory_space<vmem>>, vector<16x2xf32>
    %cst_107 = arith.constant dense<0.000000e+00> : vector<16x32xf32>
    %158 = tpu.matmul %157, %156, %cst_107 {dimension_numbers = #tpu.dot_dimension_numbers<[1], [0], [0], [1], [0, 0, 1, 1], [], []>} : vector<16x2xf32>, vector<2x32xf32>, vector<16x32xf32> -> vector<16x32xf32>
    %c0_108 = arith.constant 0 : index
    %c0_109 = arith.constant 0 : index
    %159 = vector.load %arg20[%c0_108, %c0_109] : memref<96x32xf32, #tpu.memory_space<vmem>>, vector<96x32xf32>
    %cst_110 = arith.constant dense<0.000000e+00> : vector<16x32xf32>
    %160 = tpu.matmul %152, %159, %cst_110 {dimension_numbers = #tpu.dot_dimension_numbers<[1], [0], [0], [1], [0, 0, 1, 1], [], []>} : vector<16x96xf32>, vector<96x32xf32>, vector<16x32xf32> -> vector<16x32xf32>
    %161 = arith.addf %158, %160 : vector<16x32xf32>
    %c0_111 = arith.constant 0 : index
    %c0_112 = arith.constant 0 : index
    %162 = vector.load %arg21[%c0_111, %c0_112] : memref<1x32xf32, #tpu.memory_space<vmem>>, vector<1x32xf32>
    %163 = vector.broadcast %162 : vector<1x32xf32> to vector<16x32xf32>
    %164 = arith.addf %161, %163 : vector<16x32xf32>
    %165 = math.tanh %164 : vector<16x32xf32>
    %c0_113 = arith.constant 0 : index
    %c0_114 = arith.constant 0 : index
    %166 = vector.load %arg22[%c0_113, %c0_114] : memref<32x1xf32, #tpu.memory_space<vmem>>, vector<32x1xf32>
    %cst_115 = arith.constant dense<0.000000e+00> : vector<16x1xf32>
    %167 = tpu.matmul %165, %166, %cst_115 {dimension_numbers = #tpu.dot_dimension_numbers<[1], [0], [0], [1], [0, 0, 1, 1], [], []>} : vector<16x32xf32>, vector<32x1xf32>, vector<16x1xf32> -> vector<16x1xf32>
    %168 = vector.extract_strided_slice %167 {offsets = [0, 0], sizes = [8, 1], strides = [1, 1]} : vector<16x1xf32> to vector<8x1xf32>
    %cst_116 = arith.constant dense<0xFF800000> : vector<1xf32>
    %169 = vector.multi_reduction <maximumf>, %168, %cst_116 [0] : vector<8x1xf32> to vector<1xf32>
    %170 = vector.shape_cast %169 : vector<1xf32> to vector<1x1xf32>
    %171 = vector.broadcast %170 : vector<1x1xf32> to vector<8x1xf32>
    %172 = arith.subf %168, %171 : vector<8x1xf32>
    %173 = math.exp %172 : vector<8x1xf32>
    %cst_117 = arith.constant dense<0.000000e+00> : vector<1xf32>
    %174 = vector.multi_reduction <add>, %173, %cst_117 [0] : vector<8x1xf32> to vector<1xf32>
    %175 = vector.shape_cast %174 : vector<1xf32> to vector<1x1xf32>
    %176 = vector.broadcast %175 : vector<1x1xf32> to vector<8x1xf32>
    %177 = arith.divf %173, %176 : vector<8x1xf32>
    %178 = vector.extract_strided_slice %152 {offsets = [0, 0], sizes = [8, 96], strides = [1, 1]} : vector<16x96xf32> to vector<8x96xf32>
    %179 = vector.broadcast %177 : vector<8x1xf32> to vector<8x96xf32>
    %180 = arith.mulf %179, %178 : vector<8x96xf32>
    %cst_118 = arith.constant dense<0.000000e+00> : vector<96xf32>
    %181 = vector.multi_reduction <add>, %180, %cst_118 [0] : vector<8x96xf32> to vector<96xf32>
    %182 = vector.shape_cast %181 : vector<96xf32> to vector<1x96xf32>
    %183 = vector.extract_strided_slice %167 {offsets = [8, 0], sizes = [8, 1], strides = [1, 1]} : vector<16x1xf32> to vector<8x1xf32>
    %cst_119 = arith.constant dense<0xFF800000> : vector<1xf32>
    %184 = vector.multi_reduction <maximumf>, %183, %cst_119 [0] : vector<8x1xf32> to vector<1xf32>
    %185 = vector.shape_cast %184 : vector<1xf32> to vector<1x1xf32>
    %186 = vector.broadcast %185 : vector<1x1xf32> to vector<8x1xf32>
    %187 = arith.subf %183, %186 : vector<8x1xf32>
    %188 = math.exp %187 : vector<8x1xf32>
    %cst_120 = arith.constant dense<0.000000e+00> : vector<1xf32>
    %189 = vector.multi_reduction <add>, %188, %cst_120 [0] : vector<8x1xf32> to vector<1xf32>
    %190 = vector.shape_cast %189 : vector<1xf32> to vector<1x1xf32>
    %191 = vector.broadcast %190 : vector<1x1xf32> to vector<8x1xf32>
    %192 = arith.divf %188, %191 : vector<8x1xf32>
    %193 = vector.extract_strided_slice %152 {offsets = [8, 0], sizes = [8, 96], strides = [1, 1]} : vector<16x96xf32> to vector<8x96xf32>
    %194 = vector.broadcast %192 : vector<8x1xf32> to vector<8x96xf32>
    %195 = arith.mulf %194, %193 : vector<8x96xf32>
    %cst_121 = arith.constant dense<0.000000e+00> : vector<96xf32>
    %196 = vector.multi_reduction <add>, %195, %cst_121 [0] : vector<8x96xf32> to vector<96xf32>
    %197 = vector.shape_cast %196 : vector<96xf32> to vector<1x96xf32>
    %198 = tpu.concatenate %182, %197 in 0 : vector<1x96xf32>, vector<1x96xf32> -> vector<2x96xf32>
    %c0_122 = arith.constant 0 : index
    %c0_123 = arith.constant 0 : index
    %199 = vector.load %arg1[%c0_122, %c0_123] : memref<2x32xf32, #tpu.memory_space<vmem>>, vector<2x32xf32>
    %200 = tpu.concatenate %198, %199 in 1 : vector<2x96xf32>, vector<2x32xf32> -> vector<2x128xf32>
    %c0_124 = arith.constant 0 : index
    %c0_125 = arith.constant 0 : index
    %201 = vector.load %arg24[%c0_124, %c0_125] : memref<128x128xf32, #tpu.memory_space<vmem>>, vector<128x128xf32>
    %cst_126 = arith.constant dense<0.000000e+00> : vector<2x128xf32>
    %202 = tpu.matmul %200, %201, %cst_126 {dimension_numbers = #tpu.dot_dimension_numbers<[1], [0], [0], [1], [0, 0, 1, 1], [], []>} : vector<2x128xf32>, vector<128x128xf32>, vector<2x128xf32> -> vector<2x128xf32>
    %c0_127 = arith.constant 0 : index
    %c0_128 = arith.constant 0 : index
    %c0_129 = arith.constant 0 : index
    %203 = vector.load %arg2[%c0_127, %c0_128, %c0_129] : memref<2x2x32xf32, #tpu.memory_space<vmem>>, vector<1x2x32xf32>
    %204 = vector.shape_cast %203 : vector<1x2x32xf32> to vector<2x32xf32>
    %c0_130 = arith.constant 0 : index
    %c0_131 = arith.constant 0 : index
    %205 = vector.load %arg25[%c0_130, %c0_131] : memref<32x128xf32, #tpu.memory_space<vmem>>, vector<32x128xf32>
    %cst_132 = arith.constant dense<0.000000e+00> : vector<2x128xf32>
    %206 = tpu.matmul %204, %205, %cst_132 {dimension_numbers = #tpu.dot_dimension_numbers<[1], [0], [0], [1], [0, 0, 1, 1], [], []>} : vector<2x32xf32>, vector<32x128xf32>, vector<2x128xf32> -> vector<2x128xf32>
    %207 = arith.addf %202, %206 : vector<2x128xf32>
    %c0_133 = arith.constant 0 : index
    %c0_134 = arith.constant 0 : index
    %208 = vector.load %arg26[%c0_133, %c0_134] : memref<1x128xf32, #tpu.memory_space<vmem>>, vector<1x128xf32>
    %209 = vector.broadcast %208 : vector<1x128xf32> to vector<2x128xf32>
    %210 = arith.addf %207, %209 : vector<2x128xf32>
    %c0_135 = arith.constant 0 : index
    %c0_136 = arith.constant 0 : index
    %c0_137 = arith.constant 0 : index
    %211 = vector.load %arg3[%c0_135, %c0_136, %c0_137] : memref<2x2x32xf32, #tpu.memory_space<vmem>>, vector<1x2x32xf32>
    %212 = vector.shape_cast %211 : vector<1x2x32xf32> to vector<2x32xf32>
    %213 = vector.extract_strided_slice %210 {offsets = [0, 0], sizes = [2, 32], strides = [1, 1]} : vector<2x128xf32> to vector<2x32xf32>
    %214 = arith.negf %213 : vector<2x32xf32>
    %215 = math.exp %214 : vector<2x32xf32>
    %cst_138 = arith.constant 1.000000e+00 : f32
    %216 = vector.broadcast %cst_138 : f32 to vector<2x32xf32>
    %217 = arith.addf %216, %215 : vector<2x32xf32>
    %218 = arith.divf %216, %217 : vector<2x32xf32>
    %219 = vector.extract_strided_slice %210 {offsets = [0, 32], sizes = [2, 32], strides = [1, 1]} : vector<2x128xf32> to vector<2x32xf32>
    %220 = arith.negf %219 : vector<2x32xf32>
    %221 = math.exp %220 : vector<2x32xf32>
    %cst_139 = arith.constant 1.000000e+00 : f32
    %222 = vector.broadcast %cst_139 : f32 to vector<2x32xf32>
    %223 = arith.addf %222, %221 : vector<2x32xf32>
    %224 = arith.divf %222, %223 : vector<2x32xf32>
    %225 = vector.extract_strided_slice %210 {offsets = [0, 64], sizes = [2, 32], strides = [1, 1]} : vector<2x128xf32> to vector<2x32xf32>
    %226 = math.tanh %225 : vector<2x32xf32>
    %227 = vector.extract_strided_slice %210 {offsets = [0, 96], sizes = [2, 32], strides = [1, 1]} : vector<2x128xf32> to vector<2x32xf32>
    %228 = arith.negf %227 : vector<2x32xf32>
    %229 = math.exp %228 : vector<2x32xf32>
    %cst_140 = arith.constant 1.000000e+00 : f32
    %230 = vector.broadcast %cst_140 : f32 to vector<2x32xf32>
    %231 = arith.addf %230, %229 : vector<2x32xf32>
    %232 = arith.divf %230, %231 : vector<2x32xf32>
    %233 = arith.mulf %224, %212 : vector<2x32xf32>
    %234 = arith.mulf %218, %226 : vector<2x32xf32>
    %235 = arith.addf %233, %234 : vector<2x32xf32>
    %236 = math.tanh %235 : vector<2x32xf32>
    %237 = arith.mulf %232, %236 : vector<2x32xf32>
    %c0_141 = arith.constant 0 : index
    %c0_142 = arith.constant 0 : index
    %c0_143 = arith.constant 0 : index
    %238 = vector.load %arg33[%c0_141, %c0_142, %c0_143] : memref<2x2x32xf32, #tpu.memory_space<vmem>>, vector<1x2x32xf32>
    %239 = vector.shape_cast %238 : vector<1x2x32xf32> to vector<2x32xf32>
    %240 = vector.shape_cast %237 : vector<2x32xf32> to vector<1x2x32xf32>
    tpu.vector_store %arg33[%c0_141, %c0_142, %c0_143], %240 {strides = array<i32>} : memref<2x2x32xf32, #tpu.memory_space<vmem>>, vector<1x2x32xf32>,
    %c0_144 = arith.constant 0 : index
    %c0_145 = arith.constant 0 : index
    %c0_146 = arith.constant 0 : index
    %241 = vector.load %arg34[%c0_144, %c0_145, %c0_146] : memref<2x2x32xf32, #tpu.memory_space<vmem>>, vector<1x2x32xf32>
    %242 = vector.shape_cast %241 : vector<1x2x32xf32> to vector<2x32xf32>
    %243 = vector.shape_cast %235 : vector<2x32xf32> to vector<1x2x32xf32>
    tpu.vector_store %arg34[%c0_144, %c0_145, %c0_146], %243 {strides = array<i32>} : memref<2x2x32xf32, #tpu.memory_space<vmem>>, vector<1x2x32xf32>,
    %c0_147 = arith.constant 0 : index
    %c0_148 = arith.constant 0 : index
    %244 = vector.load %arg27[%c0_147, %c0_148] : memref<32x128xf32, #tpu.memory_space<vmem>>, vector<32x128xf32>
    %cst_149 = arith.constant dense<0.000000e+00> : vector<2x128xf32>
    %245 = tpu.matmul %237, %244, %cst_149 {dimension_numbers = #tpu.dot_dimension_numbers<[1], [0], [0], [1], [0, 0, 1, 1], [], []>} : vector<2x32xf32>, vector<32x128xf32>, vector<2x128xf32> -> vector<2x128xf32>
    %c1_150 = arith.constant 1 : index
    %c0_151 = arith.constant 0 : index
    %c0_152 = arith.constant 0 : index
    %246 = vector.load %arg2[%c1_150, %c0_151, %c0_152] : memref<2x2x32xf32, #tpu.memory_space<vmem>>, vector<1x2x32xf32>
    %247 = vector.shape_cast %246 : vector<1x2x32xf32> to vector<2x32xf32>
    %c0_153 = arith.constant 0 : index
    %c0_154 = arith.constant 0 : index
    %248 = vector.load %arg28[%c0_153, %c0_154] : memref<32x128xf32, #tpu.memory_space<vmem>>, vector<32x128xf32>
    %cst_155 = arith.constant dense<0.000000e+00> : vector<2x128xf32>
    %249 = tpu.matmul %247, %248, %cst_155 {dimension_numbers = #tpu.dot_dimension_numbers<[1], [0], [0], [1], [0, 0, 1, 1], [], []>} : vector<2x32xf32>, vector<32x128xf32>, vector<2x128xf32> -> vector<2x128xf32>
    %250 = arith.addf %245, %249 : vector<2x128xf32>
    %c0_156 = arith.constant 0 : index
    %c0_157 = arith.constant 0 : index
    %251 = vector.load %arg29[%c0_156, %c0_157] : memref<1x128xf32, #tpu.memory_space<vmem>>, vector<1x128xf32>
    %252 = vector.broadcast %251 : vector<1x128xf32> to vector<2x128xf32>
    %253 = arith.addf %250, %252 : vector<2x128xf32>
    %c1_158 = arith.constant 1 : index
    %c0_159 = arith.constant 0 : index
    %c0_160 = arith.constant 0 : index
    %254 = vector.load %arg3[%c1_158, %c0_159, %c0_160] : memref<2x2x32xf32, #tpu.memory_space<vmem>>, vector<1x2x32xf32>
    %255 = vector.shape_cast %254 : vector<1x2x32xf32> to vector<2x32xf32>
    %256 = vector.extract_strided_slice %253 {offsets = [0, 0], sizes = [2, 32], strides = [1, 1]} : vector<2x128xf32> to vector<2x32xf32>
    %257 = arith.negf %256 : vector<2x32xf32>
    %258 = math.exp %257 : vector<2x32xf32>
    %cst_161 = arith.constant 1.000000e+00 : f32
    %259 = vector.broadcast %cst_161 : f32 to vector<2x32xf32>
    %260 = arith.addf %259, %258 : vector<2x32xf32>
    %261 = arith.divf %259, %260 : vector<2x32xf32>
    %262 = vector.extract_strided_slice %253 {offsets = [0, 32], sizes = [2, 32], strides = [1, 1]} : vector<2x128xf32> to vector<2x32xf32>
    %263 = arith.negf %262 : vector<2x32xf32>
    %264 = math.exp %263 : vector<2x32xf32>
    %cst_162 = arith.constant 1.000000e+00 : f32
    %265 = vector.broadcast %cst_162 : f32 to vector<2x32xf32>
    %266 = arith.addf %265, %264 : vector<2x32xf32>
    %267 = arith.divf %265, %266 : vector<2x32xf32>
    %268 = vector.extract_strided_slice %253 {offsets = [0, 64], sizes = [2, 32], strides = [1, 1]} : vector<2x128xf32> to vector<2x32xf32>
    %269 = math.tanh %268 : vector<2x32xf32>
    %270 = vector.extract_strided_slice %253 {offsets = [0, 96], sizes = [2, 32], strides = [1, 1]} : vector<2x128xf32> to vector<2x32xf32>
    %271 = arith.negf %270 : vector<2x32xf32>
    %272 = math.exp %271 : vector<2x32xf32>
    %cst_163 = arith.constant 1.000000e+00 : f32
    %273 = vector.broadcast %cst_163 : f32 to vector<2x32xf32>
    %274 = arith.addf %273, %272 : vector<2x32xf32>
    %275 = arith.divf %273, %274 : vector<2x32xf32>
    %276 = arith.mulf %267, %255 : vector<2x32xf32>
    %277 = arith.mulf %261, %269 : vector<2x32xf32>
    %278 = arith.addf %276, %277 : vector<2x32xf32>
    %279 = math.tanh %278 : vector<2x32xf32>
    %280 = arith.mulf %275, %279 : vector<2x32xf32>
    %c1_164 = arith.constant 1 : index
    %c0_165 = arith.constant 0 : index
    %c0_166 = arith.constant 0 : index
    %281 = vector.load %arg33[%c1_164, %c0_165, %c0_166] : memref<2x2x32xf32, #tpu.memory_space<vmem>>, vector<1x2x32xf32>
    %282 = vector.shape_cast %281 : vector<1x2x32xf32> to vector<2x32xf32>
    %283 = vector.shape_cast %280 : vector<2x32xf32> to vector<1x2x32xf32>
    tpu.vector_store %arg33[%c1_164, %c0_165, %c0_166], %283 {strides = array<i32>} : memref<2x2x32xf32, #tpu.memory_space<vmem>>, vector<1x2x32xf32>,
    %c1_167 = arith.constant 1 : index
    %c0_168 = arith.constant 0 : index
    %c0_169 = arith.constant 0 : index
    %284 = vector.load %arg34[%c1_167, %c0_168, %c0_169] : memref<2x2x32xf32, #tpu.memory_space<vmem>>, vector<1x2x32xf32>
    %285 = vector.shape_cast %284 : vector<1x2x32xf32> to vector<2x32xf32>
    %286 = vector.shape_cast %278 : vector<2x32xf32> to vector<1x2x32xf32>
    tpu.vector_store %arg34[%c1_167, %c0_168, %c0_169], %286 {strides = array<i32>} : memref<2x2x32xf32, #tpu.memory_space<vmem>>, vector<1x2x32xf32>,
    %c0_170 = arith.constant 0 : index
    %c0_171 = arith.constant 0 : index
    %287 = vector.load %arg30[%c0_170, %c0_171] : memref<32x40xf32, #tpu.memory_space<vmem>>, vector<32x40xf32>
    %cst_172 = arith.constant dense<0.000000e+00> : vector<2x40xf32>
    %288 = tpu.matmul %280, %287, %cst_172 {dimension_numbers = #tpu.dot_dimension_numbers<[1], [0], [0], [1], [0, 0, 1, 1], [], []>} : vector<2x32xf32>, vector<32x40xf32>, vector<2x40xf32> -> vector<2x40xf32>
    %c0_173 = arith.constant 0 : index
    %c0_174 = arith.constant 0 : index
    %289 = vector.load %arg31[%c0_173, %c0_174] : memref<1x40xf32, #tpu.memory_space<vmem>>, vector<1x40xf32>
    %290 = vector.broadcast %289 : vector<1x40xf32> to vector<2x40xf32>
    %291 = arith.addf %288, %290 : vector<2x40xf32>
    %cst_175 = arith.constant dense<0xFF800000> : vector<2xf32>
    %292 = vector.multi_reduction <maximumf>, %291, %cst_175 [1] : vector<2x40xf32> to vector<2xf32>
    %293 = vector.shape_cast %292 : vector<2xf32> to vector<2x1xf32>
    %294 = vector.broadcast %293 : vector<2x1xf32> to vector<2x40xf32>
    %295 = arith.subf %291, %294 : vector<2x40xf32>
    %296 = math.exp %295 : vector<2x40xf32>
    %cst_176 = arith.constant dense<0.000000e+00> : vector<2xf32>
    %297 = vector.multi_reduction <add>, %296, %cst_176 [1] : vector<2x40xf32> to vector<2xf32>
    %298 = vector.shape_cast %297 : vector<2xf32> to vector<2x1xf32>
    %299 = math.log %298 : vector<2x1xf32>
    %300 = vector.broadcast %299 : vector<2x1xf32> to vector<2x40xf32>
    %301 = arith.subf %295, %300 : vector<2x40xf32>
    %c0_177 = arith.constant 0 : index
    %c0_178 = arith.constant 0 : index
    %302 = vector.load %arg32[%c0_177, %c0_178] : memref<2x40xf32, #tpu.memory_space<vmem>>, vector<2x40xf32>
    tpu.vector_store %arg32[%c0_177, %c0_178], %301 {strides = array<i32>} : memref<2x40xf32, #tpu.memory_space<vmem>>, vector<2x40xf32>,
    return
  }
}

</mosaic_0001>

<llo_original>
// kernel: tpu_custom_call.1
$region0: #{tpu_custom_call.1}
  #allocation0 [shape = 'u32[]', space=smem, size = 0x4, offset = 0x4, fixed_abs, tag = 'smem constant byte address 0x4 - core index']
  #allocation1 [shape = 'u32[144,128]{1,0:T(1,128)}', space=vmem, size = 0x12000, scoped, tag = 'internal scratch']
  #allocation2 [shape = 'f32[1,1]{1,0:T(1,128)S(1)}', space=vmem, size = 0x200, scoped, tag = 'scoped memory for tpu_custom_call.1']
  %s0 = inlined_call_operand.smem [shape: u32[38], index: -1, kind: input, shape index: {}]
  %s1 = sld [smem:[%s0]]
  %s2 = scalar_lea.smem %s0, 1
  %s3 = sld [smem:[%s2]]
  %s4 = scalar_lea.smem %s0, 2
  %s5 = sld [smem:[%s4]]
  %s6 = scalar_lea.smem %s0, 3
  %s7 = sld [smem:[%s6]]
  %s8 = scalar_lea.smem %s0, 4
  %s9 = sld [smem:[%s8]]
  %s10 = scalar_lea.smem %s0, 5
  %s11 = sld [smem:[%s10]]
  %s12 = scalar_lea.smem %s0, 6
  %s13 = sld [smem:[%s12]]
  %s14 = scalar_lea.smem %s0, 7
  %s15 = sld [smem:[%s14]]
  %s16 = scalar_lea.smem %s0, 8
  %s17 = sld [smem:[%s16]]
  %s18 = scalar_lea.smem %s0, 9
  %s19 = sld [smem:[%s18]]
  %s20 = scalar_lea.smem %s0, 10
  %s21 = sld [smem:[%s20]]
  %s22 = scalar_lea.smem %s0, 11
  %s23 = sld [smem:[%s22]]
  %s24 = scalar_lea.smem %s0, 12
  %s25 = sld [smem:[%s24]]
  %s26 = scalar_lea.smem %s0, 13
  %s27 = sld [smem:[%s26]]
  %s28 = scalar_lea.smem %s0, 14
  %s29 = sld [smem:[%s28]]
  %s30 = scalar_lea.smem %s0, 15
  %s31 = sld [smem:[%s30]]
  %s32 = scalar_lea.smem %s0, 16
  %s33 = sld [smem:[%s32]]
  %s34 = scalar_lea.smem %s0, 17
  %s35 = sld [smem:[%s34]]
  %s36 = scalar_lea.smem %s0, 18
  %s37 = sld [smem:[%s36]]
  %s38 = scalar_lea.smem %s0, 19
  %s39 = sld [smem:[%s38]]
  %s40 = scalar_lea.smem %s0, 20
  %s41 = sld [smem:[%s40]]
  %s42 = scalar_lea.smem %s0, 21
  %s43 = sld [smem:[%s42]]
  %s44 = scalar_lea.smem %s0, 22
  %s45 = sld [smem:[%s44]]
  %s46 = scalar_lea.smem %s0, 23
  %s47 = sld [smem:[%s46]]
  %s48 = scalar_lea.smem %s0, 24
  %s49 = sld [smem:[%s48]]
  %s50 = scalar_lea.smem %s0, 25
  %s51 = sld [smem:[%s50]]
  %s52 = scalar_lea.smem %s0, 26
  %s53 = sld [smem:[%s52]]
  %s54 = scalar_lea.smem %s0, 27
  %s55 = sld [smem:[%s54]]
  %s56 = scalar_lea.smem %s0, 28
  %s57 = sld [smem:[%s56]]
  %s58 = scalar_lea.smem %s0, 29
  %s59 = sld [smem:[%s58]]
  %s60 = scalar_lea.smem %s0, 30
  %s61 = sld [smem:[%s60]]
  %s62 = scalar_lea.smem %s0, 31
  %s63 = sld [smem:[%s62]]
  %s64 = scalar_lea.smem %s0, 32
  %s65 = sld [smem:[%s64]]
  %s66 = scalar_lea.smem %s0, 33
  %s67 = sld [smem:[%s66]]
  %s68 = scalar_lea.smem %s0, 34
  %s69 = sld [smem:[%s68]]
  %s70 = scalar_lea.smem %s0, 35
  %s71 = sld [smem:[%s70]]
  %s72 = scalar_lea.smem %s0, 36
  %s73 = sld [smem:[%s72]]
  %s74 = scalar_lea.smem %s0, 37
  %s75 = sld [smem:[%s74]]
  %76 = xla_tuple %s65, %s67, %s69, %s71, %s73, %s75
  %s77 = sld [smem:[#allocation0]]
  $region250: #{tpu_custom_call.1} parent=0
    _
  %s79 = ssub.s32 1, %s77
  %s80 = scalar_select 0, %s79, %s77
  %v81 = vstv %s37
  %82 = vst [vmem:[#allocation2] sm:$0x1] %v81
  $region1: #{tpu_custom_call.1} parent=0
    #allocation3 [shape = 'u8[8192]{0}', space=vmem, size = 0x2000, scoped, tag = 'input window, operand 0, single buffered']
    #allocation4 [shape = 's32[1]{0}', space=sflag, size = 0x4, scoped, tag = 'scoped memory for tpu_custom_call.1']
    #allocation5 [shape = 's32[1]{0}', space=sflag, size = 0x4, scoped, tag = 'scoped memory for tpu_custom_call.1']
    #allocation6 [shape = 'u8[1024]{0}', space=vmem, size = 0x400, scoped, tag = 'input window, operand 1, single buffered']
    #allocation7 [shape = 's32[1]{0}', space=sflag, size = 0x4, scoped, tag = 'scoped memory for tpu_custom_call.1']
    #allocation8 [shape = 'u8[2048]{0}', space=vmem, size = 0x800, scoped, tag = 'input window, operand 2, single buffered']
    #allocation9 [shape = 'u8[2048]{0}', space=vmem, size = 0x800, scoped, tag = 'input window, operand 3, single buffered']
    #allocation10 [shape = 's32[1]{0}', space=sflag, size = 0x4, scoped, tag = 'scoped memory for tpu_custom_call.1']
    #allocation11 [shape = 'u8[8192]{0}', space=vmem, size = 0x2000, scoped, tag = 'input window, operand 4, single buffered']
    #allocation12 [shape = 'u8[512]{0}', space=vmem, size = 0x400, scoped, tag = 'input window, operand 8, single buffered']
    #allocation13 [shape = 's32[1]{0}', space=sflag, size = 0x4, scoped, tag = 'scoped memory for tpu_custom_call.1']
    #allocation14 [shape = 'u8[512]{0}', space=vmem, size = 0x400, scoped, tag = 'input window, operand 9, single buffered']
    #allocation15 [shape = 'u8[16384]{0}', space=vmem, size = 0x4000, scoped, tag = 'input window, operand 12, single buffered']
    #allocation16 [shape = 's32[1]{0}', space=sflag, size = 0x4, scoped, tag = 'scoped memory for tpu_custom_call.1']
    #allocation17 [shape = 'u8[16384]{0}', space=vmem, size = 0x4000, scoped, tag = 'input window, operand 13, single buffered']
    #allocation18 [shape = 'u8[512]{0}', space=vmem, size = 0x400, scoped, tag = 'input window, operand 14, single buffered']
    #allocation19 [shape = 's32[1]{0}', space=sflag, size = 0x4, scoped, tag = 'scoped memory for tpu_custom_call.1']
    #allocation20 [shape = 'u8[16384]{0}', space=vmem, size = 0x4000, scoped, tag = 'input window, operand 15, single buffered']
    #allocation21 [shape = 'u8[512]{0}', space=vmem, size = 0x400, scoped, tag = 'input window, operand 16, single buffered']
    #allocation22 [shape = 's32[1]{0}', space=sflag, size = 0x4, scoped, tag = 'scoped memory for tpu_custom_call.1']
    #allocation23 [shape = 'u8[16384]{0}', space=vmem, size = 0x4000, scoped, tag = 'input window, operand 19, single buffered']
    #allocation24 [shape = 'u8[512]{0}', space=vmem, size = 0x400, scoped, tag = 'input window, operand 21, single buffered']
    #allocation25 [shape = 's32[1]{0}', space=sflag, size = 0x4, scoped, tag = 'scoped memory for tpu_custom_call.1']
    #allocation26 [shape = 'u8[16384]{0}', space=vmem, size = 0x4000, scoped, tag = 'input window, operand 25, single buffered']
    #allocation27 [shape = 'u8[512]{0}', space=vmem, size = 0x400, scoped, tag = 'input window, operand 26, single buffered']
    #allocation28 [shape = 's32[1]{0}', space=sflag, size = 0x4, scoped, tag = 'scoped memory for tpu_custom_call.1']
    #allocation29 [shape = 'u8[16384]{0}', space=vmem, size = 0x4000, scoped, tag = 'input window, operand 28, single buffered']
    #allocation30 [shape = 'u8[16384]{0}', space=vmem, size = 0x4000, scoped, tag = 'input window, operand 30, single buffered']
    #allocation31 [shape = 's32[1]{0}', space=sflag, size = 0x4, scoped, tag = 'scoped memory for tpu_custom_call.1']
    #allocation32 [shape = 'u8[1024]{0}', space=vmem, size = 0x400, scoped, tag = 'output window, operand 0, single buffered']
    #allocation33 [shape = 'u8[2048]{0}', space=vmem, size = 0x800, scoped, tag = 'output window, operand 1, single buffered']
    #allocation34 [shape = 's32[1]{0}', space=sflag, size = 0x4, scoped, tag = 'scoped memory for tpu_custom_call.1']
    #allocation35 [shape = 'u8[2048]{0}', space=vmem, size = 0x800, scoped, tag = 'output window, operand 2, single buffered']
    #allocation36 [shape = 'u8[8192]{0}', space=vmem, size = 0x2000, scoped, tag = 'output window, operand 3, single buffered']
    #allocation37 [shape = 's32[1]{0}', space=sflag, size = 0x4, scoped, tag = 'scoped memory for tpu_custom_call.1']
    #allocation38 [shape = 'u8[8192]{0}', space=vmem, size = 0x2000, scoped, tag = 'output window, operand 4, single buffered']
    #allocation39 [shape = 'u8[8192]{0}', space=vmem, size = 0x2000, scoped, tag = 'output window, operand 5, single buffered']
    #allocation40 [shape = 's32[1]{0}', space=sflag, size = 0x4, scoped, tag = 'scoped memory for tpu_custom_call.1']
    %83 = vsyncpa [#allocation4], 0
    %84 = vsyncpa [#allocation7], 0
    %85 = vsyncpa [#allocation10], 0
    %86 = vsyncpa [#allocation13], 0
    %87 = vsyncpa [#allocation16], 0
    %88 = vsyncpa [#allocation19], 0
    %89 = vsyncpa [#allocation22], 0
    %90 = vsyncpa [#allocation25], 0
    %91 = vsyncpa [#allocation28], 0
    %92 = vsyncpa [#allocation31], 0
    %93 = vsyncpa [#allocation5], 0
    %94 = vsyncpa [#allocation34], 0
    %95 = vsyncpa [#allocation37], 0
    %96 = vsyncpa [#allocation40], 0
    // Predicated region
    $region2: #{tpu_custom_call.1} parent=1 // pred_check
      _
    $region3: #{tpu_custom_call.1} parent=1 // pred_check_branch
      %98 = sbr.rel (0) target = $region5
    $region4: #{tpu_custom_call.1} parent=1 // pred_region
      %s100 = ssub.s32 256, 256
      %101 = vsyncadd [#allocation4], %s100
      %s102 = sshll.u32 [#allocation3], 4
      %s103 = int_to_ptr.vmem [resolvable:$true] %s102
      %108 = dma.hbm_to_vmem [thread:$0]  %s1, 256, %s103, [#allocation4], 128, 128, 8
    $region5: #{tpu_custom_call.1} parent=1 // pred_fallthru
      _
    // Predicated region
    $region6: #{tpu_custom_call.1} parent=1 // pred_check
      _
    $region7: #{tpu_custom_call.1} parent=1 // pred_check_branch
      %110 = sbr.rel (0) target = $region9
    $region8: #{tpu_custom_call.1} parent=1 // pred_region
      %s112 = ssub.s32 32, 32
      %113 = vsyncadd [#allocation7], %s112
      %s115 = sshll.u32 [#allocation6], 4
      %s116 = int_to_ptr.vmem [resolvable:$true] %s115
      %118 = dma.hbm_to_vmem [thread:$0]  %s3, 32, %s116, [#allocation7]
    $region9: #{tpu_custom_call.1} parent=1 // pred_fallthru
      _
    // Predicated region
    $region10: #{tpu_custom_call.1} parent=1 // pred_check
      _
    $region11: #{tpu_custom_call.1} parent=1 // pred_check_branch
      %120 = sbr.rel (0) target = $region13
    $region12: #{tpu_custom_call.1} parent=1 // pred_region
      %s122 = ssub.s32 64, 64
      %123 = vsyncadd [#allocation7], %s122
      %s124 = sshll.u32 [#allocation8], 4
      %s125 = int_to_ptr.vmem [resolvable:$true] %s124
      %130 = dma.hbm_to_vmem [thread:$0]  %s5, 64, %s125, [#allocation7], 32, 32, 2
    $region13: #{tpu_custom_call.1} parent=1 // pred_fallthru
      _
    // Predicated region
    $region14: #{tpu_custom_call.1} parent=1 // pred_check
      _
    $region15: #{tpu_custom_call.1} parent=1 // pred_check_branch
      %132 = sbr.rel (0) target = $region17
    $region16: #{tpu_custom_call.1} parent=1 // pred_region
      %s134 = ssub.s32 64, 64
      %135 = vsyncadd [#allocation10], %s134
      %s136 = sshll.u32 [#allocation9], 4
      %s137 = int_to_ptr.vmem [resolvable:$true] %s136
      %142 = dma.hbm_to_vmem [thread:$0]  %s7, 64, %s137, [#allocation10], 32, 32, 2
    $region17: #{tpu_custom_call.1} parent=1 // pred_fallthru
      _
    // Predicated region
    $region18: #{tpu_custom_call.1} parent=1 // pred_check
      _
    $region19: #{tpu_custom_call.1} parent=1 // pred_check_branch
      %144 = sbr.rel (0) target = $region21
    $region20: #{tpu_custom_call.1} parent=1 // pred_region
      %s146 = ssub.s32 256, 256
      %147 = vsyncadd [#allocation10], %s146
      %s148 = sshll.u32 [#allocation11], 4
      %s149 = int_to_ptr.vmem [resolvable:$true] %s148
      %154 = dma.hbm_to_vmem [thread:$0]  %s9, 256, %s149, [#allocation10], 128, 128, 8
    $region21: #{tpu_custom_call.1} parent=1 // pred_fallthru
      _
    // Predicated region
    $region22: #{tpu_custom_call.1} parent=1 // pred_check
      _
    $region23: #{tpu_custom_call.1} parent=1 // pred_check_branch
      %156 = sbr.rel (0) target = $region25
    $region24: #{tpu_custom_call.1} parent=1 // pred_region
      _
    $region25: #{tpu_custom_call.1} parent=1 // pred_fallthru
      _
    // Predicated region
    $region26: #{tpu_custom_call.1} parent=1 // pred_check
      _
    $region27: #{tpu_custom_call.1} parent=1 // pred_check_branch
      %158 = sbr.rel (0) target = $region29
    $region28: #{tpu_custom_call.1} parent=1 // pred_region
      _
    $region29: #{tpu_custom_call.1} parent=1 // pred_fallthru
      _
    // Predicated region
    $region30: #{tpu_custom_call.1} parent=1 // pred_check
      _
    $region31: #{tpu_custom_call.1} parent=1 // pred_check_branch
      %160 = sbr.rel (0) target = $region33
    $region32: #{tpu_custom_call.1} parent=1 // pred_region
      _
    $region33: #{tpu_custom_call.1} parent=1 // pred_fallthru
      _
    // Predicated region
    $region34: #{tpu_custom_call.1} parent=1 // pred_check
      _
    $region35: #{tpu_custom_call.1} parent=1 // pred_check_branch
      %162 = sbr.rel (0) target = $region37
    $region36: #{tpu_custom_call.1} parent=1 // pred_region
      %s164 = ssub.s32 16, 16
      %165 = vsyncadd [#allocation13], %s164
      %s167 = sshll.u32 [#allocation12], 4
      %s168 = int_to_ptr.vmem [resolvable:$true] %s167
      %170 = dma.hbm_to_vmem [thread:$0]  %s17, 16, %s168, [#allocation13]
    $region37: #{tpu_custom_call.1} parent=1 // pred_fallthru
      _
    // Predicated region
    $region38: #{tpu_custom_call.1} parent=1 // pred_check
      _
    $region39: #{tpu_custom_call.1} parent=1 // pred_check_branch
      %172 = sbr.rel (0) target = $region41
    $region40: #{tpu_custom_call.1} parent=1 // pred_region
      %s174 = ssub.s32 16, 16
      %175 = vsyncadd [#allocation13], %s174
      %s177 = sshll.u32 [#allocation14], 4
      %s178 = int_to_ptr.vmem [resolvable:$true] %s177
      %180 = dma.hbm_to_vmem [thread:$0]  %s19, 16, %s178, [#allocation13]
    $region41: #{tpu_custom_call.1} parent=1 // pred_fallthru
      _
    // Predicated region
    $region42: #{tpu_custom_call.1} parent=1 // pred_check
      _
    $region43: #{tpu_custom_call.1} parent=1 // pred_check_branch
      %182 = sbr.rel (0) target = $region45
    $region44: #{tpu_custom_call.1} parent=1 // pred_region
      _
    $region45: #{tpu_custom_call.1} parent=1 // pred_fallthru
      _
    // Predicated region
    $region46: #{tpu_custom_call.1} parent=1 // pred_check
      _
    $region47: #{tpu_custom_call.1} parent=1 // pred_check_branch
      %184 = sbr.rel (0) target = $region49
    $region48: #{tpu_custom_call.1} parent=1 // pred_region
      _
    $region49: #{tpu_custom_call.1} parent=1 // pred_fallthru
      _
    // Predicated region
    $region50: #{tpu_custom_call.1} parent=1 // pred_check
      _
    $region51: #{tpu_custom_call.1} parent=1 // pred_check_branch
      %186 = sbr.rel (0) target = $region53
    $region52: #{tpu_custom_call.1} parent=1 // pred_region
      %s188 = ssub.s32 512, 512
      %189 = vsyncadd [#allocation16], %s188
      %s190 = sshll.u32 [#allocation15], 4
      %s191 = int_to_ptr.vmem [resolvable:$true] %s190
      %196 = dma.hbm_to_vmem [thread:$0]  %s25, 512, %s191, [#allocation16], 128, 128, 8
    $region53: #{tpu_custom_call.1} parent=1 // pred_fallthru
      _
    // Predicated region
    $region54: #{tpu_custom_call.1} parent=1 // pred_check
      _
    $region55: #{tpu_custom_call.1} parent=1 // pred_check_branch
      %198 = sbr.rel (0) target = $region57
    $region56: #{tpu_custom_call.1} parent=1 // pred_region
      %s200 = ssub.s32 512, 512
      %201 = vsyncadd [#allocation16], %s200
      %s202 = sshll.u32 [#allocation17], 4
      %s203 = int_to_ptr.vmem [resolvable:$true] %s202
      %208 = dma.hbm_to_vmem [thread:$0]  %s27, 512, %s203, [#allocation16], 128, 128, 8
    $region57: #{tpu_custom_call.1} parent=1 // pred_fallthru
      _
    // Predicated region
    $region58: #{tpu_custom_call.1} parent=1 // pred_check
      _
    $region59: #{tpu_custom_call.1} parent=1 // pred_check_branch
      %210 = sbr.rel (0) target = $region61
    $region60: #{tpu_custom_call.1} parent=1 // pred_region
      %s212 = ssub.s32 16, 16
      %213 = vsyncadd [#allocation19], %s212
      %s215 = sshll.u32 [#allocation18], 4
      %s216 = int_to_ptr.vmem [resolvable:$true] %s215
      %218 = dma.hbm_to_vmem [thread:$0]  %s29, 16, %s216, [#allocation19]
    $region61: #{tpu_custom_call.1} parent=1 // pred_fallthru
      _
    // Predicated region
    $region62: #{tpu_custom_call.1} parent=1 // pred_check
      _
    $region63: #{tpu_custom_call.1} parent=1 // pred_check_branch
      %220 = sbr.rel (0) target = $region65
    $region64: #{tpu_custom_call.1} parent=1 // pred_region
      %s222 = ssub.s32 512, 512
      %223 = vsyncadd [#allocation19], %s222
      %s224 = sshll.u32 [#allocation20], 4
      %s225 = int_to_ptr.vmem [resolvable:$true] %s224
      %230 = dma.hbm_to_vmem [thread:$0]  %s31, 512, %s225, [#allocation19], 128, 128, 8
    $region65: #{tpu_custom_call.1} parent=1 // pred_fallthru
      _
    // Predicated region
    $region66: #{tpu_custom_call.1} parent=1 // pred_check
      _
    $region67: #{tpu_custom_call.1} parent=1 // pred_check_branch
      %232 = sbr.rel (0) target = $region69
    $region68: #{tpu_custom_call.1} parent=1 // pred_region
      %s234 = ssub.s32 16, 16
      %235 = vsyncadd [#allocation22], %s234
      %s237 = sshll.u32 [#allocation21], 4
      %s238 = int_to_ptr.vmem [resolvable:$true] %s237
      %240 = dma.hbm_to_vmem [thread:$0]  %s33, 16, %s238, [#allocation22]
    $region69: #{tpu_custom_call.1} parent=1 // pred_fallthru
      _
    // Predicated region
    $region70: #{tpu_custom_call.1} parent=1 // pred_check
      _
    $region71: #{tpu_custom_call.1} parent=1 // pred_check_branch
      %242 = sbr.rel (0) target = $region73
    $region72: #{tpu_custom_call.1} parent=1 // pred_region
      _
    $region73: #{tpu_custom_call.1} parent=1 // pred_fallthru
      _
    // Predicated region
    $region74: #{tpu_custom_call.1} parent=1 // pred_check
      _
    $region75: #{tpu_custom_call.1} parent=1 // pred_check_branch
      %244 = sbr.rel (0) target = $region77
    $region76: #{tpu_custom_call.1} parent=1 // pred_region
      _
    $region77: #{tpu_custom_call.1} parent=1 // pred_fallthru
      _
    // Predicated region
    $region78: #{tpu_custom_call.1} parent=1 // pred_check
      _
    $region79: #{tpu_custom_call.1} parent=1 // pred_check_branch
      %246 = sbr.rel (0) target = $region81
    $region80: #{tpu_custom_call.1} parent=1 // pred_region
      %s248 = ssub.s32 512, 512
      %249 = vsyncadd [#allocation22], %s248
      %s250 = sshll.u32 [#allocation23], 4
      %s251 = int_to_ptr.vmem [resolvable:$true] %s250
      %256 = dma.hbm_to_vmem [thread:$0]  %s39, 512, %s251, [#allocation22], 128, 128, 8
    $region81: #{tpu_custom_call.1} parent=1 // pred_fallthru
      _
    // Predicated region
    $region82: #{tpu_custom_call.1} parent=1 // pred_check
      _
    $region83: #{tpu_custom_call.1} parent=1 // pred_check_branch
      %258 = sbr.rel (0) target = $region85
    $region84: #{tpu_custom_call.1} parent=1 // pred_region
      _
    $region85: #{tpu_custom_call.1} parent=1 // pred_fallthru
      _
    // Predicated region
    $region86: #{tpu_custom_call.1} parent=1 // pred_check
      _
    $region87: #{tpu_custom_call.1} parent=1 // pred_check_branch
      %260 = sbr.rel (0) target = $region89
    $region88: #{tpu_custom_call.1} parent=1 // pred_region
      %s262 = ssub.s32 16, 16
      %263 = vsyncadd [#allocation25], %s262
      %s265 = sshll.u32 [#allocation24], 4
      %s266 = int_to_ptr.vmem [resolvable:$true] %s265
      %268 = dma.hbm_to_vmem [thread:$0]  %s43, 16, %s266, [#allocation25]
    $region89: #{tpu_custom_call.1} parent=1 // pred_fallthru
      _
    // Predicated region
    $region90: #{tpu_custom_call.1} parent=1 // pred_check
      _
    $region91: #{tpu_custom_call.1} parent=1 // pred_check_branch
      %270 = sbr.rel (0) target = $region93
    $region92: #{tpu_custom_call.1} parent=1 // pred_region
      _
    $region93: #{tpu_custom_call.1} parent=1 // pred_fallthru
      _
    // Predicated region
    $region94: #{tpu_custom_call.1} parent=1 // pred_check
      _
    $region95: #{tpu_custom_call.1} parent=1 // pred_check_branch
      %272 = sbr.rel (0) target = $region97
    $region96: #{tpu_custom_call.1} parent=1 // pred_region
      _
    $region97: #{tpu_custom_call.1} parent=1 // pred_fallthru
      _
    // Predicated region
    $region98: #{tpu_custom_call.1} parent=1 // pred_check
      _
    $region99: #{tpu_custom_call.1} parent=1 // pred_check_branch
      %274 = sbr.rel (0) target = $region101
    $region100: #{tpu_custom_call.1} parent=1 // pred_region
      _
    $region101: #{tpu_custom_call.1} parent=1 // pred_fallthru
      _
    // Predicated region
    $region102: #{tpu_custom_call.1} parent=1 // pred_check
      _
    $region103: #{tpu_custom_call.1} parent=1 // pred_check_branch
      %276 = sbr.rel (0) target = $region105
    $region104: #{tpu_custom_call.1} parent=1 // pred_region
      %s278 = ssub.s32 512, 512
      %279 = vsyncadd [#allocation25], %s278
      %s280 = sshll.u32 [#allocation26], 4
      %s281 = int_to_ptr.vmem [resolvable:$true] %s280
      %286 = dma.hbm_to_vmem [thread:$0]  %s51, 512, %s281, [#allocation25], 128, 128, 8
    $region105: #{tpu_custom_call.1} parent=1 // pred_fallthru
      _
    // Predicated region
    $region106: #{tpu_custom_call.1} parent=1 // pred_check
      _
    $region107: #{tpu_custom_call.1} parent=1 // pred_check_branch
      %288 = sbr.rel (0) target = $region109
    $region108: #{tpu_custom_call.1} parent=1 // pred_region
      %s290 = ssub.s32 16, 16
      %291 = vsyncadd [#allocation28], %s290
      %s293 = sshll.u32 [#allocation27], 4
      %s294 = int_to_ptr.vmem [resolvable:$true] %s293
      %296 = dma.hbm_to_vmem [thread:$0]  %s53, 16, %s294, [#allocation28]
    $region109: #{tpu_custom_call.1} parent=1 // pred_fallthru
      _
    // Predicated region
    $region110: #{tpu_custom_call.1} parent=1 // pred_check
      _
    $region111: #{tpu_custom_call.1} parent=1 // pred_check_branch
      %298 = sbr.rel (0) target = $region113
    $region112: #{tpu_custom_call.1} parent=1 // pred_region
      _
    $region113: #{tpu_custom_call.1} parent=1 // pred_fallthru
      _
    // Predicated region
    $region114: #{tpu_custom_call.1} parent=1 // pred_check
      _
    $region115: #{tpu_custom_call.1} parent=1 // pred_check_branch
      %300 = sbr.rel (0) target = $region117
    $region116: #{tpu_custom_call.1} parent=1 // pred_region
      %s302 = ssub.s32 512, 512
      %303 = vsyncadd [#allocation28], %s302
      %s304 = sshll.u32 [#allocation29], 4
      %s305 = int_to_ptr.vmem [resolvable:$true] %s304
      %310 = dma.hbm_to_vmem [thread:$0]  %s57, 512, %s305, [#allocation28], 128, 128, 8
    $region117: #{tpu_custom_call.1} parent=1 // pred_fallthru
      _
    // Predicated region
    $region118: #{tpu_custom_call.1} parent=1 // pred_check
      _
    $region119: #{tpu_custom_call.1} parent=1 // pred_check_branch
      %312 = sbr.rel (0) target = $region121
    $region120: #{tpu_custom_call.1} parent=1 // pred_region
      _
    $region121: #{tpu_custom_call.1} parent=1 // pred_fallthru
      _
    // Predicated region
    $region122: #{tpu_custom_call.1} parent=1 // pred_check
      _
    $region123: #{tpu_custom_call.1} parent=1 // pred_check_branch
      %314 = sbr.rel (0) target = $region125
    $region124: #{tpu_custom_call.1} parent=1 // pred_region
      %s316 = ssub.s32 512, 512
      %317 = vsyncadd [#allocation31], %s316
      %s318 = sshll.u32 [#allocation30], 4
      %s319 = int_to_ptr.vmem [resolvable:$true] %s318
      %324 = dma.hbm_to_vmem [thread:$0]  %s61, 512, %s319, [#allocation31], 128, 128, 8
    $region125: #{tpu_custom_call.1} parent=1 // pred_fallthru
      _
    // Predicated region
    $region126: #{tpu_custom_call.1} parent=1 // pred_check
      _
    $region127: #{tpu_custom_call.1} parent=1 // pred_check_branch
      %326 = sbr.rel (0) target = $region129
    $region128: #{tpu_custom_call.1} parent=1 // pred_region
      _
    $region129: #{tpu_custom_call.1} parent=1 // pred_fallthru
      _
    // Predicated region
    $region130: #{tpu_custom_call.1} parent=1 // pred_check
      _
    $region131: #{tpu_custom_call.1} parent=1 // pred_check_branch
      %328 = sbr.rel (0) target = $region133
    $region132: #{tpu_custom_call.1} parent=1 // pred_region
      %329 = dma.done [#allocation4], 256
    $region133: #{tpu_custom_call.1} parent=1 // pred_fallthru
      _
    // Predicated region
    $region134: #{tpu_custom_call.1} parent=1 // pred_check
      _
    $region135: #{tpu_custom_call.1} parent=1 // pred_check_branch
      %331 = sbr.rel (0) target = $region137
    $region136: #{tpu_custom_call.1} parent=1 // pred_region
      %332 = dma.done [#allocation7], 32
    $region137: #{tpu_custom_call.1} parent=1 // pred_fallthru
      _
    // Predicated region
    $region138: #{tpu_custom_call.1} parent=1 // pred_check
      _
    $region139: #{tpu_custom_call.1} parent=1 // pred_check_branch
      %334 = sbr.rel (0) target = $region141
    $region140: #{tpu_custom_call.1} parent=1 // pred_region
      %335 = dma.done [#allocation7], 64
    $region141: #{tpu_custom_call.1} parent=1 // pred_fallthru
      _
    // Predicated region
    $region142: #{tpu_custom_call.1} parent=1 // pred_check
      _
    $region143: #{tpu_custom_call.1} parent=1 // pred_check_branch
      %337 = sbr.rel (0) target = $region145
    $region144: #{tpu_custom_call.1} parent=1 // pred_region
      %338 = dma.done [#allocation10], 64
    $region145: #{tpu_custom_call.1} parent=1 // pred_fallthru
      _
    // Predicated region
    $region146: #{tpu_custom_call.1} parent=1 // pred_check
      _
    $region147: #{tpu_custom_call.1} parent=1 // pred_check_branch
      %340 = sbr.rel (0) target = $region149
    $region148: #{tpu_custom_call.1} parent=1 // pred_region
      %341 = dma.done [#allocation10], 256
    $region149: #{tpu_custom_call.1} parent=1 // pred_fallthru
      _
    // Predicated region
    $region150: #{tpu_custom_call.1} parent=1 // pred_check
      _
    $region151: #{tpu_custom_call.1} parent=1 // pred_check_branch
      %343 = sbr.rel (0) target = $region153
    $region152: #{tpu_custom_call.1} parent=1 // pred_region
      %344 = dma.done [#allocation13], 16
    $region153: #{tpu_custom_call.1} parent=1 // pred_fallthru
      _
    // Predicated region
    $region154: #{tpu_custom_call.1} parent=1 // pred_check
      _
    $region155: #{tpu_custom_call.1} parent=1 // pred_check_branch
      %346 = sbr.rel (0) target = $region157
    $region156: #{tpu_custom_call.1} parent=1 // pred_region
      %347 = dma.done [#allocation13], 16
    $region157: #{tpu_custom_call.1} parent=1 // pred_fallthru
      _
    // Predicated region
    $region158: #{tpu_custom_call.1} parent=1 // pred_check
      _
    $region159: #{tpu_custom_call.1} parent=1 // pred_check_branch
      %349 = sbr.rel (0) target = $region161
    $region160: #{tpu_custom_call.1} parent=1 // pred_region
      %350 = dma.done [#allocation16], 512
    $region161: #{tpu_custom_call.1} parent=1 // pred_fallthru
      _
    // Predicated region
    $region162: #{tpu_custom_call.1} parent=1 // pred_check
      _
    $region163: #{tpu_custom_call.1} parent=1 // pred_check_branch
      %352 = sbr.rel (0) target = $region165
    $region164: #{tpu_custom_call.1} parent=1 // pred_region
      %353 = dma.done [#allocation16], 512
    $region165: #{tpu_custom_call.1} parent=1 // pred_fallthru
      _
    // Predicated region
    $region166: #{tpu_custom_call.1} parent=1 // pred_check
      _
    $region167: #{tpu_custom_call.1} parent=1 // pred_check_branch
      %355 = sbr.rel (0) target = $region169
    $region168: #{tpu_custom_call.1} parent=1 // pred_region
      %356 = dma.done [#allocation19], 16
    $region169: #{tpu_custom_call.1} parent=1 // pred_fallthru
      _
    // Predicated region
    $region170: #{tpu_custom_call.1} parent=1 // pred_check
      _
    $region171: #{tpu_custom_call.1} parent=1 // pred_check_branch
      %358 = sbr.rel (0) target = $region173
    $region172: #{tpu_custom_call.1} parent=1 // pred_region
      %359 = dma.done [#allocation19], 512
    $region173: #{tpu_custom_call.1} parent=1 // pred_fallthru
      _
    // Predicated region
    $region174: #{tpu_custom_call.1} parent=1 // pred_check
      _
    $region175: #{tpu_custom_call.1} parent=1 // pred_check_branch
      %361 = sbr.rel (0) target = $region177
    $region176: #{tpu_custom_call.1} parent=1 // pred_region
      %362 = dma.done [#allocation22], 16
    $region177: #{tpu_custom_call.1} parent=1 // pred_fallthru
      _
    // Predicated region
    $region178: #{tpu_custom_call.1} parent=1 // pred_check
      _
    $region179: #{tpu_custom_call.1} parent=1 // pred_check_branch
      %364 = sbr.rel (0) target = $region181
    $region180: #{tpu_custom_call.1} parent=1 // pred_region
      %365 = dma.done [#allocation22], 512
    $region181: #{tpu_custom_call.1} parent=1 // pred_fallthru
      _
    // Predicated region
    $region182: #{tpu_custom_call.1} parent=1 // pred_check
      _
    $region183: #{tpu_custom_call.1} parent=1 // pred_check_branch
      %367 = sbr.rel (0) target = $region185
    $region184: #{tpu_custom_call.1} parent=1 // pred_region
      %368 = dma.done [#allocation25], 16
    $region185: #{tpu_custom_call.1} parent=1 // pred_fallthru
      _
    // Predicated region
    $region186: #{tpu_custom_call.1} parent=1 // pred_check
      _
    $region187: #{tpu_custom_call.1} parent=1 // pred_check_branch
      %370 = sbr.rel (0) target = $region189
    $region188: #{tpu_custom_call.1} parent=1 // pred_region
      %371 = dma.done [#allocation25], 512
    $region189: #{tpu_custom_call.1} parent=1 // pred_fallthru
      _
    // Predicated region
    $region190: #{tpu_custom_call.1} parent=1 // pred_check
      _
    $region191: #{tpu_custom_call.1} parent=1 // pred_check_branch
      %373 = sbr.rel (0) target = $region193
    $region192: #{tpu_custom_call.1} parent=1 // pred_region
      %374 = dma.done [#allocation28], 16
    $region193: #{tpu_custom_call.1} parent=1 // pred_fallthru
      _
    // Predicated region
    $region194: #{tpu_custom_call.1} parent=1 // pred_check
      _
    $region195: #{tpu_custom_call.1} parent=1 // pred_check_branch
      %376 = sbr.rel (0) target = $region197
    $region196: #{tpu_custom_call.1} parent=1 // pred_region
      %377 = dma.done [#allocation28], 512
    $region197: #{tpu_custom_call.1} parent=1 // pred_fallthru
      _
    // Predicated region
    $region198: #{tpu_custom_call.1} parent=1 // pred_check
      _
    $region199: #{tpu_custom_call.1} parent=1 // pred_check_branch
      %379 = sbr.rel (0) target = $region201
    $region200: #{tpu_custom_call.1} parent=1 // pred_region
      %380 = dma.done [#allocation31], 512
    $region201: #{tpu_custom_call.1} parent=1 // pred_fallthru
      _
    %v381 = vld [vmem:[#allocation3] sm:$0xff]
    %s382 = scalar_lea.vmem [#allocation3], 8
    %v383 = vld [vmem:[%s382] sm:$0xff]
    %v384 = vld [vmem:[#allocation11] sm:$0xff]
    %s385 = scalar_lea.vmem [#allocation11], 8
    %v386 = vld [vmem:[%s385] sm:$0xff]
    %v387 = vld [vmem:[%s13] sm:$0xff]
    %v388 = vld [vmem:[%s13 + $0x8] sm:$0xff]
    %v389 = vld [vmem:[%s13 + $0x10] sm:$0xff]
    %v390 = vld [vmem:[%s13 + $0x18] sm:$0xff]
    %vm391 = vcmask 261120
    %v393 = vsel %vm391, %v384, 0
    %v396 = vsel %vm391, %v386, 0
    %398 = vmatprep.subr.mxu0 0.0
    %399 = vmatpush1.msra.mxu0 0.0
    %400 = vmatprep.subr.mxu0 0.0
    %401 = vmatpush1.msra.mxu0 0.0
    %402 = vmatprep.subr.mxu0 0.0
    %403 = vmatpush1.msra.mxu0 0.0
    %404 = vmatprep.subr.mxu0 0.0
    %405 = vmatpush1.msra.mxu0 0.0
    %406 = vmatprep.subr.mxu0 0.0
    %407 = vmatpush1.msra.mxu0 0.0
    %408 = vmatprep.subr.mxu0 0.0
    %409 = vmatpush1.msra.mxu0 0.0
    %410 = vmatprep.subr.mxu0 0.0
    %411 = vmatpush1.msra.mxu0 0.0
    %412 = vmatprep.subr.mxu0 0.0
    %413 = vmatpush1.msra.mxu0 0.0
    %414 = vmatprep.subr.mxu0 0.0
    %415 = vmatpush1.msra.mxu0 0.0
    %416 = vmatprep.subr.mxu0 0.0
    %417 = vmatpush1.msra.mxu0 0.0
    %418 = vmatprep.subr.mxu0 0.0
    %419 = vmatpush1.msra.mxu0 0.0
    %420 = vmatprep.subr.mxu0 0.0
    %421 = vmatpush1.msra.mxu0 0.0
    %422 = vmatprep.subr.mxu0 0.0
    %423 = vmatpush1.msra.mxu0 %v390
    %424 = vmatprep.subr.mxu0 0.0
    %425 = vmatpush1.msra.mxu0 %v389
    %426 = vmatprep.subr.mxu0 0.0
    %427 = vmatpush1.msra.mxu0 %v388
    %428 = vmatprep.subr.mxu0 0.0
    %429 = vmatpush1.msra.mxu0 %v387
    %430 = vmatprep.subr.mxu0 0.0
    %431 = vmatpush2.msra.mxu0 0.0
    %432 = vmatprep.subr.mxu0 0.0
    %433 = vmatpush2.msra.mxu0 0.0
    %434 = vmatprep.subr.mxu0 0.0
    %435 = vmatpush2.msra.mxu0 0.0
    %436 = vmatprep.subr.mxu0 0.0
    %437 = vmatpush2.msra.mxu0 0.0
    %438 = vmatprep.subr.mxu0 0.0
    %439 = vmatpush2.msra.mxu0 0.0
    %440 = vmatprep.subr.mxu0 0.0
    %441 = vmatpush2.msra.mxu0 0.0
    %442 = vmatprep.subr.mxu0 0.0
    %443 = vmatpush2.msra.mxu0 0.0
    %444 = vmatprep.subr.mxu0 0.0
    %445 = vmatpush2.msra.mxu0 0.0
    %446 = vmatprep.subr.mxu0 0.0
    %447 = vmatpush2.msra.mxu0 0.0
    %448 = vmatprep.subr.mxu0 0.0
    %449 = vmatpush2.msra.mxu0 0.0
    %450 = vmatprep.subr.mxu0 0.0
    %451 = vmatpush2.msra.mxu0 0.0
    %452 = vmatprep.subr.mxu0 0.0
    %453 = vmatpush2.msra.mxu0 0.0
    %454 = vmatprep.subr.mxu0 0.0
    %455 = vmatpush2.msra.mxu0 0.0
    %456 = vmatprep.subr.mxu0 0.0
    %457 = vmatpush2.msra.mxu0 0.0
    %458 = vmatprep.subr.mxu0 0.0
    %459 = vmatpush2.msra.mxu0 0.0
    %460 = vmatprep.subr.mxu0 0.0
    %461 = vmatpush2.msra.mxu0 0.0
    %462 = vmatprep.mubr.f32.mxu0 0.0
    %463 = vmatmul.mubr.f32.gmra.mxu0 %v393
    %v464 = vpop.f32.mrf.mxu0
    %v465 = vadd.f32 0.0, %v464
    %v466 = vpop.f32.mrf.mxu0
    %467 = vmatprep.mubr.f32.mxu0 0.0
    %468 = vmatmul.mubr.f32.gmra.mxu0 %v396
    %v469 = vpop.f32.mrf.mxu0
    %v470 = vadd.f32 0.0, %v469
    %v471 = vpop.f32.mrf.mxu0
    %472 = vdwg.mxu0
    %v473 = vld [vmem:[#allocation15] sm:$0xff]
    %v474 = vld [vmem:[#allocation15 + $0x8] sm:$0xff]
    %v475 = vld [vmem:[#allocation15 + $0x10] sm:$0xff]
    %v476 = vld [vmem:[#allocation15 + $0x18] sm:$0xff]
    %v478 = vsel %vm391, %v381, 0
    %v481 = vsel %vm391, %v383, 0
    %483 = vmatprep.subr.mxu0 0.0
    %484 = vmatpush1.msra.mxu0 0.0
    %485 = vmatprep.subr.mxu0 0.0
    %486 = vmatpush1.msra.mxu0 0.0
    %487 = vmatprep.subr.mxu0 0.0
    %488 = vmatpush1.msra.mxu0 0.0
    %489 = vmatprep.subr.mxu0 0.0
    %490 = vmatpush1.msra.mxu0 0.0
    %491 = vmatprep.subr.mxu0 0.0
    %492 = vmatpush1.msra.mxu0 0.0
    %493 = vmatprep.subr.mxu0 0.0
    %494 = vmatpush1.msra.mxu0 0.0
    %495 = vmatprep.subr.mxu0 0.0
    %496 = vmatpush1.msra.mxu0 0.0
    %497 = vmatprep.subr.mxu0 0.0
    %498 = vmatpush1.msra.mxu0 0.0
    %499 = vmatprep.subr.mxu0 0.0
    %500 = vmatpush1.msra.mxu0 0.0
    %501 = vmatprep.subr.mxu0 0.0
    %502 = vmatpush1.msra.mxu0 0.0
    %503 = vmatprep.subr.mxu0 0.0
    %504 = vmatpush1.msra.mxu0 0.0
    %505 = vmatprep.subr.mxu0 0.0
    %506 = vmatpush1.msra.mxu0 0.0
    %507 = vmatprep.subr.mxu0 0.0
    %508 = vmatpush1.msra.mxu0 %v476
    %509 = vmatprep.subr.mxu0 0.0
    %510 = vmatpush1.msra.mxu0 %v475
    %511 = vmatprep.subr.mxu0 0.0
    %512 = vmatpush1.msra.mxu0 %v474
    %513 = vmatprep.subr.mxu0 0.0
    %514 = vmatpush1.msra.mxu0 %v473
    %515 = vmatprep.subr.mxu0 0.0
    %516 = vmatpush2.msra.mxu0 0.0
    %517 = vmatprep.subr.mxu0 0.0
    %518 = vmatpush2.msra.mxu0 0.0
    %519 = vmatprep.subr.mxu0 0.0
    %520 = vmatpush2.msra.mxu0 0.0
    %521 = vmatprep.subr.mxu0 0.0
    %522 = vmatpush2.msra.mxu0 0.0
    %523 = vmatprep.subr.mxu0 0.0
    %524 = vmatpush2.msra.mxu0 0.0
    %525 = vmatprep.subr.mxu0 0.0
    %526 = vmatpush2.msra.mxu0 0.0
    %527 = vmatprep.subr.mxu0 0.0
    %528 = vmatpush2.msra.mxu0 0.0
    %529 = vmatprep.subr.mxu0 0.0
    %530 = vmatpush2.msra.mxu0 0.0
    %531 = vmatprep.subr.mxu0 0.0
    %532 = vmatpush2.msra.mxu0 0.0
    %533 = vmatprep.subr.mxu0 0.0
    %534 = vmatpush2.msra.mxu0 0.0
    %535 = vmatprep.subr.mxu0 0.0
    %536 = vmatpush2.msra.mxu0 0.0
    %537 = vmatprep.subr.mxu0 0.0
    %538 = vmatpush2.msra.mxu0 0.0
    %539 = vmatprep.subr.mxu0 0.0
    %540 = vmatpush2.msra.mxu0 0.0
    %541 = vmatprep.subr.mxu0 0.0
    %542 = vmatpush2.msra.mxu0 0.0
    %543 = vmatprep.subr.mxu0 0.0
    %544 = vmatpush2.msra.mxu0 0.0
    %545 = vmatprep.subr.mxu0 0.0
    %546 = vmatpush2.msra.mxu0 0.0
    %547 = vmatprep.mubr.f32.mxu0 0.0
    %548 = vmatmul.mubr.f32.gmra.mxu0 %v478
    %v549 = vpop.f32.mrf.mxu0
    %v550 = vadd.f32 0.0, %v549
    %v551 = vpop.f32.mrf.mxu0
    %552 = vmatprep.mubr.f32.mxu0 0.0
    %553 = vmatmul.mubr.f32.gmra.mxu0 %v481
    %v554 = vpop.f32.mrf.mxu0
    %v555 = vadd.f32 0.0, %v554
    %v556 = vpop.f32.mrf.mxu0
    %557 = vdwg.mxu0
    %v558 = vld [vmem:[%s11] sm:$0xff]
    %v559 = vld [vmem:[%s11 + $0x8] sm:$0xff]
    %v560 = vld [vmem:[%s11 + $0x10] sm:$0xff]
    %v561 = vld [vmem:[%s11 + $0x18] sm:$0x3f]
    %v562 = vld [vmem:[%s15] sm:$0xff]
    %v563 = vld [vmem:[%s15 + $0x8] sm:$0xff]
    %v564 = vld [vmem:[%s15 + $0x10] sm:$0xff]
    %v565 = vld [vmem:[%s15 + $0x18] sm:$0xff]
    %v567 = vsel %vm391, %v558, 0
    %v570 = vsel %vm391, %v559, 0
    %v573 = vsel %vm391, %v560, 0
    %v576 = vsel %vm391, %v561, 0
    %578 = vmatprep.subr.mxu0 0.0
    %579 = vmatpush1.msra.mxu0 0.0
    %580 = vmatprep.subr.mxu0 0.0
    %581 = vmatpush1.msra.mxu0 0.0
    %582 = vmatprep.subr.mxu0 0.0
    %583 = vmatpush1.msra.mxu0 0.0
    %584 = vmatprep.subr.mxu0 0.0
    %585 = vmatpush1.msra.mxu0 0.0
    %586 = vmatprep.subr.mxu0 0.0
    %587 = vmatpush1.msra.mxu0 0.0
    %588 = vmatprep.subr.mxu0 0.0
    %589 = vmatpush1.msra.mxu0 0.0
    %590 = vmatprep.subr.mxu0 0.0
    %591 = vmatpush1.msra.mxu0 0.0
    %592 = vmatprep.subr.mxu0 0.0
    %593 = vmatpush1.msra.mxu0 0.0
    %594 = vmatprep.subr.mxu0 0.0
    %595 = vmatpush1.msra.mxu0 0.0
    %596 = vmatprep.subr.mxu0 0.0
    %597 = vmatpush1.msra.mxu0 0.0
    %598 = vmatprep.subr.mxu0 0.0
    %599 = vmatpush1.msra.mxu0 0.0
    %600 = vmatprep.subr.mxu0 0.0
    %601 = vmatpush1.msra.mxu0 0.0
    %602 = vmatprep.subr.mxu0 0.0
    %603 = vmatpush1.msra.mxu0 %v565
    %604 = vmatprep.subr.mxu0 0.0
    %605 = vmatpush1.msra.mxu0 %v564
    %606 = vmatprep.subr.mxu0 0.0
    %607 = vmatpush1.msra.mxu0 %v563
    %608 = vmatprep.subr.mxu0 0.0
    %609 = vmatpush1.msra.mxu0 %v562
    %610 = vmatprep.subr.mxu0 0.0
    %611 = vmatpush2.msra.mxu0 0.0
    %612 = vmatprep.subr.mxu0 0.0
    %613 = vmatpush2.msra.mxu0 0.0
    %614 = vmatprep.subr.mxu0 0.0
    %615 = vmatpush2.msra.mxu0 0.0
    %616 = vmatprep.subr.mxu0 0.0
    %617 = vmatpush2.msra.mxu0 0.0
    %618 = vmatprep.subr.mxu0 0.0
    %619 = vmatpush2.msra.mxu0 0.0
    %620 = vmatprep.subr.mxu0 0.0
    %621 = vmatpush2.msra.mxu0 0.0
    %622 = vmatprep.subr.mxu0 0.0
    %623 = vmatpush2.msra.mxu0 0.0
    %624 = vmatprep.subr.mxu0 0.0
    %625 = vmatpush2.msra.mxu0 0.0
    %626 = vmatprep.subr.mxu0 0.0
    %627 = vmatpush2.msra.mxu0 0.0
    %628 = vmatprep.subr.mxu0 0.0
    %629 = vmatpush2.msra.mxu0 0.0
    %630 = vmatprep.subr.mxu0 0.0
    %631 = vmatpush2.msra.mxu0 0.0
    %632 = vmatprep.subr.mxu0 0.0
    %633 = vmatpush2.msra.mxu0 0.0
    %634 = vmatprep.subr.mxu0 0.0
    %635 = vmatpush2.msra.mxu0 0.0
    %636 = vmatprep.subr.mxu0 0.0
    %637 = vmatpush2.msra.mxu0 0.0
    %638 = vmatprep.subr.mxu0 0.0
    %639 = vmatpush2.msra.mxu0 0.0
    %640 = vmatprep.subr.mxu0 0.0
    %641 = vmatpush2.msra.mxu0 0.0
    %642 = vmatprep.mubr.f32.mxu0 0.0
    %643 = vmatmul.mubr.f32.gmra.mxu0 %v567
    %v644 = vpop.f32.mrf.mxu0
    %v645 = vadd.f32 0.0, %v644
    %v646 = vpop.f32.mrf.mxu0
    %647 = vmatprep.mubr.f32.mxu0 0.0
    %648 = vmatmul.mubr.f32.gmra.mxu0 %v570
    %v649 = vpop.f32.mrf.mxu0
    %v650 = vadd.f32 0.0, %v649
    %v651 = vpop.f32.mrf.mxu0
    %652 = vmatprep.mubr.f32.mxu0 0.0
    %653 = vmatmul.mubr.f32.gmra.mxu0 %v573
    %v654 = vpop.f32.mrf.mxu0
    %v655 = vadd.f32 0.0, %v654
    %v656 = vpop.f32.mrf.mxu0
    %657 = vmatprep.mubr.f32.mxu0 0.0
    %658 = vmatmul.mubr.f32.gmra.mxu0 %v576
    %v659 = vpop.f32.mrf.mxu0
    %v660 = vadd.f32 0.0, %v659
    %v661 = vpop.f32.mrf.mxu0
    %662 = vdwg.mxu0
    %v664 = vcombine.high %v465, %v465
    %v666 = vunpack.c.l.s4 1966171168
    %v667 = vunpack.c.0.s8 %v666
    %v668 = vlaneseq
    %v669 = vshrl.u32 %v668, 7
    %v670 = vsub.s32 %v667, %v669
    %v671 = vrot.slane %v465, %v670
    %v673 = vunpack.c.l.s4 1966171168
    %v674 = vunpack.c.0.s8 %v673
    %v675 = vlaneseq
    %v676 = vshrl.u32 %v675, 7
    %v677 = vsub.s32 %v674, %v676
    %v678 = vrot.slane %v664, %v677
    %v679 = vcombine.high %v671, %v671
    %v680 = vcombine.high %v678, %v678
    %v682 = vunpack.c.l.s4 1966171168
    %v683 = vunpack.c.0.s8 %v682
    %v684 = vlaneseq
    %v685 = vshrl.u32 %v684, 7
    %v686 = vsub.s32 %v683, %v685
    %v687 = vrot.slane %v671, %v686
    %v689 = vunpack.c.l.s4 1966171168
    %v690 = vunpack.c.0.s8 %v689
    %v691 = vlaneseq
    %v692 = vshrl.u32 %v691, 7
    %v693 = vsub.s32 %v690, %v692
    %v694 = vrot.slane %v678, %v693
    %v696 = vunpack.c.l.s4 1966171168
    %v697 = vunpack.c.0.s8 %v696
    %v698 = vlaneseq
    %v699 = vshrl.u32 %v698, 7
    %v700 = vsub.s32 %v697, %v699
    %v701 = vrot.slane %v679, %v700
    %v703 = vunpack.c.l.s4 1966171168
    %v704 = vunpack.c.0.s8 %v703
    %v705 = vlaneseq
    %v706 = vshrl.u32 %v705, 7
    %v707 = vsub.s32 %v704, %v706
    %v708 = vrot.slane %v680, %v707
    %v709 = vcombine.high %v687, %v687
    %v710 = vcombine.high %v694, %v694
    %v711 = vcombine.high %v701, %v701
    %v712 = vcombine.high %v708, %v708
    %v713 = vlaneseq
    %v714 = vshrl.u32 %v713, 7
    %v715 = vsub.s32 0, %v714
    %v716 = vrot.slane %v687, %v715
    %v717 = vlaneseq
    %v718 = vshrl.u32 %v717, 7
    %v719 = vsub.s32 0, %v718
    %v720 = vrot.slane %v701, %v719
    %v721 = vlaneseq
    %v722 = vshrl.u32 %v721, 7
    %v723 = vsub.s32 0, %v722
    %v724 = vrot.slane %v709, %v723
    %v725 = vlaneseq
    %v726 = vshrl.u32 %v725, 7
    %v727 = vsub.s32 0, %v726
    %v728 = vrot.slane %v711, %v727
    %v729 = vlaneseq
    %v730 = vshrl.u32 %v729, 7
    %v731 = vsub.s32 0, %v730
    %v732 = vrot.slane %v694, %v731
    %v733 = vlaneseq
    %v734 = vshrl.u32 %v733, 7
    %v735 = vsub.s32 0, %v734
    %v736 = vrot.slane %v708, %v735
    %v737 = vlaneseq
    %v738 = vshrl.u32 %v737, 7
    %v739 = vsub.s32 0, %v738
    %v740 = vrot.slane %v710, %v739
    %v741 = vlaneseq
    %v742 = vshrl.u32 %v741, 7
    %v743 = vsub.s32 0, %v742
    %v744 = vrot.slane %v712, %v743
    %v753 = vadd.f32 %v716, %v645
    %v754 = vadd.f32 %v716, %v650
    %v755 = vadd.f32 %v716, %v655
    %v756 = vadd.f32 %v716, %v660
    %v757 = vadd.f32 %v720, %v645
    %v758 = vadd.f32 %v720, %v650
    %v759 = vadd.f32 %v720, %v655
    %v760 = vadd.f32 %v720, %v660
    %v761 = vadd.f32 %v724, %v645
    %v762 = vadd.f32 %v724, %v650
    %v763 = vadd.f32 %v724, %v655
    %v764 = vadd.f32 %v724, %v660
    %v765 = vadd.f32 %v728, %v645
    %v766 = vadd.f32 %v728, %v650
    %v767 = vadd.f32 %v728, %v655
    %v768 = vadd.f32 %v728, %v660
    %v769 = vadd.f32 %v732, %v645
    %v770 = vadd.f32 %v732, %v650
    %v771 = vadd.f32 %v732, %v655
    %v772 = vadd.f32 %v732, %v660
    %v773 = vadd.f32 %v736, %v645
    %v774 = vadd.f32 %v736, %v650
    %v775 = vadd.f32 %v736, %v655
    %v776 = vadd.f32 %v736, %v660
    %v777 = vadd.f32 %v740, %v645
    %v778 = vadd.f32 %v740, %v650
    %v779 = vadd.f32 %v740, %v655
    %v780 = vadd.f32 %v740, %v660
    %v781 = vadd.f32 %v744, %v645
    %v782 = vadd.f32 %v744, %v650
    %v783 = vadd.f32 %v744, %v655
    %v784 = vadd.f32 %v744, %v660
    %v785 = vld [vmem:[#allocation12] sm:$0x1]
    %v787 = vlaneseq
    %v788 = vshrl.u32 %v787, 7
    %v789 = vsub.s32 0, %v788
    %v790 = vrot.slane %v785, %v789
    %v792 = vadd.f32 %v753, %v790
    %v793 = vadd.f32 %v754, %v790
    %v794 = vadd.f32 %v755, %v790
    %v795 = vadd.f32 %v756, %v790
    %v796 = vadd.f32 %v757, %v790
    %v797 = vadd.f32 %v758, %v790
    %v798 = vadd.f32 %v759, %v790
    %v799 = vadd.f32 %v760, %v790
    %v800 = vadd.f32 %v761, %v790
    %v801 = vadd.f32 %v762, %v790
    %v802 = vadd.f32 %v763, %v790
    %v803 = vadd.f32 %v764, %v790
    %v804 = vadd.f32 %v765, %v790
    %v805 = vadd.f32 %v766, %v790
    %v806 = vadd.f32 %v767, %v790
    %v807 = vadd.f32 %v768, %v790
    %v808 = vadd.f32 %v769, %v790
    %v809 = vadd.f32 %v770, %v790
    %v810 = vadd.f32 %v771, %v790
    %v811 = vadd.f32 %v772, %v790
    %v812 = vadd.f32 %v773, %v790
    %v813 = vadd.f32 %v774, %v790
    %v814 = vadd.f32 %v775, %v790
    %v815 = vadd.f32 %v776, %v790
    %v816 = vadd.f32 %v777, %v790
    %v817 = vadd.f32 %v778, %v790
    %v818 = vadd.f32 %v779, %v790
    %v819 = vadd.f32 %v780, %v790
    %v820 = vadd.f32 %v781, %v790
    %v821 = vadd.f32 %v782, %v790
    %v822 = vadd.f32 %v783, %v790
    %v823 = vadd.f32 %v784, %v790
    %v824 = vtanh.pop %v792
    %v825 = vtanh.pop %v793
    %v826 = vtanh.pop %v794
    %v827 = vtanh.pop %v795
    %v828 = vtanh.pop %v796
    %v829 = vtanh.pop %v797
    %v830 = vtanh.pop %v798
    %v831 = vtanh.pop %v799
    %v832 = vtanh.pop %v800
    %v833 = vtanh.pop %v801
    %v834 = vtanh.pop %v802
    %v835 = vtanh.pop %v803
    %v836 = vtanh.pop %v804
    %v837 = vtanh.pop %v805
    %v838 = vtanh.pop %v806
    %v839 = vtanh.pop %v807
    %v840 = vtanh.pop %v808
    %v841 = vtanh.pop %v809
    %v842 = vtanh.pop %v810
    %v843 = vtanh.pop %v811
    %v844 = vtanh.pop %v812
    %v845 = vtanh.pop %v813
    %v846 = vtanh.pop %v814
    %v847 = vtanh.pop %v815
    %v848 = vtanh.pop %v816
    %v849 = vtanh.pop %v817
    %v850 = vtanh.pop %v818
    %v851 = vtanh.pop %v819
    %v852 = vtanh.pop %v820
    %v853 = vtanh.pop %v821
    %v854 = vtanh.pop %v822
    %v855 = vtanh.pop %v823
    %v856 = vld [vmem:[#allocation14] sm:$0x1]
    %v858 = vlaneseq
    %v859 = vshrl.u32 %v858, 7
    %v860 = vsub.s32 0, %v859
    %v861 = vrot.slane %v856, %v860
    %v863 = vmul.f32 %v824, %v861
    %v864 = vmul.f32 %v825, %v861
    %v865 = vmul.f32 %v826, %v861
    %v866 = vmul.f32 %v827, %v861
    %v867 = vmul.f32 %v828, %v861
    %v868 = vmul.f32 %v829, %v861
    %v869 = vmul.f32 %v830, %v861
    %v870 = vmul.f32 %v831, %v861
    %v871 = vmul.f32 %v832, %v861
    %v872 = vmul.f32 %v833, %v861
    %v873 = vmul.f32 %v834, %v861
    %v874 = vmul.f32 %v835, %v861
    %v875 = vmul.f32 %v836, %v861
    %v876 = vmul.f32 %v837, %v861
    %v877 = vmul.f32 %v838, %v861
    %v878 = vmul.f32 %v839, %v861
    %v879 = vmul.f32 %v840, %v861
    %v880 = vmul.f32 %v841, %v861
    %v881 = vmul.f32 %v842, %v861
    %v882 = vmul.f32 %v843, %v861
    %v883 = vmul.f32 %v844, %v861
    %v884 = vmul.f32 %v845, %v861
    %v885 = vmul.f32 %v846, %v861
    %v886 = vmul.f32 %v847, %v861
    %v887 = vmul.f32 %v848, %v861
    %v888 = vmul.f32 %v849, %v861
    %v889 = vmul.f32 %v850, %v861
    %v890 = vmul.f32 %v851, %v861
    %v891 = vmul.f32 %v852, %v861
    %v892 = vmul.f32 %v853, %v861
    %v893 = vmul.f32 %v854, %v861
    %v894 = vmul.f32 %v855, %v861
    %v895 = vsel %vm391, %v863, 0.0
    %896 = vadd.xlane.f32.xlu0 %v895
    %v897 = vpop.xlane.xlu0 %896
    %v898 = vsel %vm391, %v864, 0.0
    %899 = vadd.xlane.f32.xlu0 %v898
    %v900 = vpop.xlane.xlu0 %899
    %v901 = vsel %vm391, %v865, 0.0
    %902 = vadd.xlane.f32.xlu0 %v901
    %v903 = vpop.xlane.xlu0 %902
    %vm904 = vcmask 259072
    %v905 = vsel %vm904, %v866, 0.0
    %906 = vadd.xlane.f32.xlu0 %v905
    %v907 = vpop.xlane.xlu0 %906
    %v908 = vsel %vm391, %v867, 0.0
    %909 = vadd.xlane.f32.xlu0 %v908
    %v910 = vpop.xlane.xlu0 %909
    %v911 = vsel %vm391, %v868, 0.0
    %912 = vadd.xlane.f32.xlu0 %v911
    %v913 = vpop.xlane.xlu0 %912
    %v914 = vsel %vm391, %v869, 0.0
    %915 = vadd.xlane.f32.xlu0 %v914
    %v916 = vpop.xlane.xlu0 %915
    %v917 = vsel %vm904, %v870, 0.0
    %918 = vadd.xlane.f32.xlu0 %v917
    %v919 = vpop.xlane.xlu0 %918
    %v920 = vsel %vm391, %v871, 0.0
    %921 = vadd.xlane.f32.xlu0 %v920
    %v922 = vpop.xlane.xlu0 %921
    %v923 = vsel %vm391, %v872, 0.0
    %924 = vadd.xlane.f32.xlu0 %v923
    %v925 = vpop.xlane.xlu0 %924
    %v926 = vsel %vm391, %v873, 0.0
    %927 = vadd.xlane.f32.xlu0 %v926
    %v928 = vpop.xlane.xlu0 %927
    %v929 = vsel %vm904, %v874, 0.0
    %930 = vadd.xlane.f32.xlu0 %v929
    %v931 = vpop.xlane.xlu0 %930
    %v932 = vsel %vm391, %v875, 0.0
    %933 = vadd.xlane.f32.xlu0 %v932
    %v934 = vpop.xlane.xlu0 %933
    %v935 = vsel %vm391, %v876, 0.0
    %936 = vadd.xlane.f32.xlu0 %v935
    %v937 = vpop.xlane.xlu0 %936
    %v938 = vsel %vm391, %v877, 0.0
    %939 = vadd.xlane.f32.xlu0 %v938
    %v940 = vpop.xlane.xlu0 %939
    %v941 = vsel %vm904, %v878, 0.0
    %942 = vadd.xlane.f32.xlu0 %v941
    %v943 = vpop.xlane.xlu0 %942
    %v944 = vsel %vm391, %v879, 0.0
    %945 = vadd.xlane.f32.xlu0 %v944
    %v946 = vpop.xlane.xlu0 %945
    %v947 = vsel %vm391, %v880, 0.0
    %948 = vadd.xlane.f32.xlu0 %v947
    %v949 = vpop.xlane.xlu0 %948
    %v950 = vsel %vm391, %v881, 0.0
    %951 = vadd.xlane.f32.xlu0 %v950
    %v952 = vpop.xlane.xlu0 %951
    %v953 = vsel %vm904, %v882, 0.0
    %954 = vadd.xlane.f32.xlu0 %v953
    %v955 = vpop.xlane.xlu0 %954
    %v956 = vsel %vm391, %v883, 0.0
    %957 = vadd.xlane.f32.xlu0 %v956
    %v958 = vpop.xlane.xlu0 %957
    %v959 = vsel %vm391, %v884, 0.0
    %960 = vadd.xlane.f32.xlu0 %v959
    %v961 = vpop.xlane.xlu0 %960
    %v962 = vsel %vm391, %v885, 0.0
    %963 = vadd.xlane.f32.xlu0 %v962
    %v964 = vpop.xlane.xlu0 %963
    %v965 = vsel %vm904, %v886, 0.0
    %966 = vadd.xlane.f32.xlu0 %v965
    %v967 = vpop.xlane.xlu0 %966
    %v968 = vsel %vm391, %v887, 0.0
    %969 = vadd.xlane.f32.xlu0 %v968
    %v970 = vpop.xlane.xlu0 %969
    %v971 = vsel %vm391, %v888, 0.0
    %972 = vadd.xlane.f32.xlu0 %v971
    %v973 = vpop.xlane.xlu0 %972
    %v974 = vsel %vm391, %v889, 0.0
    %975 = vadd.xlane.f32.xlu0 %v974
    %v976 = vpop.xlane.xlu0 %975
    %v977 = vsel %vm904, %v890, 0.0
    %978 = vadd.xlane.f32.xlu0 %v977
    %v979 = vpop.xlane.xlu0 %978
    %v980 = vsel %vm391, %v891, 0.0
    %981 = vadd.xlane.f32.xlu0 %v980
    %v982 = vpop.xlane.xlu0 %981
    %v983 = vsel %vm391, %v892, 0.0
    %984 = vadd.xlane.f32.xlu0 %v983
    %v985 = vpop.xlane.xlu0 %984
    %v986 = vsel %vm391, %v893, 0.0
    %987 = vadd.xlane.f32.xlu0 %v986
    %v988 = vpop.xlane.xlu0 %987
    %v989 = vsel %vm904, %v894, 0.0
    %990 = vadd.xlane.f32.xlu0 %v989
    %v991 = vpop.xlane.xlu0 %990
    %v1024 = vlaneseq
    %v1025 = vand.u32 %v1024, 127
    %v1026 = vlaneseq
    %v1027 = vshrl.u32 %v1026, 7
    %v1028 = vsub.s32 %v1025, %v1027
    %v1029 = vrot.slane %v897, %v1028
    %v1030 = vadd.s32 %v1025, 4294967288
    %v1031 = vlaneseq
    %v1032 = vshrl.u32 %v1031, 7
    %v1033 = vsub.s32 %v1030, %v1032
    %v1034 = vrot.slane %v900, %v1033
    %vm1035 = vcmask 130112
    %v1036 = vsel %vm1035, %v1034, %v1029
    %v1037 = vadd.s32 %v1025, 4294967280
    %v1038 = vlaneseq
    %v1039 = vshrl.u32 %v1038, 7
    %v1040 = vsub.s32 %v1037, %v1039
    %v1041 = vrot.slane %v903, %v1040
    %vm1042 = vcmask 195712
    %v1043 = vsel %vm1042, %v1041, %v1036
    %v1044 = vadd.s32 %v1025, 4294967272
    %v1045 = vlaneseq
    %v1046 = vshrl.u32 %v1045, 7
    %v1047 = vsub.s32 %v1044, %v1046
    %v1048 = vrot.slane %v907, %v1047
    %vm1049 = vcmask 261312
    %v1050 = vsel %vm1049, %v1048, %v1043
    %v1051 = vlaneseq
    %v1052 = vshrl.u32 %v1051, 7
    %v1053 = vsub.s32 %v1025, %v1052
    %v1054 = vrot.slane %v910, %v1053
    %v1055 = vlaneseq
    %v1056 = vshrl.u32 %v1055, 7
    %v1057 = vsub.s32 %v1030, %v1056
    %v1058 = vrot.slane %v913, %v1057
    %v1059 = vsel %vm1035, %v1058, %v1054
    %v1060 = vlaneseq
    %v1061 = vshrl.u32 %v1060, 7
    %v1062 = vsub.s32 %v1037, %v1061
    %v1063 = vrot.slane %v916, %v1062
    %v1064 = vsel %vm1042, %v1063, %v1059
    %v1065 = vlaneseq
    %v1066 = vshrl.u32 %v1065, 7
    %v1067 = vsub.s32 %v1044, %v1066
    %v1068 = vrot.slane %v919, %v1067
    %v1069 = vsel %vm1049, %v1068, %v1064
    %v1070 = vlaneseq
    %v1071 = vshrl.u32 %v1070, 7
    %v1072 = vsub.s32 %v1025, %v1071
    %v1073 = vrot.slane %v922, %v1072
    %v1074 = vlaneseq
    %v1075 = vshrl.u32 %v1074, 7
    %v1076 = vsub.s32 %v1030, %v1075
    %v1077 = vrot.slane %v925, %v1076
    %v1078 = vsel %vm1035, %v1077, %v1073
    %v1079 = vlaneseq
    %v1080 = vshrl.u32 %v1079, 7
    %v1081 = vsub.s32 %v1037, %v1080
    %v1082 = vrot.slane %v928, %v1081
    %v1083 = vsel %vm1042, %v1082, %v1078
    %v1084 = vlaneseq
    %v1085 = vshrl.u32 %v1084, 7
    %v1086 = vsub.s32 %v1044, %v1085
    %v1087 = vrot.slane %v931, %v1086
    %v1088 = vsel %vm1049, %v1087, %v1083
    %v1089 = vlaneseq
    %v1090 = vshrl.u32 %v1089, 7
    %v1091 = vsub.s32 %v1025, %v1090
    %v1092 = vrot.slane %v934, %v1091
    %v1093 = vlaneseq
    %v1094 = vshrl.u32 %v1093, 7
    %v1095 = vsub.s32 %v1030, %v1094
    %v1096 = vrot.slane %v937, %v1095
    %v1097 = vsel %vm1035, %v1096, %v1092
    %v1098 = vlaneseq
    %v1099 = vshrl.u32 %v1098, 7
    %v1100 = vsub.s32 %v1037, %v1099
    %v1101 = vrot.slane %v940, %v1100
    %v1102 = vsel %vm1042, %v1101, %v1097
    %v1103 = vlaneseq
    %v1104 = vshrl.u32 %v1103, 7
    %v1105 = vsub.s32 %v1044, %v1104
    %v1106 = vrot.slane %v943, %v1105
    %v1107 = vsel %vm1049, %v1106, %v1102
    %v1108 = vlaneseq
    %v1109 = vshrl.u32 %v1108, 7
    %v1110 = vsub.s32 %v1025, %v1109
    %v1111 = vrot.slane %v946, %v1110
    %v1112 = vlaneseq
    %v1113 = vshrl.u32 %v1112, 7
    %v1114 = vsub.s32 %v1030, %v1113
    %v1115 = vrot.slane %v949, %v1114
    %v1116 = vsel %vm1035, %v1115, %v1111
    %v1117 = vlaneseq
    %v1118 = vshrl.u32 %v1117, 7
    %v1119 = vsub.s32 %v1037, %v1118
    %v1120 = vrot.slane %v952, %v1119
    %v1121 = vsel %vm1042, %v1120, %v1116
    %v1122 = vlaneseq
    %v1123 = vshrl.u32 %v1122, 7
    %v1124 = vsub.s32 %v1044, %v1123
    %v1125 = vrot.slane %v955, %v1124
    %v1126 = vsel %vm1049, %v1125, %v1121
    %v1127 = vlaneseq
    %v1128 = vshrl.u32 %v1127, 7
    %v1129 = vsub.s32 %v1025, %v1128
    %v1130 = vrot.slane %v958, %v1129
    %v1131 = vlaneseq
    %v1132 = vshrl.u32 %v1131, 7
    %v1133 = vsub.s32 %v1030, %v1132
    %v1134 = vrot.slane %v961, %v1133
    %v1135 = vsel %vm1035, %v1134, %v1130
    %v1136 = vlaneseq
    %v1137 = vshrl.u32 %v1136, 7
    %v1138 = vsub.s32 %v1037, %v1137
    %v1139 = vrot.slane %v964, %v1138
    %v1140 = vsel %vm1042, %v1139, %v1135
    %v1141 = vlaneseq
    %v1142 = vshrl.u32 %v1141, 7
    %v1143 = vsub.s32 %v1044, %v1142
    %v1144 = vrot.slane %v967, %v1143
    %v1145 = vsel %vm1049, %v1144, %v1140
    %v1146 = vlaneseq
    %v1147 = vshrl.u32 %v1146, 7
    %v1148 = vsub.s32 %v1025, %v1147
    %v1149 = vrot.slane %v970, %v1148
    %v1150 = vlaneseq
    %v1151 = vshrl.u32 %v1150, 7
    %v1152 = vsub.s32 %v1030, %v1151
    %v1153 = vrot.slane %v973, %v1152
    %v1154 = vsel %vm1035, %v1153, %v1149
    %v1155 = vlaneseq
    %v1156 = vshrl.u32 %v1155, 7
    %v1157 = vsub.s32 %v1037, %v1156
    %v1158 = vrot.slane %v976, %v1157
    %v1159 = vsel %vm1042, %v1158, %v1154
    %v1160 = vlaneseq
    %v1161 = vshrl.u32 %v1160, 7
    %v1162 = vsub.s32 %v1044, %v1161
    %v1163 = vrot.slane %v979, %v1162
    %v1164 = vsel %vm1049, %v1163, %v1159
    %v1165 = vlaneseq
    %v1166 = vshrl.u32 %v1165, 7
    %v1167 = vsub.s32 %v1025, %v1166
    %v1168 = vrot.slane %v982, %v1167
    %v1169 = vlaneseq
    %v1170 = vshrl.u32 %v1169, 7
    %v1171 = vsub.s32 %v1030, %v1170
    %v1172 = vrot.slane %v985, %v1171
    %v1173 = vsel %vm1035, %v1172, %v1168
    %v1174 = vlaneseq
    %v1175 = vshrl.u32 %v1174, 7
    %v1176 = vsub.s32 %v1037, %v1175
    %v1177 = vrot.slane %v988, %v1176
    %v1178 = vsel %vm1042, %v1177, %v1173
    %v1179 = vlaneseq
    %v1180 = vshrl.u32 %v1179, 7
    %v1181 = vsub.s32 %v1044, %v1180
    %v1182 = vrot.slane %v991, %v1181
    %v1183 = vsel %vm1049, %v1182, %v1178
    %vm1184 = vcmask 1041409
    %v1185 = vsel %vm1184, %v1069, %v1050
    %vm1186 = vcmask 1042434
    %v1187 = vsel %vm1186, %v1088, %v1185
    %vm1188 = vcmask 1043459
    %v1189 = vsel %vm1188, %v1107, %v1187
    %vm1190 = vcmask 1044484
    %v1191 = vsel %vm1190, %v1126, %v1189
    %vm1192 = vcmask 1045509
    %v1193 = vsel %vm1192, %v1145, %v1191
    %vm1194 = vcmask 1046534
    %v1195 = vsel %vm1194, %v1164, %v1193
    %vm1196 = vcmask 1047559
    %v1197 = vsel %vm1196, %v1183, %v1195
    %vm1199 = vcmask 244736
    %v1200 = vsel %vm1199, %v1197, -inf
    %1201 = vmax.xlane.f32.xlu0 %v1200
    %v1202 = vpop.xlane.xlu0 %1201
    %v1204 = vlaneseq
    %v1205 = vshrl.u32 %v1204, 7
    %v1206 = vsub.s32 0, %v1205
    %v1207 = vrot.slane %v1202, %v1206
    %v1208 = vlaneseq
    %v1209 = vshrl.u32 %v1208, 7
    %v1210 = vsub.s32 1, %v1209
    %v1211 = vrot.slane %v1202, %v1210
    %v1212 = vlaneseq
    %v1213 = vshrl.u32 %v1212, 7
    %v1214 = vsub.s32 2, %v1213
    %v1215 = vrot.slane %v1202, %v1214
    %v1216 = vlaneseq
    %v1217 = vshrl.u32 %v1216, 7
    %v1218 = vsub.s32 3, %v1217
    %v1219 = vrot.slane %v1202, %v1218
    %v1220 = vlaneseq
    %v1221 = vshrl.u32 %v1220, 7
    %v1222 = vsub.s32 4, %v1221
    %v1223 = vrot.slane %v1202, %v1222
    %v1224 = vlaneseq
    %v1225 = vshrl.u32 %v1224, 7
    %v1226 = vsub.s32 5, %v1225
    %v1227 = vrot.slane %v1202, %v1226
    %v1228 = vlaneseq
    %v1229 = vshrl.u32 %v1228, 7
    %v1230 = vsub.s32 6, %v1229
    %v1231 = vrot.slane %v1202, %v1230
    %v1232 = vlaneseq
    %v1233 = vshrl.u32 %v1232, 7
    %v1234 = vsub.s32 7, %v1233
    %v1235 = vrot.slane %v1202, %v1234
    %v1244 = vsub.f32 %v897, %v1207
    %v1245 = vsub.f32 %v900, %v1207
    %v1246 = vsub.f32 %v903, %v1207
    %v1247 = vsub.f32 %v907, %v1207
    %v1248 = vsub.f32 %v910, %v1211
    %v1249 = vsub.f32 %v913, %v1211
    %v1250 = vsub.f32 %v916, %v1211
    %v1251 = vsub.f32 %v919, %v1211
    %v1252 = vsub.f32 %v922, %v1215
    %v1253 = vsub.f32 %v925, %v1215
    %v1254 = vsub.f32 %v928, %v1215
    %v1255 = vsub.f32 %v931, %v1215
    %v1256 = vsub.f32 %v934, %v1219
    %v1257 = vsub.f32 %v937, %v1219
    %v1258 = vsub.f32 %v940, %v1219
    %v1259 = vsub.f32 %v943, %v1219
    %v1260 = vsub.f32 %v946, %v1223
    %v1261 = vsub.f32 %v949, %v1223
    %v1262 = vsub.f32 %v952, %v1223
    %v1263 = vsub.f32 %v955, %v1223
    %v1264 = vsub.f32 %v958, %v1227
    %v1265 = vsub.f32 %v961, %v1227
    %v1266 = vsub.f32 %v964, %v1227
    %v1267 = vsub.f32 %v967, %v1227
    %v1268 = vsub.f32 %v970, %v1231
    %v1269 = vsub.f32 %v973, %v1231
    %v1270 = vsub.f32 %v976, %v1231
    %v1271 = vsub.f32 %v979, %v1231
    %v1272 = vsub.f32 %v982, %v1235
    %v1273 = vsub.f32 %v985, %v1235
    %v1274 = vsub.f32 %v988, %v1235
    %v1275 = vsub.f32 %v991, %v1235
    %v1276 = vmul.f32 %v1244, 1.442695
    %v1277 = vpow.pop %v1276
    %v1278 = vmul.f32 %v1245, 1.442695
    %v1279 = vpow.pop %v1278
    %v1280 = vmul.f32 %v1246, 1.442695
    %v1281 = vpow.pop %v1280
    %v1282 = vmul.f32 %v1247, 1.442695
    %v1283 = vpow.pop %v1282
    %v1284 = vmul.f32 %v1248, 1.442695
    %v1285 = vpow.pop %v1284
    %v1286 = vmul.f32 %v1249, 1.442695
    %v1287 = vpow.pop %v1286
    %v1288 = vmul.f32 %v1250, 1.442695
    %v1289 = vpow.pop %v1288
    %v1290 = vmul.f32 %v1251, 1.442695
    %v1291 = vpow.pop %v1290
    %v1292 = vmul.f32 %v1252, 1.442695
    %v1293 = vpow.pop %v1292
    %v1294 = vmul.f32 %v1253, 1.442695
    %v1295 = vpow.pop %v1294
    %v1296 = vmul.f32 %v1254, 1.442695
    %v1297 = vpow.pop %v1296
    %v1298 = vmul.f32 %v1255, 1.442695
    %v1299 = vpow.pop %v1298
    %v1300 = vmul.f32 %v1256, 1.442695
    %v1301 = vpow.pop %v1300
    %v1302 = vmul.f32 %v1257, 1.442695
    %v1303 = vpow.pop %v1302
    %v1304 = vmul.f32 %v1258, 1.442695
    %v1305 = vpow.pop %v1304
    %v1306 = vmul.f32 %v1259, 1.442695
    %v1307 = vpow.pop %v1306
    %v1308 = vmul.f32 %v1260, 1.442695
    %v1309 = vpow.pop %v1308
    %v1310 = vmul.f32 %v1261, 1.442695
    %v1311 = vpow.pop %v1310
    %v1312 = vmul.f32 %v1262, 1.442695
    %v1313 = vpow.pop %v1312
    %v1314 = vmul.f32 %v1263, 1.442695
    %v1315 = vpow.pop %v1314
    %v1316 = vmul.f32 %v1264, 1.442695
    %v1317 = vpow.pop %v1316
    %v1318 = vmul.f32 %v1265, 1.442695
    %v1319 = vpow.pop %v1318
    %v1320 = vmul.f32 %v1266, 1.442695
    %v1321 = vpow.pop %v1320
    %v1322 = vmul.f32 %v1267, 1.442695
    %v1323 = vpow.pop %v1322
    %v1324 = vmul.f32 %v1268, 1.442695
    %v1325 = vpow.pop %v1324
    %v1326 = vmul.f32 %v1269, 1.442695
    %v1327 = vpow.pop %v1326
    %v1328 = vmul.f32 %v1270, 1.442695
    %v1329 = vpow.pop %v1328
    %v1330 = vmul.f32 %v1271, 1.442695
    %v1331 = vpow.pop %v1330
    %v1332 = vmul.f32 %v1272, 1.442695
    %v1333 = vpow.pop %v1332
    %v1334 = vmul.f32 %v1273, 1.442695
    %v1335 = vpow.pop %v1334
    %v1336 = vmul.f32 %v1274, 1.442695
    %v1337 = vpow.pop %v1336
    %v1338 = vmul.f32 %v1275, 1.442695
    %v1339 = vpow.pop %v1338
    %1372 = vset.pattern.permute.xlu0 0
    %1373 = vperm.xlu0 %1372, %v1277
    %v1374 = vpop.permute.xlu0 %1373
    %1375 = vset.pattern.permute.xlu0 0
    %1376 = vperm.xlu0 %1375, %v1279
    %v1377 = vpop.permute.xlu0 %1376
    %1378 = vset.pattern.permute.xlu0 0
    %1379 = vperm.xlu0 %1378, %v1281
    %v1380 = vpop.permute.xlu0 %1379
    %1381 = vset.pattern.permute.xlu0 0
    %1382 = vperm.xlu0 %1381, %v1283
    %v1383 = vpop.permute.xlu0 %1382
    %1384 = vset.pattern.permute.xlu0 0
    %1385 = vperm.xlu0 %1384, %v1285
    %v1386 = vpop.permute.xlu0 %1385
    %1387 = vset.pattern.permute.xlu0 0
    %1388 = vperm.xlu0 %1387, %v1287
    %v1389 = vpop.permute.xlu0 %1388
    %1390 = vset.pattern.permute.xlu0 0
    %1391 = vperm.xlu0 %1390, %v1289
    %v1392 = vpop.permute.xlu0 %1391
    %1393 = vset.pattern.permute.xlu0 0
    %1394 = vperm.xlu0 %1393, %v1291
    %v1395 = vpop.permute.xlu0 %1394
    %1396 = vset.pattern.permute.xlu0 0
    %1397 = vperm.xlu0 %1396, %v1293
    %v1398 = vpop.permute.xlu0 %1397
    %1399 = vset.pattern.permute.xlu0 0
    %1400 = vperm.xlu0 %1399, %v1295
    %v1401 = vpop.permute.xlu0 %1400
    %1402 = vset.pattern.permute.xlu0 0
    %1403 = vperm.xlu0 %1402, %v1297
    %v1404 = vpop.permute.xlu0 %1403
    %1405 = vset.pattern.permute.xlu0 0
    %1406 = vperm.xlu0 %1405, %v1299
    %v1407 = vpop.permute.xlu0 %1406
    %1408 = vset.pattern.permute.xlu0 0
    %1409 = vperm.xlu0 %1408, %v1301
    %v1410 = vpop.permute.xlu0 %1409
    %1411 = vset.pattern.permute.xlu0 0
    %1412 = vperm.xlu0 %1411, %v1303
    %v1413 = vpop.permute.xlu0 %1412
    %1414 = vset.pattern.permute.xlu0 0
    %1415 = vperm.xlu0 %1414, %v1305
    %v1416 = vpop.permute.xlu0 %1415
    %1417 = vset.pattern.permute.xlu0 0
    %1418 = vperm.xlu0 %1417, %v1307
    %v1419 = vpop.permute.xlu0 %1418
    %1420 = vset.pattern.permute.xlu0 0
    %1421 = vperm.xlu0 %1420, %v1309
    %v1422 = vpop.permute.xlu0 %1421
    %1423 = vset.pattern.permute.xlu0 0
    %1424 = vperm.xlu0 %1423, %v1311
    %v1425 = vpop.permute.xlu0 %1424
    %1426 = vset.pattern.permute.xlu0 0
    %1427 = vperm.xlu0 %1426, %v1313
    %v1428 = vpop.permute.xlu0 %1427
    %1429 = vset.pattern.permute.xlu0 0
    %1430 = vperm.xlu0 %1429, %v1315
    %v1431 = vpop.permute.xlu0 %1430
    %1432 = vset.pattern.permute.xlu0 0
    %1433 = vperm.xlu0 %1432, %v1317
    %v1434 = vpop.permute.xlu0 %1433
    %1435 = vset.pattern.permute.xlu0 0
    %1436 = vperm.xlu0 %1435, %v1319
    %v1437 = vpop.permute.xlu0 %1436
    %1438 = vset.pattern.permute.xlu0 0
    %1439 = vperm.xlu0 %1438, %v1321
    %v1440 = vpop.permute.xlu0 %1439
    %1441 = vset.pattern.permute.xlu0 0
    %1442 = vperm.xlu0 %1441, %v1323
    %v1443 = vpop.permute.xlu0 %1442
    %1444 = vset.pattern.permute.xlu0 0
    %1445 = vperm.xlu0 %1444, %v1325
    %v1446 = vpop.permute.xlu0 %1445
    %1447 = vset.pattern.permute.xlu0 0
    %1448 = vperm.xlu0 %1447, %v1327
    %v1449 = vpop.permute.xlu0 %1448
    %1450 = vset.pattern.permute.xlu0 0
    %1451 = vperm.xlu0 %1450, %v1329
    %v1452 = vpop.permute.xlu0 %1451
    %1453 = vset.pattern.permute.xlu0 0
    %1454 = vperm.xlu0 %1453, %v1331
    %v1455 = vpop.permute.xlu0 %1454
    %1456 = vset.pattern.permute.xlu0 0
    %1457 = vperm.xlu0 %1456, %v1333
    %v1458 = vpop.permute.xlu0 %1457
    %1459 = vset.pattern.permute.xlu0 0
    %1460 = vperm.xlu0 %1459, %v1335
    %v1461 = vpop.permute.xlu0 %1460
    %1462 = vset.pattern.permute.xlu0 0
    %1463 = vperm.xlu0 %1462, %v1337
    %v1464 = vpop.permute.xlu0 %1463
    %1465 = vset.pattern.permute.xlu0 0
    %1466 = vperm.xlu0 %1465, %v1339
    %v1467 = vpop.permute.xlu0 %1466
    %v1468 = vlaneseq
    %v1469 = vshrl.u32 %v1468, 7
    %v1470 = vsub.s32 %v1025, %v1469
    %v1471 = vrot.slane %v1374, %v1470
    %v1472 = vlaneseq
    %v1473 = vshrl.u32 %v1472, 7
    %v1474 = vsub.s32 %v1030, %v1473
    %v1475 = vrot.slane %v1377, %v1474
    %v1476 = vsel %vm1035, %v1475, %v1471
    %v1477 = vlaneseq
    %v1478 = vshrl.u32 %v1477, 7
    %v1479 = vsub.s32 %v1037, %v1478
    %v1480 = vrot.slane %v1380, %v1479
    %v1481 = vsel %vm1042, %v1480, %v1476
    %v1482 = vlaneseq
    %v1483 = vshrl.u32 %v1482, 7
    %v1484 = vsub.s32 %v1044, %v1483
    %v1485 = vrot.slane %v1383, %v1484
    %v1486 = vsel %vm1049, %v1485, %v1481
    %v1487 = vlaneseq
    %v1488 = vshrl.u32 %v1487, 7
    %v1489 = vsub.s32 %v1025, %v1488
    %v1490 = vrot.slane %v1386, %v1489
    %v1491 = vlaneseq
    %v1492 = vshrl.u32 %v1491, 7
    %v1493 = vsub.s32 %v1030, %v1492
    %v1494 = vrot.slane %v1389, %v1493
    %v1495 = vsel %vm1035, %v1494, %v1490
    %v1496 = vlaneseq
    %v1497 = vshrl.u32 %v1496, 7
    %v1498 = vsub.s32 %v1037, %v1497
    %v1499 = vrot.slane %v1392, %v1498
    %v1500 = vsel %vm1042, %v1499, %v1495
    %v1501 = vlaneseq
    %v1502 = vshrl.u32 %v1501, 7
    %v1503 = vsub.s32 %v1044, %v1502
    %v1504 = vrot.slane %v1395, %v1503
    %v1505 = vsel %vm1049, %v1504, %v1500
    %v1506 = vlaneseq
    %v1507 = vshrl.u32 %v1506, 7
    %v1508 = vsub.s32 %v1025, %v1507
    %v1509 = vrot.slane %v1398, %v1508
    %v1510 = vlaneseq
    %v1511 = vshrl.u32 %v1510, 7
    %v1512 = vsub.s32 %v1030, %v1511
    %v1513 = vrot.slane %v1401, %v1512
    %v1514 = vsel %vm1035, %v1513, %v1509
    %v1515 = vlaneseq
    %v1516 = vshrl.u32 %v1515, 7
    %v1517 = vsub.s32 %v1037, %v1516
    %v1518 = vrot.slane %v1404, %v1517
    %v1519 = vsel %vm1042, %v1518, %v1514
    %v1520 = vlaneseq
    %v1521 = vshrl.u32 %v1520, 7
    %v1522 = vsub.s32 %v1044, %v1521
    %v1523 = vrot.slane %v1407, %v1522
    %v1524 = vsel %vm1049, %v1523, %v1519
    %v1525 = vlaneseq
    %v1526 = vshrl.u32 %v1525, 7
    %v1527 = vsub.s32 %v1025, %v1526
    %v1528 = vrot.slane %v1410, %v1527
    %v1529 = vlaneseq
    %v1530 = vshrl.u32 %v1529, 7
    %v1531 = vsub.s32 %v1030, %v1530
    %v1532 = vrot.slane %v1413, %v1531
    %v1533 = vsel %vm1035, %v1532, %v1528
    %v1534 = vlaneseq
    %v1535 = vshrl.u32 %v1534, 7
    %v1536 = vsub.s32 %v1037, %v1535
    %v1537 = vrot.slane %v1416, %v1536
    %v1538 = vsel %vm1042, %v1537, %v1533
    %v1539 = vlaneseq
    %v1540 = vshrl.u32 %v1539, 7
    %v1541 = vsub.s32 %v1044, %v1540
    %v1542 = vrot.slane %v1419, %v1541
    %v1543 = vsel %vm1049, %v1542, %v1538
    %v1544 = vlaneseq
    %v1545 = vshrl.u32 %v1544, 7
    %v1546 = vsub.s32 %v1025, %v1545
    %v1547 = vrot.slane %v1422, %v1546
    %v1548 = vlaneseq
    %v1549 = vshrl.u32 %v1548, 7
    %v1550 = vsub.s32 %v1030, %v1549
    %v1551 = vrot.slane %v1425, %v1550
    %v1552 = vsel %vm1035, %v1551, %v1547
    %v1553 = vlaneseq
    %v1554 = vshrl.u32 %v1553, 7
    %v1555 = vsub.s32 %v1037, %v1554
    %v1556 = vrot.slane %v1428, %v1555
    %v1557 = vsel %vm1042, %v1556, %v1552
    %v1558 = vlaneseq
    %v1559 = vshrl.u32 %v1558, 7
    %v1560 = vsub.s32 %v1044, %v1559
    %v1561 = vrot.slane %v1431, %v1560
    %v1562 = vsel %vm1049, %v1561, %v1557
    %v1563 = vlaneseq
    %v1564 = vshrl.u32 %v1563, 7
    %v1565 = vsub.s32 %v1025, %v1564
    %v1566 = vrot.slane %v1434, %v1565
    %v1567 = vlaneseq
    %v1568 = vshrl.u32 %v1567, 7
    %v1569 = vsub.s32 %v1030, %v1568
    %v1570 = vrot.slane %v1437, %v1569
    %v1571 = vsel %vm1035, %v1570, %v1566
    %v1572 = vlaneseq
    %v1573 = vshrl.u32 %v1572, 7
    %v1574 = vsub.s32 %v1037, %v1573
    %v1575 = vrot.slane %v1440, %v1574
    %v1576 = vsel %vm1042, %v1575, %v1571
    %v1577 = vlaneseq
    %v1578 = vshrl.u32 %v1577, 7
    %v1579 = vsub.s32 %v1044, %v1578
    %v1580 = vrot.slane %v1443, %v1579
    %v1581 = vsel %vm1049, %v1580, %v1576
    %v1582 = vlaneseq
    %v1583 = vshrl.u32 %v1582, 7
    %v1584 = vsub.s32 %v1025, %v1583
    %v1585 = vrot.slane %v1446, %v1584
    %v1586 = vlaneseq
    %v1587 = vshrl.u32 %v1586, 7
    %v1588 = vsub.s32 %v1030, %v1587
    %v1589 = vrot.slane %v1449, %v1588
    %v1590 = vsel %vm1035, %v1589, %v1585
    %v1591 = vlaneseq
    %v1592 = vshrl.u32 %v1591, 7
    %v1593 = vsub.s32 %v1037, %v1592
    %v1594 = vrot.slane %v1452, %v1593
    %v1595 = vsel %vm1042, %v1594, %v1590
    %v1596 = vlaneseq
    %v1597 = vshrl.u32 %v1596, 7
    %v1598 = vsub.s32 %v1044, %v1597
    %v1599 = vrot.slane %v1455, %v1598
    %v1600 = vsel %vm1049, %v1599, %v1595
    %v1601 = vlaneseq
    %v1602 = vshrl.u32 %v1601, 7
    %v1603 = vsub.s32 %v1025, %v1602
    %v1604 = vrot.slane %v1458, %v1603
    %v1605 = vlaneseq
    %v1606 = vshrl.u32 %v1605, 7
    %v1607 = vsub.s32 %v1030, %v1606
    %v1608 = vrot.slane %v1461, %v1607
    %v1609 = vsel %vm1035, %v1608, %v1604
    %v1610 = vlaneseq
    %v1611 = vshrl.u32 %v1610, 7
    %v1612 = vsub.s32 %v1037, %v1611
    %v1613 = vrot.slane %v1464, %v1612
    %v1614 = vsel %vm1042, %v1613, %v1609
    %v1615 = vlaneseq
    %v1616 = vshrl.u32 %v1615, 7
    %v1617 = vsub.s32 %v1044, %v1616
    %v1618 = vrot.slane %v1467, %v1617
    %v1619 = vsel %vm1049, %v1618, %v1614
    %v1620 = vsel %vm1184, %v1505, %v1486
    %v1621 = vsel %vm1186, %v1524, %v1620
    %v1622 = vsel %vm1188, %v1543, %v1621
    %v1623 = vsel %vm1190, %v1562, %v1622
    %v1624 = vsel %vm1192, %v1581, %v1623
    %v1625 = vsel %vm1194, %v1600, %v1624
    %v1626 = vsel %vm1196, %v1619, %v1625
    %v1628 = vsel %vm1199, %v1626, 0.0
    %1629 = vadd.xlane.f32.xlu0 %v1628
    %v1630 = vpop.xlane.xlu0 %1629
    %v1632 = vlaneseq
    %v1633 = vshrl.u32 %v1632, 7
    %v1634 = vsub.s32 0, %v1633
    %v1635 = vrot.slane %v1630, %v1634
    %v1636 = vlaneseq
    %v1637 = vshrl.u32 %v1636, 7
    %v1638 = vsub.s32 1, %v1637
    %v1639 = vrot.slane %v1630, %v1638
    %v1640 = vlaneseq
    %v1641 = vshrl.u32 %v1640, 7
    %v1642 = vsub.s32 2, %v1641
    %v1643 = vrot.slane %v1630, %v1642
    %v1644 = vlaneseq
    %v1645 = vshrl.u32 %v1644, 7
    %v1646 = vsub.s32 3, %v1645
    %v1647 = vrot.slane %v1630, %v1646
    %v1648 = vlaneseq
    %v1649 = vshrl.u32 %v1648, 7
    %v1650 = vsub.s32 4, %v1649
    %v1651 = vrot.slane %v1630, %v1650
    %v1652 = vlaneseq
    %v1653 = vshrl.u32 %v1652, 7
    %v1654 = vsub.s32 5, %v1653
    %v1655 = vrot.slane %v1630, %v1654
    %v1656 = vlaneseq
    %v1657 = vshrl.u32 %v1656, 7
    %v1658 = vsub.s32 6, %v1657
    %v1659 = vrot.slane %v1630, %v1658
    %v1660 = vlaneseq
    %v1661 = vshrl.u32 %v1660, 7
    %v1662 = vsub.s32 7, %v1661
    %v1663 = vrot.slane %v1630, %v1662
    %v1672 = vrcp.pop %v1635
    %v1673 = vmul.f32 %v1277, %v1672
    %v1674 = vmul.f32 %v1279, %v1672
    %v1675 = vmul.f32 %v1281, %v1672
    %v1676 = vmul.f32 %v1283, %v1672
    %v1677 = vrcp.pop %v1639
    %v1678 = vmul.f32 %v1285, %v1677
    %v1679 = vmul.f32 %v1287, %v1677
    %v1680 = vmul.f32 %v1289, %v1677
    %v1681 = vmul.f32 %v1291, %v1677
    %v1682 = vrcp.pop %v1643
    %v1683 = vmul.f32 %v1293, %v1682
    %v1684 = vmul.f32 %v1295, %v1682
    %v1685 = vmul.f32 %v1297, %v1682
    %v1686 = vmul.f32 %v1299, %v1682
    %v1687 = vrcp.pop %v1647
    %v1688 = vmul.f32 %v1301, %v1687
    %v1689 = vmul.f32 %v1303, %v1687
    %v1690 = vmul.f32 %v1305, %v1687
    %v1691 = vmul.f32 %v1307, %v1687
    %v1692 = vrcp.pop %v1651
    %v1693 = vmul.f32 %v1309, %v1692
    %v1694 = vmul.f32 %v1311, %v1692
    %v1695 = vmul.f32 %v1313, %v1692
    %v1696 = vmul.f32 %v1315, %v1692
    %v1697 = vrcp.pop %v1655
    %v1698 = vmul.f32 %v1317, %v1697
    %v1699 = vmul.f32 %v1319, %v1697
    %v1700 = vmul.f32 %v1321, %v1697
    %v1701 = vmul.f32 %v1323, %v1697
    %v1702 = vrcp.pop %v1659
    %v1703 = vmul.f32 %v1325, %v1702
    %v1704 = vmul.f32 %v1327, %v1702
    %v1705 = vmul.f32 %v1329, %v1702
    %v1706 = vmul.f32 %v1331, %v1702
    %v1707 = vrcp.pop %v1663
    %v1708 = vmul.f32 %v1333, %v1707
    %v1709 = vmul.f32 %v1335, %v1707
    %v1710 = vmul.f32 %v1337, %v1707
    %v1711 = vmul.f32 %v1339, %v1707
    %1744 = vset.pattern.permute.xlu0 0
    %1745 = vperm.xlu0 %1744, %v1673
    %v1746 = vpop.permute.xlu0 %1745
    %1747 = vset.pattern.permute.xlu0 0
    %1748 = vperm.xlu0 %1747, %v1674
    %v1749 = vpop.permute.xlu0 %1748
    %1750 = vset.pattern.permute.xlu0 0
    %1751 = vperm.xlu0 %1750, %v1675
    %v1752 = vpop.permute.xlu0 %1751
    %1753 = vset.pattern.permute.xlu0 0
    %1754 = vperm.xlu0 %1753, %v1676
    %v1755 = vpop.permute.xlu0 %1754
    %1756 = vset.pattern.permute.xlu0 0
    %1757 = vperm.xlu0 %1756, %v1678
    %v1758 = vpop.permute.xlu0 %1757
    %1759 = vset.pattern.permute.xlu0 0
    %1760 = vperm.xlu0 %1759, %v1679
    %v1761 = vpop.permute.xlu0 %1760
    %1762 = vset.pattern.permute.xlu0 0
    %1763 = vperm.xlu0 %1762, %v1680
    %v1764 = vpop.permute.xlu0 %1763
    %1765 = vset.pattern.permute.xlu0 0
    %1766 = vperm.xlu0 %1765, %v1681
    %v1767 = vpop.permute.xlu0 %1766
    %1768 = vset.pattern.permute.xlu0 0
    %1769 = vperm.xlu0 %1768, %v1683
    %v1770 = vpop.permute.xlu0 %1769
    %1771 = vset.pattern.permute.xlu0 0
    %1772 = vperm.xlu0 %1771, %v1684
    %v1773 = vpop.permute.xlu0 %1772
    %1774 = vset.pattern.permute.xlu0 0
    %1775 = vperm.xlu0 %1774, %v1685
    %v1776 = vpop.permute.xlu0 %1775
    %1777 = vset.pattern.permute.xlu0 0
    %1778 = vperm.xlu0 %1777, %v1686
    %v1779 = vpop.permute.xlu0 %1778
    %1780 = vset.pattern.permute.xlu0 0
    %1781 = vperm.xlu0 %1780, %v1688
    %v1782 = vpop.permute.xlu0 %1781
    %1783 = vset.pattern.permute.xlu0 0
    %1784 = vperm.xlu0 %1783, %v1689
    %v1785 = vpop.permute.xlu0 %1784
    %1786 = vset.pattern.permute.xlu0 0
    %1787 = vperm.xlu0 %1786, %v1690
    %v1788 = vpop.permute.xlu0 %1787
    %1789 = vset.pattern.permute.xlu0 0
    %1790 = vperm.xlu0 %1789, %v1691
    %v1791 = vpop.permute.xlu0 %1790
    %1792 = vset.pattern.permute.xlu0 0
    %1793 = vperm.xlu0 %1792, %v1693
    %v1794 = vpop.permute.xlu0 %1793
    %1795 = vset.pattern.permute.xlu0 0
    %1796 = vperm.xlu0 %1795, %v1694
    %v1797 = vpop.permute.xlu0 %1796
    %1798 = vset.pattern.permute.xlu0 0
    %1799 = vperm.xlu0 %1798, %v1695
    %v1800 = vpop.permute.xlu0 %1799
    %1801 = vset.pattern.permute.xlu0 0
    %1802 = vperm.xlu0 %1801, %v1696
    %v1803 = vpop.permute.xlu0 %1802
    %1804 = vset.pattern.permute.xlu0 0
    %1805 = vperm.xlu0 %1804, %v1698
    %v1806 = vpop.permute.xlu0 %1805
    %1807 = vset.pattern.permute.xlu0 0
    %1808 = vperm.xlu0 %1807, %v1699
    %v1809 = vpop.permute.xlu0 %1808
    %1810 = vset.pattern.permute.xlu0 0
    %1811 = vperm.xlu0 %1810, %v1700
    %v1812 = vpop.permute.xlu0 %1811
    %1813 = vset.pattern.permute.xlu0 0
    %1814 = vperm.xlu0 %1813, %v1701
    %v1815 = vpop.permute.xlu0 %1814
    %1816 = vset.pattern.permute.xlu0 0
    %1817 = vperm.xlu0 %1816, %v1703
    %v1818 = vpop.permute.xlu0 %1817
    %1819 = vset.pattern.permute.xlu0 0
    %1820 = vperm.xlu0 %1819, %v1704
    %v1821 = vpop.permute.xlu0 %1820
    %1822 = vset.pattern.permute.xlu0 0
    %1823 = vperm.xlu0 %1822, %v1705
    %v1824 = vpop.permute.xlu0 %1823
    %1825 = vset.pattern.permute.xlu0 0
    %1826 = vperm.xlu0 %1825, %v1706
    %v1827 = vpop.permute.xlu0 %1826
    %1828 = vset.pattern.permute.xlu0 0
    %1829 = vperm.xlu0 %1828, %v1708
    %v1830 = vpop.permute.xlu0 %1829
    %1831 = vset.pattern.permute.xlu0 0
    %1832 = vperm.xlu0 %1831, %v1709
    %v1833 = vpop.permute.xlu0 %1832
    %1834 = vset.pattern.permute.xlu0 0
    %1835 = vperm.xlu0 %1834, %v1710
    %v1836 = vpop.permute.xlu0 %1835
    %1837 = vset.pattern.permute.xlu0 0
    %1838 = vperm.xlu0 %1837, %v1711
    %v1839 = vpop.permute.xlu0 %1838
    %v1840 = vlaneseq
    %v1841 = vshrl.u32 %v1840, 7
    %v1842 = vsub.s32 %v1025, %v1841
    %v1843 = vrot.slane %v1746, %v1842
    %v1844 = vlaneseq
    %v1845 = vshrl.u32 %v1844, 7
    %v1846 = vsub.s32 %v1030, %v1845
    %v1847 = vrot.slane %v1749, %v1846
    %v1848 = vsel %vm1035, %v1847, %v1843
    %v1849 = vlaneseq
    %v1850 = vshrl.u32 %v1849, 7
    %v1851 = vsub.s32 %v1037, %v1850
    %v1852 = vrot.slane %v1752, %v1851
    %v1853 = vsel %vm1042, %v1852, %v1848
    %v1854 = vlaneseq
    %v1855 = vshrl.u32 %v1854, 7
    %v1856 = vsub.s32 %v1044, %v1855
    %v1857 = vrot.slane %v1755, %v1856
    %v1858 = vsel %vm1049, %v1857, %v1853
    %v1859 = vlaneseq
    %v1860 = vshrl.u32 %v1859, 7
    %v1861 = vsub.s32 %v1025, %v1860
    %v1862 = vrot.slane %v1758, %v1861
    %v1863 = vlaneseq
    %v1864 = vshrl.u32 %v1863, 7
    %v1865 = vsub.s32 %v1030, %v1864
    %v1866 = vrot.slane %v1761, %v1865
    %v1867 = vsel %vm1035, %v1866, %v1862
    %v1868 = vlaneseq
    %v1869 = vshrl.u32 %v1868, 7
    %v1870 = vsub.s32 %v1037, %v1869
    %v1871 = vrot.slane %v1764, %v1870
    %v1872 = vsel %vm1042, %v1871, %v1867
    %v1873 = vlaneseq
    %v1874 = vshrl.u32 %v1873, 7
    %v1875 = vsub.s32 %v1044, %v1874
    %v1876 = vrot.slane %v1767, %v1875
    %v1877 = vsel %vm1049, %v1876, %v1872
    %v1878 = vlaneseq
    %v1879 = vshrl.u32 %v1878, 7
    %v1880 = vsub.s32 %v1025, %v1879
    %v1881 = vrot.slane %v1770, %v1880
    %v1882 = vlaneseq
    %v1883 = vshrl.u32 %v1882, 7
    %v1884 = vsub.s32 %v1030, %v1883
    %v1885 = vrot.slane %v1773, %v1884
    %v1886 = vsel %vm1035, %v1885, %v1881
    %v1887 = vlaneseq
    %v1888 = vshrl.u32 %v1887, 7
    %v1889 = vsub.s32 %v1037, %v1888
    %v1890 = vrot.slane %v1776, %v1889
    %v1891 = vsel %vm1042, %v1890, %v1886
    %v1892 = vlaneseq
    %v1893 = vshrl.u32 %v1892, 7
    %v1894 = vsub.s32 %v1044, %v1893
    %v1895 = vrot.slane %v1779, %v1894
    %v1896 = vsel %vm1049, %v1895, %v1891
    %v1897 = vlaneseq
    %v1898 = vshrl.u32 %v1897, 7
    %v1899 = vsub.s32 %v1025, %v1898
    %v1900 = vrot.slane %v1782, %v1899
    %v1901 = vlaneseq
    %v1902 = vshrl.u32 %v1901, 7
    %v1903 = vsub.s32 %v1030, %v1902
    %v1904 = vrot.slane %v1785, %v1903
    %v1905 = vsel %vm1035, %v1904, %v1900
    %v1906 = vlaneseq
    %v1907 = vshrl.u32 %v1906, 7
    %v1908 = vsub.s32 %v1037, %v1907
    %v1909 = vrot.slane %v1788, %v1908
    %v1910 = vsel %vm1042, %v1909, %v1905
    %v1911 = vlaneseq
    %v1912 = vshrl.u32 %v1911, 7
    %v1913 = vsub.s32 %v1044, %v1912
    %v1914 = vrot.slane %v1791, %v1913
    %v1915 = vsel %vm1049, %v1914, %v1910
    %v1916 = vlaneseq
    %v1917 = vshrl.u32 %v1916, 7
    %v1918 = vsub.s32 %v1025, %v1917
    %v1919 = vrot.slane %v1794, %v1918
    %v1920 = vlaneseq
    %v1921 = vshrl.u32 %v1920, 7
    %v1922 = vsub.s32 %v1030, %v1921
    %v1923 = vrot.slane %v1797, %v1922
    %v1924 = vsel %vm1035, %v1923, %v1919
    %v1925 = vlaneseq
    %v1926 = vshrl.u32 %v1925, 7
    %v1927 = vsub.s32 %v1037, %v1926
    %v1928 = vrot.slane %v1800, %v1927
    %v1929 = vsel %vm1042, %v1928, %v1924
    %v1930 = vlaneseq
    %v1931 = vshrl.u32 %v1930, 7
    %v1932 = vsub.s32 %v1044, %v1931
    %v1933 = vrot.slane %v1803, %v1932
    %v1934 = vsel %vm1049, %v1933, %v1929
    %v1935 = vlaneseq
    %v1936 = vshrl.u32 %v1935, 7
    %v1937 = vsub.s32 %v1025, %v1936
    %v1938 = vrot.slane %v1806, %v1937
    %v1939 = vlaneseq
    %v1940 = vshrl.u32 %v1939, 7
    %v1941 = vsub.s32 %v1030, %v1940
    %v1942 = vrot.slane %v1809, %v1941
    %v1943 = vsel %vm1035, %v1942, %v1938
    %v1944 = vlaneseq
    %v1945 = vshrl.u32 %v1944, 7
    %v1946 = vsub.s32 %v1037, %v1945
    %v1947 = vrot.slane %v1812, %v1946
    %v1948 = vsel %vm1042, %v1947, %v1943
    %v1949 = vlaneseq
    %v1950 = vshrl.u32 %v1949, 7
    %v1951 = vsub.s32 %v1044, %v1950
    %v1952 = vrot.slane %v1815, %v1951
    %v1953 = vsel %vm1049, %v1952, %v1948
    %v1954 = vlaneseq
    %v1955 = vshrl.u32 %v1954, 7
    %v1956 = vsub.s32 %v1025, %v1955
    %v1957 = vrot.slane %v1818, %v1956
    %v1958 = vlaneseq
    %v1959 = vshrl.u32 %v1958, 7
    %v1960 = vsub.s32 %v1030, %v1959
    %v1961 = vrot.slane %v1821, %v1960
    %v1962 = vsel %vm1035, %v1961, %v1957
    %v1963 = vlaneseq
    %v1964 = vshrl.u32 %v1963, 7
    %v1965 = vsub.s32 %v1037, %v1964
    %v1966 = vrot.slane %v1824, %v1965
    %v1967 = vsel %vm1042, %v1966, %v1962
    %v1968 = vlaneseq
    %v1969 = vshrl.u32 %v1968, 7
    %v1970 = vsub.s32 %v1044, %v1969
    %v1971 = vrot.slane %v1827, %v1970
    %v1972 = vsel %vm1049, %v1971, %v1967
    %v1973 = vlaneseq
    %v1974 = vshrl.u32 %v1973, 7
    %v1975 = vsub.s32 %v1025, %v1974
    %v1976 = vrot.slane %v1830, %v1975
    %v1977 = vlaneseq
    %v1978 = vshrl.u32 %v1977, 7
    %v1979 = vsub.s32 %v1030, %v1978
    %v1980 = vrot.slane %v1833, %v1979
    %v1981 = vsel %vm1035, %v1980, %v1976
    %v1982 = vlaneseq
    %v1983 = vshrl.u32 %v1982, 7
    %v1984 = vsub.s32 %v1037, %v1983
    %v1985 = vrot.slane %v1836, %v1984
    %v1986 = vsel %vm1042, %v1985, %v1981
    %v1987 = vlaneseq
    %v1988 = vshrl.u32 %v1987, 7
    %v1989 = vsub.s32 %v1044, %v1988
    %v1990 = vrot.slane %v1839, %v1989
    %v1991 = vsel %vm1049, %v1990, %v1986
    %v1992 = vsel %vm1184, %v1877, %v1858
    %v1993 = vsel %vm1186, %v1896, %v1992
    %v1994 = vsel %vm1188, %v1915, %v1993
    %v1995 = vsel %vm1190, %v1934, %v1994
    %v1996 = vsel %vm1192, %v1953, %v1995
    %v1997 = vsel %vm1194, %v1972, %v1996
    %v1998 = vsel %vm1196, %v1991, %v1997
    %2000 = vst.msk [vmem:[#allocation36] sm:$0xff] %vm1199, %v1998
    %2001 = vst.msk [vmem:[#allocation38] sm:$0xff] %vm1199, %v1197
    %v2002 = vsel %vm1199, %v1998, 0
    %vm2004 = vcmask 1045504
    %v2005 = vsel %vm2004, %v561, 0
    %2007 = vmatprep.subr.mxu0 0.0
    %2008 = vmatpush1.msra.mxu0 0.0
    %2009 = vmatprep.subr.mxu0 0.0
    %2010 = vmatpush1.msra.mxu0 0.0
    %2011 = vmatprep.subr.mxu0 0.0
    %2012 = vmatpush1.msra.mxu0 0.0
    %2013 = vmatprep.subr.mxu0 0.0
    %2014 = vmatpush1.msra.mxu0 0.0
    %2015 = vmatprep.subr.mxu0 0.0
    %2016 = vmatpush1.msra.mxu0 0.0
    %2017 = vmatprep.subr.mxu0 0.0
    %2018 = vmatpush1.msra.mxu0 0.0
    %2019 = vmatprep.subr.mxu0 0.0
    %2020 = vmatpush1.msra.mxu0 0.0
    %2021 = vmatprep.subr.mxu0 0.0
    %2022 = vmatpush1.msra.mxu0 0.0
    %2023 = vmatprep.subr.mxu0 0.0
    %2024 = vmatpush1.msra.mxu0 0.0
    %2025 = vmatprep.subr.mxu0 0.0
    %2026 = vmatpush1.msra.mxu0 0.0
    %2027 = vmatprep.subr.mxu0 0.0
    %2028 = vmatpush1.msra.mxu0 0.0
    %2029 = vmatprep.subr.mxu0 0.0
    %2030 = vmatpush1.msra.mxu0 0.0
    %2031 = vmatprep.subr.mxu0 0.0
    %2032 = vmatpush1.msra.mxu0 %v2005
    %2033 = vmatprep.subr.mxu0 0.0
    %2034 = vmatpush1.msra.mxu0 %v560
    %2035 = vmatprep.subr.mxu0 0.0
    %2036 = vmatpush1.msra.mxu0 %v559
    %2037 = vmatprep.subr.mxu0 0.0
    %2038 = vmatpush1.msra.mxu0 %v558
    %2039 = vmatprep.subr.mxu0 0.0
    %2040 = vmatpush2.msra.mxu0 0.0
    %2041 = vmatprep.subr.mxu0 0.0
    %2042 = vmatpush2.msra.mxu0 0.0
    %2043 = vmatprep.subr.mxu0 0.0
    %2044 = vmatpush2.msra.mxu0 0.0
    %2045 = vmatprep.subr.mxu0 0.0
    %2046 = vmatpush2.msra.mxu0 0.0
    %2047 = vmatprep.subr.mxu0 0.0
    %2048 = vmatpush2.msra.mxu0 0.0
    %2049 = vmatprep.subr.mxu0 0.0
    %2050 = vmatpush2.msra.mxu0 0.0
    %2051 = vmatprep.subr.mxu0 0.0
    %2052 = vmatpush2.msra.mxu0 0.0
    %2053 = vmatprep.subr.mxu0 0.0
    %2054 = vmatpush2.msra.mxu0 0.0
    %2055 = vmatprep.subr.mxu0 0.0
    %2056 = vmatpush2.msra.mxu0 0.0
    %2057 = vmatprep.subr.mxu0 0.0
    %2058 = vmatpush2.msra.mxu0 0.0
    %2059 = vmatprep.subr.mxu0 0.0
    %2060 = vmatpush2.msra.mxu0 0.0
    %2061 = vmatprep.subr.mxu0 0.0
    %2062 = vmatpush2.msra.mxu0 0.0
    %2063 = vmatprep.subr.mxu0 0.0
    %2064 = vmatpush2.msra.mxu0 0.0
    %2065 = vmatprep.subr.mxu0 0.0
    %2066 = vmatpush2.msra.mxu0 0.0
    %2067 = vmatprep.subr.mxu0 0.0
    %2068 = vmatpush2.msra.mxu0 0.0
    %2069 = vmatprep.subr.mxu0 0.0
    %2070 = vmatpush2.msra.mxu0 0.0
    %2071 = vmatprep.mubr.f32.mxu0 0.0
    %2072 = vmatmul.mubr.f32.gmra.mxu0 %v2002
    %v2073 = vpop.f32.mrf.mxu0
    %v2074 = vadd.f32 0.0, %v2073
    %v2075 = vpop.f32.mrf.mxu0
    %2076 = vdwg.mxu0
    %v2077 = vld [vmem:[%s21] sm:$0xff]
    %v2078 = vld [vmem:[%s21 + $0x8] sm:$0xff]
    %v2079 = vld [vmem:[%s21 + $0x10] sm:$0xff]
    %v2080 = vld [vmem:[%s21 + $0x18] sm:$0x3]
    %v2082 = vsel %vm1199, %v2077, 0
    %v2085 = vsel %vm1199, %v2078, 0
    %v2088 = vsel %vm1199, %v2079, 0
    %v2091 = vsel %vm1199, %v2080, 0
    %2093 = vmatprep.subr.mxu0 0.0
    %2094 = vmatpush1.msra.mxu0 0.0
    %2095 = vmatprep.subr.mxu0 0.0
    %2096 = vmatpush1.msra.mxu0 0.0
    %2097 = vmatprep.subr.mxu0 0.0
    %2098 = vmatpush1.msra.mxu0 0.0
    %2099 = vmatprep.subr.mxu0 0.0
    %2100 = vmatpush1.msra.mxu0 0.0
    %2101 = vmatprep.subr.mxu0 0.0
    %2102 = vmatpush1.msra.mxu0 0.0
    %2103 = vmatprep.subr.mxu0 0.0
    %2104 = vmatpush1.msra.mxu0 0.0
    %2105 = vmatprep.subr.mxu0 0.0
    %2106 = vmatpush1.msra.mxu0 0.0
    %2107 = vmatprep.subr.mxu0 0.0
    %2108 = vmatpush1.msra.mxu0 0.0
    %2109 = vmatprep.subr.mxu0 0.0
    %2110 = vmatpush1.msra.mxu0 0.0
    %2111 = vmatprep.subr.mxu0 0.0
    %2112 = vmatpush1.msra.mxu0 0.0
    %2113 = vmatprep.subr.mxu0 0.0
    %2114 = vmatpush1.msra.mxu0 0.0
    %2115 = vmatprep.subr.mxu0 0.0
    %2116 = vmatpush1.msra.mxu0 0.0
    %2117 = vmatprep.subr.mxu0 0.0
    %2118 = vmatpush1.msra.mxu0 %v2005
    %2119 = vmatprep.subr.mxu0 0.0
    %2120 = vmatpush1.msra.mxu0 %v560
    %2121 = vmatprep.subr.mxu0 0.0
    %2122 = vmatpush1.msra.mxu0 %v559
    %2123 = vmatprep.subr.mxu0 0.0
    %2124 = vmatpush1.msra.mxu0 %v558
    %2125 = vmatprep.subr.mxu0 0.0
    %2126 = vmatpush2.msra.mxu0 0.0
    %2127 = vmatprep.subr.mxu0 0.0
    %2128 = vmatpush2.msra.mxu0 0.0
    %2129 = vmatprep.subr.mxu0 0.0
    %2130 = vmatpush2.msra.mxu0 0.0
    %2131 = vmatprep.subr.mxu0 0.0
    %2132 = vmatpush2.msra.mxu0 0.0
    %2133 = vmatprep.subr.mxu0 0.0
    %2134 = vmatpush2.msra.mxu0 0.0
    %2135 = vmatprep.subr.mxu0 0.0
    %2136 = vmatpush2.msra.mxu0 0.0
    %2137 = vmatprep.subr.mxu0 0.0
    %2138 = vmatpush2.msra.mxu0 0.0
    %2139 = vmatprep.subr.mxu0 0.0
    %2140 = vmatpush2.msra.mxu0 0.0
    %2141 = vmatprep.subr.mxu0 0.0
    %2142 = vmatpush2.msra.mxu0 0.0
    %2143 = vmatprep.subr.mxu0 0.0
    %2144 = vmatpush2.msra.mxu0 0.0
    %2145 = vmatprep.subr.mxu0 0.0
    %2146 = vmatpush2.msra.mxu0 0.0
    %2147 = vmatprep.subr.mxu0 0.0
    %2148 = vmatpush2.msra.mxu0 0.0
    %2149 = vmatprep.subr.mxu0 0.0
    %2150 = vmatpush2.msra.mxu0 0.0
    %2151 = vmatprep.subr.mxu0 0.0
    %2152 = vmatpush2.msra.mxu0 0.0
    %2153 = vmatprep.subr.mxu0 0.0
    %2154 = vmatpush2.msra.mxu0 0.0
    %2155 = vmatprep.subr.mxu0 0.0
    %2156 = vmatpush2.msra.mxu0 0.0
    %2157 = vmatprep.mubr.f32.mxu0 0.0
    %2158 = vmatmul.mubr.f32.gmra.mxu0 %v2082
    %v2159 = vpop.f32.mrf.mxu0
    %v2160 = vadd.f32 0.0, %v2159
    %v2161 = vpop.f32.mrf.mxu0
    %2162 = vmatprep.mubr.f32.mxu0 0.0
    %2163 = vmatmul.mubr.f32.gmra.mxu0 %v2085
    %v2164 = vpop.f32.mrf.mxu0
    %v2165 = vadd.f32 0.0, %v2164
    %v2166 = vpop.f32.mrf.mxu0
    %2167 = vmatprep.mubr.f32.mxu0 0.0
    %2168 = vmatmul.mubr.f32.gmra.mxu0 %v2088
    %v2169 = vpop.f32.mrf.mxu0
    %v2170 = vadd.f32 0.0, %v2169
    %v2171 = vpop.f32.mrf.mxu0
    %2172 = vmatprep.mubr.f32.mxu0 0.0
    %2173 = vmatmul.mubr.f32.gmra.mxu0 %v2091
    %v2174 = vpop.f32.mrf.mxu0
    %v2175 = vadd.f32 0.0, %v2174
    %v2176 = vpop.f32.mrf.mxu0
    %2177 = vdwg.mxu0
    %v2179 = vsel %vm391, %v550, 0
    %v2182 = vsel %vm391, %v2160, 0
    %v2185 = vsel %vm391, %v2165, 0
    %v2188 = vsel %vm391, %v2170, 0
    %v2191 = vsel %vm391, %v2175, 0
    %2193 = vmatprep.subr.mxu0 0.0
    %2194 = vmatpush1.xpose.msra.mxu0 0.0
    %2195 = vmatprep.subr.mxu0 0.0
    %2196 = vmatpush1.xpose.msra.mxu0 0.0
    %2197 = vmatprep.subr.mxu0 0.0
    %2198 = vmatpush1.xpose.msra.mxu0 0.0
    %2199 = vmatprep.subr.mxu0 0.0
    %2200 = vmatpush1.xpose.msra.mxu0 0.0
    %2201 = vmatprep.subr.mxu0 0.0
    %2202 = vmatpush1.xpose.msra.mxu0 0.0
    %2203 = vmatprep.subr.mxu0 0.0
    %2204 = vmatpush1.xpose.msra.mxu0 0.0
    %2205 = vmatprep.subr.mxu0 0.0
    %2206 = vmatpush1.xpose.msra.mxu0 0.0
    %2207 = vmatprep.subr.mxu0 0.0
    %2208 = vmatpush1.xpose.msra.mxu0 0.0
    %2209 = vmatprep.subr.mxu0 0.0
    %2210 = vmatpush1.xpose.msra.mxu0 0.0
    %2211 = vmatprep.subr.mxu0 0.0
    %2212 = vmatpush1.xpose.msra.mxu0 0.0
    %2213 = vmatprep.subr.mxu0 0.0
    %2214 = vmatpush1.xpose.msra.mxu0 0.0
    %2215 = vmatprep.subr.mxu0 0.0
    %2216 = vmatpush1.xpose.msra.mxu0 0.0
    %2217 = vmatprep.subr.mxu0 0.0
    %2218 = vmatpush1.xpose.msra.mxu0 %v2191
    %2219 = vmatprep.subr.mxu0 0.0
    %2220 = vmatpush1.xpose.msra.mxu0 %v2188
    %2221 = vmatprep.subr.mxu0 0.0
    %2222 = vmatpush1.xpose.msra.mxu0 %v2185
    %2223 = vmatprep.subr.mxu0 0.0
    %2224 = vmatpush1.xpose.msra.mxu0 %v2182
    %2225 = vmatprep.subr.mxu0 0.0
    %2226 = vmatpush2.xpose.msra.mxu0 0.0
    %2227 = vmatprep.subr.mxu0 0.0
    %2228 = vmatpush2.xpose.msra.mxu0 0.0
    %2229 = vmatprep.subr.mxu0 0.0
    %2230 = vmatpush2.xpose.msra.mxu0 0.0
    %2231 = vmatprep.subr.mxu0 0.0
    %2232 = vmatpush2.xpose.msra.mxu0 0.0
    %2233 = vmatprep.subr.mxu0 0.0
    %2234 = vmatpush2.xpose.msra.mxu0 0.0
    %2235 = vmatprep.subr.mxu0 0.0
    %2236 = vmatpush2.xpose.msra.mxu0 0.0
    %2237 = vmatprep.subr.mxu0 0.0
    %2238 = vmatpush2.xpose.msra.mxu0 0.0
    %2239 = vmatprep.subr.mxu0 0.0
    %2240 = vmatpush2.xpose.msra.mxu0 0.0
    %2241 = vmatprep.subr.mxu0 0.0
    %2242 = vmatpush2.xpose.msra.mxu0 0.0
    %2243 = vmatprep.subr.mxu0 0.0
    %2244 = vmatpush2.xpose.msra.mxu0 0.0
    %2245 = vmatprep.subr.mxu0 0.0
    %2246 = vmatpush2.xpose.msra.mxu0 0.0
    %2247 = vmatprep.subr.mxu0 0.0
    %2248 = vmatpush2.xpose.msra.mxu0 0.0
    %2249 = vmatprep.subr.mxu0 0.0
    %2250 = vmatpush2.xpose.msra.mxu0 0.0
    %2251 = vmatprep.subr.mxu0 0.0
    %2252 = vmatpush2.xpose.msra.mxu0 0.0
    %2253 = vmatprep.subr.mxu0 0.0
    %2254 = vmatpush2.xpose.msra.mxu0 0.0
    %2255 = vmatprep.subr.mxu0 0.0
    %2256 = vmatpush2.xpose.msra.mxu0 0.0
    %2257 = vmatprep.mubr.f32.mxu0 0.0
    %2258 = vmatmul.mubr.f32.gmra.mxu0 %v2179
    %v2259 = vpop.f32.mrf.mxu0
    %v2260 = vadd.f32 0.0, %v2259
    %v2261 = vpop.f32.mrf.mxu0
    %2262 = vdwg.mxu0
    %v2263 = vmul.f32 %v2260, 0.1
    %vm2264 = vcmask 211968
    %v2265 = vsel %vm2264, %v2263, -inf
    %2266 = vmax.xlane.f32.xlu0 %v2265
    %v2267 = vpop.xlane.xlu0 %2266
    %v2268 = vsub.f32 %v2263, %v2267
    %v2269 = vmul.f32 %v2268, 1.442695
    %v2270 = vpow.pop %v2269
    %v2271 = vld [vmem:[%s23] sm:$0xff]
    %v2272 = vld [vmem:[%s23 + $0x8] sm:$0xff]
    %v2273 = vld [vmem:[%s23 + $0x10] sm:$0xff]
    %v2274 = vld [vmem:[%s23 + $0x18] sm:$0x3]
    %v2276 = vsel %vm2264, %v2270, 0
    %vm2278 = vcmask 1041408
    %v2280 = vsel %vm2278, %v2274, 0
    %2282 = vmatprep.subr.mxu0 0.0
    %2283 = vmatpush1.msra.mxu0 0.0
    %2284 = vmatprep.subr.mxu0 0.0
    %2285 = vmatpush1.msra.mxu0 0.0
    %2286 = vmatprep.subr.mxu0 0.0
    %2287 = vmatpush1.msra.mxu0 0.0
    %2288 = vmatprep.subr.mxu0 0.0
    %2289 = vmatpush1.msra.mxu0 0.0
    %2290 = vmatprep.subr.mxu0 0.0
    %2291 = vmatpush1.msra.mxu0 0.0
    %2292 = vmatprep.subr.mxu0 0.0
    %2293 = vmatpush1.msra.mxu0 0.0
    %2294 = vmatprep.subr.mxu0 0.0
    %2295 = vmatpush1.msra.mxu0 0.0
    %2296 = vmatprep.subr.mxu0 0.0
    %2297 = vmatpush1.msra.mxu0 0.0
    %2298 = vmatprep.subr.mxu0 0.0
    %2299 = vmatpush1.msra.mxu0 0.0
    %2300 = vmatprep.subr.mxu0 0.0
    %2301 = vmatpush1.msra.mxu0 0.0
    %2302 = vmatprep.subr.mxu0 0.0
    %2303 = vmatpush1.msra.mxu0 0.0
    %2304 = vmatprep.subr.mxu0 0.0
    %2305 = vmatpush1.msra.mxu0 0.0
    %2306 = vmatprep.subr.mxu0 0.0
    %2307 = vmatpush1.msra.mxu0 %v2280
    %2308 = vmatprep.subr.mxu0 0.0
    %2309 = vmatpush1.msra.mxu0 %v2273
    %2310 = vmatprep.subr.mxu0 0.0
    %2311 = vmatpush1.msra.mxu0 %v2272
    %2312 = vmatprep.subr.mxu0 0.0
    %2313 = vmatpush1.msra.mxu0 %v2271
    %2314 = vmatprep.subr.mxu0 0.0
    %2315 = vmatpush2.msra.mxu0 0.0
    %2316 = vmatprep.subr.mxu0 0.0
    %2317 = vmatpush2.msra.mxu0 0.0
    %2318 = vmatprep.subr.mxu0 0.0
    %2319 = vmatpush2.msra.mxu0 0.0
    %2320 = vmatprep.subr.mxu0 0.0
    %2321 = vmatpush2.msra.mxu0 0.0
    %2322 = vmatprep.subr.mxu0 0.0
    %2323 = vmatpush2.msra.mxu0 0.0
    %2324 = vmatprep.subr.mxu0 0.0
    %2325 = vmatpush2.msra.mxu0 0.0
    %2326 = vmatprep.subr.mxu0 0.0
    %2327 = vmatpush2.msra.mxu0 0.0
    %2328 = vmatprep.subr.mxu0 0.0
    %2329 = vmatpush2.msra.mxu0 0.0
    %2330 = vmatprep.subr.mxu0 0.0
    %2331 = vmatpush2.msra.mxu0 0.0
    %2332 = vmatprep.subr.mxu0 0.0
    %2333 = vmatpush2.msra.mxu0 0.0
    %2334 = vmatprep.subr.mxu0 0.0
    %2335 = vmatpush2.msra.mxu0 0.0
    %2336 = vmatprep.subr.mxu0 0.0
    %2337 = vmatpush2.msra.mxu0 0.0
    %2338 = vmatprep.subr.mxu0 0.0
    %2339 = vmatpush2.msra.mxu0 0.0
    %2340 = vmatprep.subr.mxu0 0.0
    %2341 = vmatpush2.msra.mxu0 0.0
    %2342 = vmatprep.subr.mxu0 0.0
    %2343 = vmatpush2.msra.mxu0 0.0
    %2344 = vmatprep.subr.mxu0 0.0
    %2345 = vmatpush2.msra.mxu0 0.0
    %2346 = vmatprep.mubr.f32.mxu0 0.0
    %2347 = vmatmul.mubr.f32.gmra.mxu0 %v2276
    %v2348 = vpop.f32.mrf.mxu0
    %v2349 = vadd.f32 0.0, %v2348
    %v2350 = vpop.f32.mrf.mxu0
    %2351 = vdwg.mxu0
    %v2352 = vrcp.pop %v2349
    %v2353 = vmul.f32 %v2270, %v2352
    %v2355 = vsel %vm2264, %v2353, 0
    %v2357 = vsel %vm2278, %v2175, 0
    %2359 = vmatprep.subr.mxu0 0.0
    %2360 = vmatpush1.msra.mxu0 0.0
    %2361 = vmatprep.subr.mxu0 0.0
    %2362 = vmatpush1.msra.mxu0 0.0
    %2363 = vmatprep.subr.mxu0 0.0
    %2364 = vmatpush1.msra.mxu0 0.0
    %2365 = vmatprep.subr.mxu0 0.0
    %2366 = vmatpush1.msra.mxu0 0.0
    %2367 = vmatprep.subr.mxu0 0.0
    %2368 = vmatpush1.msra.mxu0 0.0
    %2369 = vmatprep.subr.mxu0 0.0
    %2370 = vmatpush1.msra.mxu0 0.0
    %2371 = vmatprep.subr.mxu0 0.0
    %2372 = vmatpush1.msra.mxu0 0.0
    %2373 = vmatprep.subr.mxu0 0.0
    %2374 = vmatpush1.msra.mxu0 0.0
    %2375 = vmatprep.subr.mxu0 0.0
    %2376 = vmatpush1.msra.mxu0 0.0
    %2377 = vmatprep.subr.mxu0 0.0
    %2378 = vmatpush1.msra.mxu0 0.0
    %2379 = vmatprep.subr.mxu0 0.0
    %2380 = vmatpush1.msra.mxu0 0.0
    %2381 = vmatprep.subr.mxu0 0.0
    %2382 = vmatpush1.msra.mxu0 0.0
    %2383 = vmatprep.subr.mxu0 0.0
    %2384 = vmatpush1.msra.mxu0 %v2357
    %2385 = vmatprep.subr.mxu0 0.0
    %2386 = vmatpush1.msra.mxu0 %v2170
    %2387 = vmatprep.subr.mxu0 0.0
    %2388 = vmatpush1.msra.mxu0 %v2165
    %2389 = vmatprep.subr.mxu0 0.0
    %2390 = vmatpush1.msra.mxu0 %v2160
    %2391 = vmatprep.subr.mxu0 0.0
    %2392 = vmatpush2.msra.mxu0 0.0
    %2393 = vmatprep.subr.mxu0 0.0
    %2394 = vmatpush2.msra.mxu0 0.0
    %2395 = vmatprep.subr.mxu0 0.0
    %2396 = vmatpush2.msra.mxu0 0.0
    %2397 = vmatprep.subr.mxu0 0.0
    %2398 = vmatpush2.msra.mxu0 0.0
    %2399 = vmatprep.subr.mxu0 0.0
    %2400 = vmatpush2.msra.mxu0 0.0
    %2401 = vmatprep.subr.mxu0 0.0
    %2402 = vmatpush2.msra.mxu0 0.0
    %2403 = vmatprep.subr.mxu0 0.0
    %2404 = vmatpush2.msra.mxu0 0.0
    %2405 = vmatprep.subr.mxu0 0.0
    %2406 = vmatpush2.msra.mxu0 0.0
    %2407 = vmatprep.subr.mxu0 0.0
    %2408 = vmatpush2.msra.mxu0 0.0
    %2409 = vmatprep.subr.mxu0 0.0
    %2410 = vmatpush2.msra.mxu0 0.0
    %2411 = vmatprep.subr.mxu0 0.0
    %2412 = vmatpush2.msra.mxu0 0.0
    %2413 = vmatprep.subr.mxu0 0.0
    %2414 = vmatpush2.msra.mxu0 0.0
    %2415 = vmatprep.subr.mxu0 0.0
    %2416 = vmatpush2.msra.mxu0 0.0
    %2417 = vmatprep.subr.mxu0 0.0
    %2418 = vmatpush2.msra.mxu0 0.0
    %2419 = vmatprep.subr.mxu0 0.0
    %2420 = vmatpush2.msra.mxu0 0.0
    %2421 = vmatprep.subr.mxu0 0.0
    %2422 = vmatpush2.msra.mxu0 0.0
    %2423 = vmatprep.mubr.f32.mxu0 0.0
    %2424 = vmatmul.mubr.f32.gmra.mxu0 %v2355
    %v2425 = vpop.f32.mrf.mxu0
    %v2426 = vadd.f32 0.0, %v2425
    %v2427 = vpop.f32.mrf.mxu0
    %2428 = vdwg.mxu0
    %s2429 = scalar_lea.vmem %s11, 32
    %v2430 = vld [vmem:[%s2429] sm:$0xff]
    %v2431 = vld [vmem:[%s2429 + $0x8] sm:$0xff]
    %v2432 = vld [vmem:[%s2429 + $0x10] sm:$0xff]
    %v2433 = vld [vmem:[%s2429 + $0x18] sm:$0x3f]
    %v2434 = vld [vmem:[%s15] sm:$0xff]
    %v2435 = vld [vmem:[%s15 + $0x8] sm:$0xff]
    %v2436 = vld [vmem:[%s15 + $0x10] sm:$0xff]
    %v2437 = vld [vmem:[%s15 + $0x18] sm:$0xff]
    %v2439 = vsel %vm391, %v2430, 0
    %v2442 = vsel %vm391, %v2431, 0
    %v2445 = vsel %vm391, %v2432, 0
    %v2448 = vsel %vm391, %v2433, 0
    %2450 = vmatprep.subr.mxu0 0.0
    %2451 = vmatpush1.msra.mxu0 0.0
    %2452 = vmatprep.subr.mxu0 0.0
    %2453 = vmatpush1.msra.mxu0 0.0
    %2454 = vmatprep.subr.mxu0 0.0
    %2455 = vmatpush1.msra.mxu0 0.0
    %2456 = vmatprep.subr.mxu0 0.0
    %2457 = vmatpush1.msra.mxu0 0.0
    %2458 = vmatprep.subr.mxu0 0.0
    %2459 = vmatpush1.msra.mxu0 0.0
    %2460 = vmatprep.subr.mxu0 0.0
    %2461 = vmatpush1.msra.mxu0 0.0
    %2462 = vmatprep.subr.mxu0 0.0
    %2463 = vmatpush1.msra.mxu0 0.0
    %2464 = vmatprep.subr.mxu0 0.0
    %2465 = vmatpush1.msra.mxu0 0.0
    %2466 = vmatprep.subr.mxu0 0.0
    %2467 = vmatpush1.msra.mxu0 0.0
    %2468 = vmatprep.subr.mxu0 0.0
    %2469 = vmatpush1.msra.mxu0 0.0
    %2470 = vmatprep.subr.mxu0 0.0
    %2471 = vmatpush1.msra.mxu0 0.0
    %2472 = vmatprep.subr.mxu0 0.0
    %2473 = vmatpush1.msra.mxu0 0.0
    %2474 = vmatprep.subr.mxu0 0.0
    %2475 = vmatpush1.msra.mxu0 %v2437
    %2476 = vmatprep.subr.mxu0 0.0
    %2477 = vmatpush1.msra.mxu0 %v2436
    %2478 = vmatprep.subr.mxu0 0.0
    %2479 = vmatpush1.msra.mxu0 %v2435
    %2480 = vmatprep.subr.mxu0 0.0
    %2481 = vmatpush1.msra.mxu0 %v2434
    %2482 = vmatprep.subr.mxu0 0.0
    %2483 = vmatpush2.msra.mxu0 0.0
    %2484 = vmatprep.subr.mxu0 0.0
    %2485 = vmatpush2.msra.mxu0 0.0
    %2486 = vmatprep.subr.mxu0 0.0
    %2487 = vmatpush2.msra.mxu0 0.0
    %2488 = vmatprep.subr.mxu0 0.0
    %2489 = vmatpush2.msra.mxu0 0.0
    %2490 = vmatprep.subr.mxu0 0.0
    %2491 = vmatpush2.msra.mxu0 0.0
    %2492 = vmatprep.subr.mxu0 0.0
    %2493 = vmatpush2.msra.mxu0 0.0
    %2494 = vmatprep.subr.mxu0 0.0
    %2495 = vmatpush2.msra.mxu0 0.0
    %2496 = vmatprep.subr.mxu0 0.0
    %2497 = vmatpush2.msra.mxu0 0.0
    %2498 = vmatprep.subr.mxu0 0.0
    %2499 = vmatpush2.msra.mxu0 0.0
    %2500 = vmatprep.subr.mxu0 0.0
    %2501 = vmatpush2.msra.mxu0 0.0
    %2502 = vmatprep.subr.mxu0 0.0
    %2503 = vmatpush2.msra.mxu0 0.0
    %2504 = vmatprep.subr.mxu0 0.0
    %2505 = vmatpush2.msra.mxu0 0.0
    %2506 = vmatprep.subr.mxu0 0.0
    %2507 = vmatpush2.msra.mxu0 0.0
    %2508 = vmatprep.subr.mxu0 0.0
    %2509 = vmatpush2.msra.mxu0 0.0
    %2510 = vmatprep.subr.mxu0 0.0
    %2511 = vmatpush2.msra.mxu0 0.0
    %2512 = vmatprep.subr.mxu0 0.0
    %2513 = vmatpush2.msra.mxu0 0.0
    %2514 = vmatprep.mubr.f32.mxu0 0.0
    %2515 = vmatmul.mubr.f32.gmra.mxu0 %v2439
    %v2516 = vpop.f32.mrf.mxu0
    %v2517 = vadd.f32 0.0, %v2516
    %v2518 = vpop.f32.mrf.mxu0
    %2519 = vmatprep.mubr.f32.mxu0 0.0
    %2520 = vmatmul.mubr.f32.gmra.mxu0 %v2442
    %v2521 = vpop.f32.mrf.mxu0
    %v2522 = vadd.f32 0.0, %v2521
    %v2523 = vpop.f32.mrf.mxu0
    %2524 = vmatprep.mubr.f32.mxu0 0.0
    %2525 = vmatmul.mubr.f32.gmra.mxu0 %v2445
    %v2526 = vpop.f32.mrf.mxu0
    %v2527 = vadd.f32 0.0, %v2526
    %v2528 = vpop.f32.mrf.mxu0
    %2529 = vmatprep.mubr.f32.mxu0 0.0
    %2530 = vmatmul.mubr.f32.gmra.mxu0 %v2448
    %v2531 = vpop.f32.mrf.mxu0
    %v2532 = vadd.f32 0.0, %v2531
    %v2533 = vpop.f32.mrf.mxu0
    %2534 = vdwg.mxu0
    %v2536 = vcombine.high %v470, %v470
    %v2538 = vunpack.c.l.s4 1966171168
    %v2539 = vunpack.c.0.s8 %v2538
    %v2540 = vlaneseq
    %v2541 = vshrl.u32 %v2540, 7
    %v2542 = vsub.s32 %v2539, %v2541
    %v2543 = vrot.slane %v470, %v2542
    %v2545 = vunpack.c.l.s4 1966171168
    %v2546 = vunpack.c.0.s8 %v2545
    %v2547 = vlaneseq
    %v2548 = vshrl.u32 %v2547, 7
    %v2549 = vsub.s32 %v2546, %v2548
    %v2550 = vrot.slane %v2536, %v2549
    %v2551 = vcombine.high %v2543, %v2543
    %v2552 = vcombine.high %v2550, %v2550
    %v2554 = vunpack.c.l.s4 1966171168
    %v2555 = vunpack.c.0.s8 %v2554
    %v2556 = vlaneseq
    %v2557 = vshrl.u32 %v2556, 7
    %v2558 = vsub.s32 %v2555, %v2557
    %v2559 = vrot.slane %v2543, %v2558
    %v2561 = vunpack.c.l.s4 1966171168
    %v2562 = vunpack.c.0.s8 %v2561
    %v2563 = vlaneseq
    %v2564 = vshrl.u32 %v2563, 7
    %v2565 = vsub.s32 %v2562, %v2564
    %v2566 = vrot.slane %v2550, %v2565
    %v2568 = vunpack.c.l.s4 1966171168
    %v2569 = vunpack.c.0.s8 %v2568
    %v2570 = vlaneseq
    %v2571 = vshrl.u32 %v2570, 7
    %v2572 = vsub.s32 %v2569, %v2571
    %v2573 = vrot.slane %v2551, %v2572
    %v2575 = vunpack.c.l.s4 1966171168
    %v2576 = vunpack.c.0.s8 %v2575
    %v2577 = vlaneseq
    %v2578 = vshrl.u32 %v2577, 7
    %v2579 = vsub.s32 %v2576, %v2578
    %v2580 = vrot.slane %v2552, %v2579
    %v2581 = vcombine.high %v2559, %v2559
    %v2582 = vcombine.high %v2566, %v2566
    %v2583 = vcombine.high %v2573, %v2573
    %v2584 = vcombine.high %v2580, %v2580
    %v2585 = vlaneseq
    %v2586 = vshrl.u32 %v2585, 7
    %v2587 = vsub.s32 0, %v2586
    %v2588 = vrot.slane %v2559, %v2587
    %v2589 = vlaneseq
    %v2590 = vshrl.u32 %v2589, 7
    %v2591 = vsub.s32 0, %v2590
    %v2592 = vrot.slane %v2573, %v2591
    %v2593 = vlaneseq
    %v2594 = vshrl.u32 %v2593, 7
    %v2595 = vsub.s32 0, %v2594
    %v2596 = vrot.slane %v2581, %v2595
    %v2597 = vlaneseq
    %v2598 = vshrl.u32 %v2597, 7
    %v2599 = vsub.s32 0, %v2598
    %v2600 = vrot.slane %v2583, %v2599
    %v2601 = vlaneseq
    %v2602 = vshrl.u32 %v2601, 7
    %v2603 = vsub.s32 0, %v2602
    %v2604 = vrot.slane %v2566, %v2603
    %v2605 = vlaneseq
    %v2606 = vshrl.u32 %v2605, 7
    %v2607 = vsub.s32 0, %v2606
    %v2608 = vrot.slane %v2580, %v2607
    %v2609 = vlaneseq
    %v2610 = vshrl.u32 %v2609, 7
    %v2611 = vsub.s32 0, %v2610
    %v2612 = vrot.slane %v2582, %v2611
    %v2613 = vlaneseq
    %v2614 = vshrl.u32 %v2613, 7
    %v2615 = vsub.s32 0, %v2614
    %v2616 = vrot.slane %v2584, %v2615
    %v2625 = vadd.f32 %v2588, %v2517
    %v2626 = vadd.f32 %v2588, %v2522
    %v2627 = vadd.f32 %v2588, %v2527
    %v2628 = vadd.f32 %v2588, %v2532
    %v2629 = vadd.f32 %v2592, %v2517
    %v2630 = vadd.f32 %v2592, %v2522
    %v2631 = vadd.f32 %v2592, %v2527
    %v2632 = vadd.f32 %v2592, %v2532
    %v2633 = vadd.f32 %v2596, %v2517
    %v2634 = vadd.f32 %v2596, %v2522
    %v2635 = vadd.f32 %v2596, %v2527
    %v2636 = vadd.f32 %v2596, %v2532
    %v2637 = vadd.f32 %v2600, %v2517
    %v2638 = vadd.f32 %v2600, %v2522
    %v2639 = vadd.f32 %v2600, %v2527
    %v2640 = vadd.f32 %v2600, %v2532
    %v2641 = vadd.f32 %v2604, %v2517
    %v2642 = vadd.f32 %v2604, %v2522
    %v2643 = vadd.f32 %v2604, %v2527
    %v2644 = vadd.f32 %v2604, %v2532
    %v2645 = vadd.f32 %v2608, %v2517
    %v2646 = vadd.f32 %v2608, %v2522
    %v2647 = vadd.f32 %v2608, %v2527
    %v2648 = vadd.f32 %v2608, %v2532
    %v2649 = vadd.f32 %v2612, %v2517
    %v2650 = vadd.f32 %v2612, %v2522
    %v2651 = vadd.f32 %v2612, %v2527
    %v2652 = vadd.f32 %v2612, %v2532
    %v2653 = vadd.f32 %v2616, %v2517
    %v2654 = vadd.f32 %v2616, %v2522
    %v2655 = vadd.f32 %v2616, %v2527
    %v2656 = vadd.f32 %v2616, %v2532
    %v2657 = vld [vmem:[#allocation12] sm:$0x1]
    %v2659 = vlaneseq
    %v2660 = vshrl.u32 %v2659, 7
    %v2661 = vsub.s32 0, %v2660
    %v2662 = vrot.slane %v2657, %v2661
    %v2664 = vadd.f32 %v2625, %v2662
    %v2665 = vadd.f32 %v2626, %v2662
    %v2666 = vadd.f32 %v2627, %v2662
    %v2667 = vadd.f32 %v2628, %v2662
    %v2668 = vadd.f32 %v2629, %v2662
    %v2669 = vadd.f32 %v2630, %v2662
    %v2670 = vadd.f32 %v2631, %v2662
    %v2671 = vadd.f32 %v2632, %v2662
    %v2672 = vadd.f32 %v2633, %v2662
    %v2673 = vadd.f32 %v2634, %v2662
    %v2674 = vadd.f32 %v2635, %v2662
    %v2675 = vadd.f32 %v2636, %v2662
    %v2676 = vadd.f32 %v2637, %v2662
    %v2677 = vadd.f32 %v2638, %v2662
    %v2678 = vadd.f32 %v2639, %v2662
    %v2679 = vadd.f32 %v2640, %v2662
    %v2680 = vadd.f32 %v2641, %v2662
    %v2681 = vadd.f32 %v2642, %v2662
    %v2682 = vadd.f32 %v2643, %v2662
    %v2683 = vadd.f32 %v2644, %v2662
    %v2684 = vadd.f32 %v2645, %v2662
    %v2685 = vadd.f32 %v2646, %v2662
    %v2686 = vadd.f32 %v2647, %v2662
    %v2687 = vadd.f32 %v2648, %v2662
    %v2688 = vadd.f32 %v2649, %v2662
    %v2689 = vadd.f32 %v2650, %v2662
    %v2690 = vadd.f32 %v2651, %v2662
    %v2691 = vadd.f32 %v2652, %v2662
    %v2692 = vadd.f32 %v2653, %v2662
    %v2693 = vadd.f32 %v2654, %v2662
    %v2694 = vadd.f32 %v2655, %v2662
    %v2695 = vadd.f32 %v2656, %v2662
    %v2696 = vtanh.pop %v2664
    %v2697 = vtanh.pop %v2665
    %v2698 = vtanh.pop %v2666
    %v2699 = vtanh.pop %v2667
    %v2700 = vtanh.pop %v2668
    %v2701 = vtanh.pop %v2669
    %v2702 = vtanh.pop %v2670
    %v2703 = vtanh.pop %v2671
    %v2704 = vtanh.pop %v2672
    %v2705 = vtanh.pop %v2673
    %v2706 = vtanh.pop %v2674
    %v2707 = vtanh.pop %v2675
    %v2708 = vtanh.pop %v2676
    %v2709 = vtanh.pop %v2677
    %v2710 = vtanh.pop %v2678
    %v2711 = vtanh.pop %v2679
    %v2712 = vtanh.pop %v2680
    %v2713 = vtanh.pop %v2681
    %v2714 = vtanh.pop %v2682
    %v2715 = vtanh.pop %v2683
    %v2716 = vtanh.pop %v2684
    %v2717 = vtanh.pop %v2685
    %v2718 = vtanh.pop %v2686
    %v2719 = vtanh.pop %v2687
    %v2720 = vtanh.pop %v2688
    %v2721 = vtanh.pop %v2689
    %v2722 = vtanh.pop %v2690
    %v2723 = vtanh.pop %v2691
    %v2724 = vtanh.pop %v2692
    %v2725 = vtanh.pop %v2693
    %v2726 = vtanh.pop %v2694
    %v2727 = vtanh.pop %v2695
    %v2728 = vld [vmem:[#allocation14] sm:$0x1]
    %v2730 = vlaneseq
    %v2731 = vshrl.u32 %v2730, 7
    %v2732 = vsub.s32 0, %v2731
    %v2733 = vrot.slane %v2728, %v2732
    %v2735 = vmul.f32 %v2696, %v2733
    %v2736 = vmul.f32 %v2697, %v2733
    %v2737 = vmul.f32 %v2698, %v2733
    %v2738 = vmul.f32 %v2699, %v2733
    %v2739 = vmul.f32 %v2700, %v2733
    %v2740 = vmul.f32 %v2701, %v2733
    %v2741 = vmul.f32 %v2702, %v2733
    %v2742 = vmul.f32 %v2703, %v2733
    %v2743 = vmul.f32 %v2704, %v2733
    %v2744 = vmul.f32 %v2705, %v2733
    %v2745 = vmul.f32 %v2706, %v2733
    %v2746 = vmul.f32 %v2707, %v2733
    %v2747 = vmul.f32 %v2708, %v2733
    %v2748 = vmul.f32 %v2709, %v2733
    %v2749 = vmul.f32 %v2710, %v2733
    %v2750 = vmul.f32 %v2711, %v2733
    %v2751 = vmul.f32 %v2712, %v2733
    %v2752 = vmul.f32 %v2713, %v2733
    %v2753 = vmul.f32 %v2714, %v2733
    %v2754 = vmul.f32 %v2715, %v2733
    %v2755 = vmul.f32 %v2716, %v2733
    %v2756 = vmul.f32 %v2717, %v2733
    %v2757 = vmul.f32 %v2718, %v2733
    %v2758 = vmul.f32 %v2719, %v2733
    %v2759 = vmul.f32 %v2720, %v2733
    %v2760 = vmul.f32 %v2721, %v2733
    %v2761 = vmul.f32 %v2722, %v2733
    %v2762 = vmul.f32 %v2723, %v2733
    %v2763 = vmul.f32 %v2724, %v2733
    %v2764 = vmul.f32 %v2725, %v2733
    %v2765 = vmul.f32 %v2726, %v2733
    %v2766 = vmul.f32 %v2727, %v2733
    %v2767 = vsel %vm391, %v2735, 0.0
    %2768 = vadd.xlane.f32.xlu0 %v2767
    %v2769 = vpop.xlane.xlu0 %2768
    %v2770 = vsel %vm391, %v2736, 0.0
    %2771 = vadd.xlane.f32.xlu0 %v2770
    %v2772 = vpop.xlane.xlu0 %2771
    %v2773 = vsel %vm391, %v2737, 0.0
    %2774 = vadd.xlane.f32.xlu0 %v2773
    %v2775 = vpop.xlane.xlu0 %2774
    %v2776 = vsel %vm904, %v2738, 0.0
    %2777 = vadd.xlane.f32.xlu0 %v2776
    %v2778 = vpop.xlane.xlu0 %2777
    %v2779 = vsel %vm391, %v2739, 0.0
    %2780 = vadd.xlane.f32.xlu0 %v2779
    %v2781 = vpop.xlane.xlu0 %2780
    %v2782 = vsel %vm391, %v2740, 0.0
    %2783 = vadd.xlane.f32.xlu0 %v2782
    %v2784 = vpop.xlane.xlu0 %2783
    %v2785 = vsel %vm391, %v2741, 0.0
    %2786 = vadd.xlane.f32.xlu0 %v2785
    %v2787 = vpop.xlane.xlu0 %2786
    %v2788 = vsel %vm904, %v2742, 0.0
    %2789 = vadd.xlane.f32.xlu0 %v2788
    %v2790 = vpop.xlane.xlu0 %2789
    %v2791 = vsel %vm391, %v2743, 0.0
    %2792 = vadd.xlane.f32.xlu0 %v2791
    %v2793 = vpop.xlane.xlu0 %2792
    %v2794 = vsel %vm391, %v2744, 0.0
    %2795 = vadd.xlane.f32.xlu0 %v2794
    %v2796 = vpop.xlane.xlu0 %2795
    %v2797 = vsel %vm391, %v2745, 0.0
    %2798 = vadd.xlane.f32.xlu0 %v2797
    %v2799 = vpop.xlane.xlu0 %2798
    %v2800 = vsel %vm904, %v2746, 0.0
    %2801 = vadd.xlane.f32.xlu0 %v2800
    %v2802 = vpop.xlane.xlu0 %2801
    %v2803 = vsel %vm391, %v2747, 0.0
    %2804 = vadd.xlane.f32.xlu0 %v2803
    %v2805 = vpop.xlane.xlu0 %2804
    %v2806 = vsel %vm391, %v2748, 0.0
    %2807 = vadd.xlane.f32.xlu0 %v2806
    %v2808 = vpop.xlane.xlu0 %2807
    %v2809 = vsel %vm391, %v2749, 0.0
    %2810 = vadd.xlane.f32.xlu0 %v2809
    %v2811 = vpop.xlane.xlu0 %2810
    %v2812 = vsel %vm904, %v2750, 0.0
    %2813 = vadd.xlane.f32.xlu0 %v2812
    %v2814 = vpop.xlane.xlu0 %2813
    %v2815 = vsel %vm391, %v2751, 0.0
    %2816 = vadd.xlane.f32.xlu0 %v2815
    %v2817 = vpop.xlane.xlu0 %2816
    %v2818 = vsel %vm391, %v2752, 0.0
    %2819 = vadd.xlane.f32.xlu0 %v2818
    %v2820 = vpop.xlane.xlu0 %2819
    %v2821 = vsel %vm391, %v2753, 0.0
    %2822 = vadd.xlane.f32.xlu0 %v2821
    %v2823 = vpop.xlane.xlu0 %2822
    %v2824 = vsel %vm904, %v2754, 0.0
    %2825 = vadd.xlane.f32.xlu0 %v2824
    %v2826 = vpop.xlane.xlu0 %2825
    %v2827 = vsel %vm391, %v2755, 0.0
    %2828 = vadd.xlane.f32.xlu0 %v2827
    %v2829 = vpop.xlane.xlu0 %2828
    %v2830 = vsel %vm391, %v2756, 0.0
    %2831 = vadd.xlane.f32.xlu0 %v2830
    %v2832 = vpop.xlane.xlu0 %2831
    %v2833 = vsel %vm391, %v2757, 0.0
    %2834 = vadd.xlane.f32.xlu0 %v2833
    %v2835 = vpop.xlane.xlu0 %2834
    %v2836 = vsel %vm904, %v2758, 0.0
    %2837 = vadd.xlane.f32.xlu0 %v2836
    %v2838 = vpop.xlane.xlu0 %2837
    %v2839 = vsel %vm391, %v2759, 0.0
    %2840 = vadd.xlane.f32.xlu0 %v2839
    %v2841 = vpop.xlane.xlu0 %2840
    %v2842 = vsel %vm391, %v2760, 0.0
    %2843 = vadd.xlane.f32.xlu0 %v2842
    %v2844 = vpop.xlane.xlu0 %2843
    %v2845 = vsel %vm391, %v2761, 0.0
    %2846 = vadd.xlane.f32.xlu0 %v2845
    %v2847 = vpop.xlane.xlu0 %2846
    %v2848 = vsel %vm904, %v2762, 0.0
    %2849 = vadd.xlane.f32.xlu0 %v2848
    %v2850 = vpop.xlane.xlu0 %2849
    %v2851 = vsel %vm391, %v2763, 0.0
    %2852 = vadd.xlane.f32.xlu0 %v2851
    %v2853 = vpop.xlane.xlu0 %2852
    %v2854 = vsel %vm391, %v2764, 0.0
    %2855 = vadd.xlane.f32.xlu0 %v2854
    %v2856 = vpop.xlane.xlu0 %2855
    %v2857 = vsel %vm391, %v2765, 0.0
    %2858 = vadd.xlane.f32.xlu0 %v2857
    %v2859 = vpop.xlane.xlu0 %2858
    %v2860 = vsel %vm904, %v2766, 0.0
    %2861 = vadd.xlane.f32.xlu0 %v2860
    %v2862 = vpop.xlane.xlu0 %2861
    %v2895 = vlaneseq
    %v2896 = vshrl.u32 %v2895, 7
    %v2897 = vsub.s32 %v1025, %v2896
    %v2898 = vrot.slane %v2769, %v2897
    %v2899 = vlaneseq
    %v2900 = vshrl.u32 %v2899, 7
    %v2901 = vsub.s32 %v1030, %v2900
    %v2902 = vrot.slane %v2772, %v2901
    %v2903 = vsel %vm1035, %v2902, %v2898
    %v2904 = vlaneseq
    %v2905 = vshrl.u32 %v2904, 7
    %v2906 = vsub.s32 %v1037, %v2905
    %v2907 = vrot.slane %v2775, %v2906
    %v2908 = vsel %vm1042, %v2907, %v2903
    %v2909 = vlaneseq
    %v2910 = vshrl.u32 %v2909, 7
    %v2911 = vsub.s32 %v1044, %v2910
    %v2912 = vrot.slane %v2778, %v2911
    %v2913 = vsel %vm1049, %v2912, %v2908
    %v2914 = vlaneseq
    %v2915 = vshrl.u32 %v2914, 7
    %v2916 = vsub.s32 %v1025, %v2915
    %v2917 = vrot.slane %v2781, %v2916
    %v2918 = vlaneseq
    %v2919 = vshrl.u32 %v2918, 7
    %v2920 = vsub.s32 %v1030, %v2919
    %v2921 = vrot.slane %v2784, %v2920
    %v2922 = vsel %vm1035, %v2921, %v2917
    %v2923 = vlaneseq
    %v2924 = vshrl.u32 %v2923, 7
    %v2925 = vsub.s32 %v1037, %v2924
    %v2926 = vrot.slane %v2787, %v2925
    %v2927 = vsel %vm1042, %v2926, %v2922
    %v2928 = vlaneseq
    %v2929 = vshrl.u32 %v2928, 7
    %v2930 = vsub.s32 %v1044, %v2929
    %v2931 = vrot.slane %v2790, %v2930
    %v2932 = vsel %vm1049, %v2931, %v2927
    %v2933 = vlaneseq
    %v2934 = vshrl.u32 %v2933, 7
    %v2935 = vsub.s32 %v1025, %v2934
    %v2936 = vrot.slane %v2793, %v2935
    %v2937 = vlaneseq
    %v2938 = vshrl.u32 %v2937, 7
    %v2939 = vsub.s32 %v1030, %v2938
    %v2940 = vrot.slane %v2796, %v2939
    %v2941 = vsel %vm1035, %v2940, %v2936
    %v2942 = vlaneseq
    %v2943 = vshrl.u32 %v2942, 7
    %v2944 = vsub.s32 %v1037, %v2943
    %v2945 = vrot.slane %v2799, %v2944
    %v2946 = vsel %vm1042, %v2945, %v2941
    %v2947 = vlaneseq
    %v2948 = vshrl.u32 %v2947, 7
    %v2949 = vsub.s32 %v1044, %v2948
    %v2950 = vrot.slane %v2802, %v2949
    %v2951 = vsel %vm1049, %v2950, %v2946
    %v2952 = vlaneseq
    %v2953 = vshrl.u32 %v2952, 7
    %v2954 = vsub.s32 %v1025, %v2953
    %v2955 = vrot.slane %v2805, %v2954
    %v2956 = vlaneseq
    %v2957 = vshrl.u32 %v2956, 7
    %v2958 = vsub.s32 %v1030, %v2957
    %v2959 = vrot.slane %v2808, %v2958
    %v2960 = vsel %vm1035, %v2959, %v2955
    %v2961 = vlaneseq
    %v2962 = vshrl.u32 %v2961, 7
    %v2963 = vsub.s32 %v1037, %v2962
    %v2964 = vrot.slane %v2811, %v2963
    %v2965 = vsel %vm1042, %v2964, %v2960
    %v2966 = vlaneseq
    %v2967 = vshrl.u32 %v2966, 7
    %v2968 = vsub.s32 %v1044, %v2967
    %v2969 = vrot.slane %v2814, %v2968
    %v2970 = vsel %vm1049, %v2969, %v2965
    %v2971 = vlaneseq
    %v2972 = vshrl.u32 %v2971, 7
    %v2973 = vsub.s32 %v1025, %v2972
    %v2974 = vrot.slane %v2817, %v2973
    %v2975 = vlaneseq
    %v2976 = vshrl.u32 %v2975, 7
    %v2977 = vsub.s32 %v1030, %v2976
    %v2978 = vrot.slane %v2820, %v2977
    %v2979 = vsel %vm1035, %v2978, %v2974
    %v2980 = vlaneseq
    %v2981 = vshrl.u32 %v2980, 7
    %v2982 = vsub.s32 %v1037, %v2981
    %v2983 = vrot.slane %v2823, %v2982
    %v2984 = vsel %vm1042, %v2983, %v2979
    %v2985 = vlaneseq
    %v2986 = vshrl.u32 %v2985, 7
    %v2987 = vsub.s32 %v1044, %v2986
    %v2988 = vrot.slane %v2826, %v2987
    %v2989 = vsel %vm1049, %v2988, %v2984
    %v2990 = vlaneseq
    %v2991 = vshrl.u32 %v2990, 7
    %v2992 = vsub.s32 %v1025, %v2991
    %v2993 = vrot.slane %v2829, %v2992
    %v2994 = vlaneseq
    %v2995 = vshrl.u32 %v2994, 7
    %v2996 = vsub.s32 %v1030, %v2995
    %v2997 = vrot.slane %v2832, %v2996
    %v2998 = vsel %vm1035, %v2997, %v2993
    %v2999 = vlaneseq
    %v3000 = vshrl.u32 %v2999, 7
    %v3001 = vsub.s32 %v1037, %v3000
    %v3002 = vrot.slane %v2835, %v3001
    %v3003 = vsel %vm1042, %v3002, %v2998
    %v3004 = vlaneseq
    %v3005 = vshrl.u32 %v3004, 7
    %v3006 = vsub.s32 %v1044, %v3005
    %v3007 = vrot.slane %v2838, %v3006
    %v3008 = vsel %vm1049, %v3007, %v3003
    %v3009 = vlaneseq
    %v3010 = vshrl.u32 %v3009, 7
    %v3011 = vsub.s32 %v1025, %v3010
    %v3012 = vrot.slane %v2841, %v3011
    %v3013 = vlaneseq
    %v3014 = vshrl.u32 %v3013, 7
    %v3015 = vsub.s32 %v1030, %v3014
    %v3016 = vrot.slane %v2844, %v3015
    %v3017 = vsel %vm1035, %v3016, %v3012
    %v3018 = vlaneseq
    %v3019 = vshrl.u32 %v3018, 7
    %v3020 = vsub.s32 %v1037, %v3019
    %v3021 = vrot.slane %v2847, %v3020
    %v3022 = vsel %vm1042, %v3021, %v3017
    %v3023 = vlaneseq
    %v3024 = vshrl.u32 %v3023, 7
    %v3025 = vsub.s32 %v1044, %v3024
    %v3026 = vrot.slane %v2850, %v3025
    %v3027 = vsel %vm1049, %v3026, %v3022
    %v3028 = vlaneseq
    %v3029 = vshrl.u32 %v3028, 7
    %v3030 = vsub.s32 %v1025, %v3029
    %v3031 = vrot.slane %v2853, %v3030
    %v3032 = vlaneseq
    %v3033 = vshrl.u32 %v3032, 7
    %v3034 = vsub.s32 %v1030, %v3033
    %v3035 = vrot.slane %v2856, %v3034
    %v3036 = vsel %vm1035, %v3035, %v3031
    %v3037 = vlaneseq
    %v3038 = vshrl.u32 %v3037, 7
    %v3039 = vsub.s32 %v1037, %v3038
    %v3040 = vrot.slane %v2859, %v3039
    %v3041 = vsel %vm1042, %v3040, %v3036
    %v3042 = vlaneseq
    %v3043 = vshrl.u32 %v3042, 7
    %v3044 = vsub.s32 %v1044, %v3043
    %v3045 = vrot.slane %v2862, %v3044
    %v3046 = vsel %vm1049, %v3045, %v3041
    %v3047 = vsel %vm1184, %v2932, %v2913
    %v3048 = vsel %vm1186, %v2951, %v3047
    %v3049 = vsel %vm1188, %v2970, %v3048
    %v3050 = vsel %vm1190, %v2989, %v3049
    %v3051 = vsel %vm1192, %v3008, %v3050
    %v3052 = vsel %vm1194, %v3027, %v3051
    %v3053 = vsel %vm1196, %v3046, %v3052
    %v3055 = vsel %vm1199, %v3053, -inf
    %3056 = vmax.xlane.f32.xlu0 %v3055
    %v3057 = vpop.xlane.xlu0 %3056
    %v3059 = vlaneseq
    %v3060 = vshrl.u32 %v3059, 7
    %v3061 = vsub.s32 0, %v3060
    %v3062 = vrot.slane %v3057, %v3061
    %v3063 = vlaneseq
    %v3064 = vshrl.u32 %v3063, 7
    %v3065 = vsub.s32 1, %v3064
    %v3066 = vrot.slane %v3057, %v3065
    %v3067 = vlaneseq
    %v3068 = vshrl.u32 %v3067, 7
    %v3069 = vsub.s32 2, %v3068
    %v3070 = vrot.slane %v3057, %v3069
    %v3071 = vlaneseq
    %v3072 = vshrl.u32 %v3071, 7
    %v3073 = vsub.s32 3, %v3072
    %v3074 = vrot.slane %v3057, %v3073
    %v3075 = vlaneseq
    %v3076 = vshrl.u32 %v3075, 7
    %v3077 = vsub.s32 4, %v3076
    %v3078 = vrot.slane %v3057, %v3077
    %v3079 = vlaneseq
    %v3080 = vshrl.u32 %v3079, 7
    %v3081 = vsub.s32 5, %v3080
    %v3082 = vrot.slane %v3057, %v3081
    %v3083 = vlaneseq
    %v3084 = vshrl.u32 %v3083, 7
    %v3085 = vsub.s32 6, %v3084
    %v3086 = vrot.slane %v3057, %v3085
    %v3087 = vlaneseq
    %v3088 = vshrl.u32 %v3087, 7
    %v3089 = vsub.s32 7, %v3088
    %v3090 = vrot.slane %v3057, %v3089
    %v3099 = vsub.f32 %v2769, %v3062
    %v3100 = vsub.f32 %v2772, %v3062
    %v3101 = vsub.f32 %v2775, %v3062
    %v3102 = vsub.f32 %v2778, %v3062
    %v3103 = vsub.f32 %v2781, %v3066
    %v3104 = vsub.f32 %v2784, %v3066
    %v3105 = vsub.f32 %v2787, %v3066
    %v3106 = vsub.f32 %v2790, %v3066
    %v3107 = vsub.f32 %v2793, %v3070
    %v3108 = vsub.f32 %v2796, %v3070
    %v3109 = vsub.f32 %v2799, %v3070
    %v3110 = vsub.f32 %v2802, %v3070
    %v3111 = vsub.f32 %v2805, %v3074
    %v3112 = vsub.f32 %v2808, %v3074
    %v3113 = vsub.f32 %v2811, %v3074
    %v3114 = vsub.f32 %v2814, %v3074
    %v3115 = vsub.f32 %v2817, %v3078
    %v3116 = vsub.f32 %v2820, %v3078
    %v3117 = vsub.f32 %v2823, %v3078
    %v3118 = vsub.f32 %v2826, %v3078
    %v3119 = vsub.f32 %v2829, %v3082
    %v3120 = vsub.f32 %v2832, %v3082
    %v3121 = vsub.f32 %v2835, %v3082
    %v3122 = vsub.f32 %v2838, %v3082
    %v3123 = vsub.f32 %v2841, %v3086
    %v3124 = vsub.f32 %v2844, %v3086
    %v3125 = vsub.f32 %v2847, %v3086
    %v3126 = vsub.f32 %v2850, %v3086
    %v3127 = vsub.f32 %v2853, %v3090
    %v3128 = vsub.f32 %v2856, %v3090
    %v3129 = vsub.f32 %v2859, %v3090
    %v3130 = vsub.f32 %v2862, %v3090
    %v3131 = vmul.f32 %v3099, 1.442695
    %v3132 = vpow.pop %v3131
    %v3133 = vmul.f32 %v3100, 1.442695
    %v3134 = vpow.pop %v3133
    %v3135 = vmul.f32 %v3101, 1.442695
    %v3136 = vpow.pop %v3135
    %v3137 = vmul.f32 %v3102, 1.442695
    %v3138 = vpow.pop %v3137
    %v3139 = vmul.f32 %v3103, 1.442695
    %v3140 = vpow.pop %v3139
    %v3141 = vmul.f32 %v3104, 1.442695
    %v3142 = vpow.pop %v3141
    %v3143 = vmul.f32 %v3105, 1.442695
    %v3144 = vpow.pop %v3143
    %v3145 = vmul.f32 %v3106, 1.442695
    %v3146 = vpow.pop %v3145
    %v3147 = vmul.f32 %v3107, 1.442695
    %v3148 = vpow.pop %v3147
    %v3149 = vmul.f32 %v3108, 1.442695
    %v3150 = vpow.pop %v3149
    %v3151 = vmul.f32 %v3109, 1.442695
    %v3152 = vpow.pop %v3151
    %v3153 = vmul.f32 %v3110, 1.442695
    %v3154 = vpow.pop %v3153
    %v3155 = vmul.f32 %v3111, 1.442695
    %v3156 = vpow.pop %v3155
    %v3157 = vmul.f32 %v3112, 1.442695
    %v3158 = vpow.pop %v3157
    %v3159 = vmul.f32 %v3113, 1.442695
    %v3160 = vpow.pop %v3159
    %v3161 = vmul.f32 %v3114, 1.442695
    %v3162 = vpow.pop %v3161
    %v3163 = vmul.f32 %v3115, 1.442695
    %v3164 = vpow.pop %v3163
    %v3165 = vmul.f32 %v3116, 1.442695
    %v3166 = vpow.pop %v3165
    %v3167 = vmul.f32 %v3117, 1.442695
    %v3168 = vpow.pop %v3167
    %v3169 = vmul.f32 %v3118, 1.442695
    %v3170 = vpow.pop %v3169
    %v3171 = vmul.f32 %v3119, 1.442695
    %v3172 = vpow.pop %v3171
    %v3173 = vmul.f32 %v3120, 1.442695
    %v3174 = vpow.pop %v3173
    %v3175 = vmul.f32 %v3121, 1.442695
    %v3176 = vpow.pop %v3175
    %v3177 = vmul.f32 %v3122, 1.442695
    %v3178 = vpow.pop %v3177
    %v3179 = vmul.f32 %v3123, 1.442695
    %v3180 = vpow.pop %v3179
    %v3181 = vmul.f32 %v3124, 1.442695
    %v3182 = vpow.pop %v3181
    %v3183 = vmul.f32 %v3125, 1.442695
    %v3184 = vpow.pop %v3183
    %v3185 = vmul.f32 %v3126, 1.442695
    %v3186 = vpow.pop %v3185
    %v3187 = vmul.f32 %v3127, 1.442695
    %v3188 = vpow.pop %v3187
    %v3189 = vmul.f32 %v3128, 1.442695
    %v3190 = vpow.pop %v3189
    %v3191 = vmul.f32 %v3129, 1.442695
    %v3192 = vpow.pop %v3191
    %v3193 = vmul.f32 %v3130, 1.442695
    %v3194 = vpow.pop %v3193
    %3227 = vset.pattern.permute.xlu0 0
    %3228 = vperm.xlu0 %3227, %v3132
    %v3229 = vpop.permute.xlu0 %3228
    %3230 = vset.pattern.permute.xlu0 0
    %3231 = vperm.xlu0 %3230, %v3134
    %v3232 = vpop.permute.xlu0 %3231
    %3233 = vset.pattern.permute.xlu0 0
    %3234 = vperm.xlu0 %3233, %v3136
    %v3235 = vpop.permute.xlu0 %3234
    %3236 = vset.pattern.permute.xlu0 0
    %3237 = vperm.xlu0 %3236, %v3138
    %v3238 = vpop.permute.xlu0 %3237
    %3239 = vset.pattern.permute.xlu0 0
    %3240 = vperm.xlu0 %3239, %v3140
    %v3241 = vpop.permute.xlu0 %3240
    %3242 = vset.pattern.permute.xlu0 0
    %3243 = vperm.xlu0 %3242, %v3142
    %v3244 = vpop.permute.xlu0 %3243
    %3245 = vset.pattern.permute.xlu0 0
    %3246 = vperm.xlu0 %3245, %v3144
    %v3247 = vpop.permute.xlu0 %3246
    %3248 = vset.pattern.permute.xlu0 0
    %3249 = vperm.xlu0 %3248, %v3146
    %v3250 = vpop.permute.xlu0 %3249
    %3251 = vset.pattern.permute.xlu0 0
    %3252 = vperm.xlu0 %3251, %v3148
    %v3253 = vpop.permute.xlu0 %3252
    %3254 = vset.pattern.permute.xlu0 0
    %3255 = vperm.xlu0 %3254, %v3150
    %v3256 = vpop.permute.xlu0 %3255
    %3257 = vset.pattern.permute.xlu0 0
    %3258 = vperm.xlu0 %3257, %v3152
    %v3259 = vpop.permute.xlu0 %3258
    %3260 = vset.pattern.permute.xlu0 0
    %3261 = vperm.xlu0 %3260, %v3154
    %v3262 = vpop.permute.xlu0 %3261
    %3263 = vset.pattern.permute.xlu0 0
    %3264 = vperm.xlu0 %3263, %v3156
    %v3265 = vpop.permute.xlu0 %3264
    %3266 = vset.pattern.permute.xlu0 0
    %3267 = vperm.xlu0 %3266, %v3158
    %v3268 = vpop.permute.xlu0 %3267
    %3269 = vset.pattern.permute.xlu0 0
    %3270 = vperm.xlu0 %3269, %v3160
    %v3271 = vpop.permute.xlu0 %3270
    %3272 = vset.pattern.permute.xlu0 0
    %3273 = vperm.xlu0 %3272, %v3162
    %v3274 = vpop.permute.xlu0 %3273
    %3275 = vset.pattern.permute.xlu0 0
    %3276 = vperm.xlu0 %3275, %v3164
    %v3277 = vpop.permute.xlu0 %3276
    %3278 = vset.pattern.permute.xlu0 0
    %3279 = vperm.xlu0 %3278, %v3166
    %v3280 = vpop.permute.xlu0 %3279
    %3281 = vset.pattern.permute.xlu0 0
    %3282 = vperm.xlu0 %3281, %v3168
    %v3283 = vpop.permute.xlu0 %3282
    %3284 = vset.pattern.permute.xlu0 0
    %3285 = vperm.xlu0 %3284, %v3170
    %v3286 = vpop.permute.xlu0 %3285
    %3287 = vset.pattern.permute.xlu0 0
    %3288 = vperm.xlu0 %3287, %v3172
    %v3289 = vpop.permute.xlu0 %3288
    %3290 = vset.pattern.permute.xlu0 0
    %3291 = vperm.xlu0 %3290, %v3174
    %v3292 = vpop.permute.xlu0 %3291
    %3293 = vset.pattern.permute.xlu0 0
    %3294 = vperm.xlu0 %3293, %v3176
    %v3295 = vpop.permute.xlu0 %3294
    %3296 = vset.pattern.permute.xlu0 0
    %3297 = vperm.xlu0 %3296, %v3178
    %v3298 = vpop.permute.xlu0 %3297
    %3299 = vset.pattern.permute.xlu0 0
    %3300 = vperm.xlu0 %3299, %v3180
    %v3301 = vpop.permute.xlu0 %3300
    %3302 = vset.pattern.permute.xlu0 0
    %3303 = vperm.xlu0 %3302, %v3182
    %v3304 = vpop.permute.xlu0 %3303
    %3305 = vset.pattern.permute.xlu0 0
    %3306 = vperm.xlu0 %3305, %v3184
    %v3307 = vpop.permute.xlu0 %3306
    %3308 = vset.pattern.permute.xlu0 0
    %3309 = vperm.xlu0 %3308, %v3186
    %v3310 = vpop.permute.xlu0 %3309
    %3311 = vset.pattern.permute.xlu0 0
    %3312 = vperm.xlu0 %3311, %v3188
    %v3313 = vpop.permute.xlu0 %3312
    %3314 = vset.pattern.permute.xlu0 0
    %3315 = vperm.xlu0 %3314, %v3190
    %v3316 = vpop.permute.xlu0 %3315
    %3317 = vset.pattern.permute.xlu0 0
    %3318 = vperm.xlu0 %3317, %v3192
    %v3319 = vpop.permute.xlu0 %3318
    %3320 = vset.pattern.permute.xlu0 0
    %3321 = vperm.xlu0 %3320, %v3194
    %v3322 = vpop.permute.xlu0 %3321
    %v3323 = vlaneseq
    %v3324 = vshrl.u32 %v3323, 7
    %v3325 = vsub.s32 %v1025, %v3324
    %v3326 = vrot.slane %v3229, %v3325
    %v3327 = vlaneseq
    %v3328 = vshrl.u32 %v3327, 7
    %v3329 = vsub.s32 %v1030, %v3328
    %v3330 = vrot.slane %v3232, %v3329
    %v3331 = vsel %vm1035, %v3330, %v3326
    %v3332 = vlaneseq
    %v3333 = vshrl.u32 %v3332, 7
    %v3334 = vsub.s32 %v1037, %v3333
    %v3335 = vrot.slane %v3235, %v3334
    %v3336 = vsel %vm1042, %v3335, %v3331
    %v3337 = vlaneseq
    %v3338 = vshrl.u32 %v3337, 7
    %v3339 = vsub.s32 %v1044, %v3338
    %v3340 = vrot.slane %v3238, %v3339
    %v3341 = vsel %vm1049, %v3340, %v3336
    %v3342 = vlaneseq
    %v3343 = vshrl.u32 %v3342, 7
    %v3344 = vsub.s32 %v1025, %v3343
    %v3345 = vrot.slane %v3241, %v3344
    %v3346 = vlaneseq
    %v3347 = vshrl.u32 %v3346, 7
    %v3348 = vsub.s32 %v1030, %v3347
    %v3349 = vrot.slane %v3244, %v3348
    %v3350 = vsel %vm1035, %v3349, %v3345
    %v3351 = vlaneseq
    %v3352 = vshrl.u32 %v3351, 7
    %v3353 = vsub.s32 %v1037, %v3352
    %v3354 = vrot.slane %v3247, %v3353
    %v3355 = vsel %vm1042, %v3354, %v3350
    %v3356 = vlaneseq
    %v3357 = vshrl.u32 %v3356, 7
    %v3358 = vsub.s32 %v1044, %v3357
    %v3359 = vrot.slane %v3250, %v3358
    %v3360 = vsel %vm1049, %v3359, %v3355
    %v3361 = vlaneseq
    %v3362 = vshrl.u32 %v3361, 7
    %v3363 = vsub.s32 %v1025, %v3362
    %v3364 = vrot.slane %v3253, %v3363
    %v3365 = vlaneseq
    %v3366 = vshrl.u32 %v3365, 7
    %v3367 = vsub.s32 %v1030, %v3366
    %v3368 = vrot.slane %v3256, %v3367
    %v3369 = vsel %vm1035, %v3368, %v3364
    %v3370 = vlaneseq
    %v3371 = vshrl.u32 %v3370, 7
    %v3372 = vsub.s32 %v1037, %v3371
    %v3373 = vrot.slane %v3259, %v3372
    %v3374 = vsel %vm1042, %v3373, %v3369
    %v3375 = vlaneseq
    %v3376 = vshrl.u32 %v3375, 7
    %v3377 = vsub.s32 %v1044, %v3376
    %v3378 = vrot.slane %v3262, %v3377
    %v3379 = vsel %vm1049, %v3378, %v3374
    %v3380 = vlaneseq
    %v3381 = vshrl.u32 %v3380, 7
    %v3382 = vsub.s32 %v1025, %v3381
    %v3383 = vrot.slane %v3265, %v3382
    %v3384 = vlaneseq
    %v3385 = vshrl.u32 %v3384, 7
    %v3386 = vsub.s32 %v1030, %v3385
    %v3387 = vrot.slane %v3268, %v3386
    %v3388 = vsel %vm1035, %v3387, %v3383
    %v3389 = vlaneseq
    %v3390 = vshrl.u32 %v3389, 7
    %v3391 = vsub.s32 %v1037, %v3390
    %v3392 = vrot.slane %v3271, %v3391
    %v3393 = vsel %vm1042, %v3392, %v3388
    %v3394 = vlaneseq
    %v3395 = vshrl.u32 %v3394, 7
    %v3396 = vsub.s32 %v1044, %v3395
    %v3397 = vrot.slane %v3274, %v3396
    %v3398 = vsel %vm1049, %v3397, %v3393
    %v3399 = vlaneseq
    %v3400 = vshrl.u32 %v3399, 7
    %v3401 = vsub.s32 %v1025, %v3400
    %v3402 = vrot.slane %v3277, %v3401
    %v3403 = vlaneseq
    %v3404 = vshrl.u32 %v3403, 7
    %v3405 = vsub.s32 %v1030, %v3404
    %v3406 = vrot.slane %v3280, %v3405
    %v3407 = vsel %vm1035, %v3406, %v3402
    %v3408 = vlaneseq
    %v3409 = vshrl.u32 %v3408, 7
    %v3410 = vsub.s32 %v1037, %v3409
    %v3411 = vrot.slane %v3283, %v3410
    %v3412 = vsel %vm1042, %v3411, %v3407
    %v3413 = vlaneseq
    %v3414 = vshrl.u32 %v3413, 7
    %v3415 = vsub.s32 %v1044, %v3414
    %v3416 = vrot.slane %v3286, %v3415
    %v3417 = vsel %vm1049, %v3416, %v3412
    %v3418 = vlaneseq
    %v3419 = vshrl.u32 %v3418, 7
    %v3420 = vsub.s32 %v1025, %v3419
    %v3421 = vrot.slane %v3289, %v3420
    %v3422 = vlaneseq
    %v3423 = vshrl.u32 %v3422, 7
    %v3424 = vsub.s32 %v1030, %v3423
    %v3425 = vrot.slane %v3292, %v3424
    %v3426 = vsel %vm1035, %v3425, %v3421
    %v3427 = vlaneseq
    %v3428 = vshrl.u32 %v3427, 7
    %v3429 = vsub.s32 %v1037, %v3428
    %v3430 = vrot.slane %v3295, %v3429
    %v3431 = vsel %vm1042, %v3430, %v3426
    %v3432 = vlaneseq
    %v3433 = vshrl.u32 %v3432, 7
    %v3434 = vsub.s32 %v1044, %v3433
    %v3435 = vrot.slane %v3298, %v3434
    %v3436 = vsel %vm1049, %v3435, %v3431
    %v3437 = vlaneseq
    %v3438 = vshrl.u32 %v3437, 7
    %v3439 = vsub.s32 %v1025, %v3438
    %v3440 = vrot.slane %v3301, %v3439
    %v3441 = vlaneseq
    %v3442 = vshrl.u32 %v3441, 7
    %v3443 = vsub.s32 %v1030, %v3442
    %v3444 = vrot.slane %v3304, %v3443
    %v3445 = vsel %vm1035, %v3444, %v3440
    %v3446 = vlaneseq
    %v3447 = vshrl.u32 %v3446, 7
    %v3448 = vsub.s32 %v1037, %v3447
    %v3449 = vrot.slane %v3307, %v3448
    %v3450 = vsel %vm1042, %v3449, %v3445
    %v3451 = vlaneseq
    %v3452 = vshrl.u32 %v3451, 7
    %v3453 = vsub.s32 %v1044, %v3452
    %v3454 = vrot.slane %v3310, %v3453
    %v3455 = vsel %vm1049, %v3454, %v3450
    %v3456 = vlaneseq
    %v3457 = vshrl.u32 %v3456, 7
    %v3458 = vsub.s32 %v1025, %v3457
    %v3459 = vrot.slane %v3313, %v3458
    %v3460 = vlaneseq
    %v3461 = vshrl.u32 %v3460, 7
    %v3462 = vsub.s32 %v1030, %v3461
    %v3463 = vrot.slane %v3316, %v3462
    %v3464 = vsel %vm1035, %v3463, %v3459
    %v3465 = vlaneseq
    %v3466 = vshrl.u32 %v3465, 7
    %v3467 = vsub.s32 %v1037, %v3466
    %v3468 = vrot.slane %v3319, %v3467
    %v3469 = vsel %vm1042, %v3468, %v3464
    %v3470 = vlaneseq
    %v3471 = vshrl.u32 %v3470, 7
    %v3472 = vsub.s32 %v1044, %v3471
    %v3473 = vrot.slane %v3322, %v3472
    %v3474 = vsel %vm1049, %v3473, %v3469
    %v3475 = vsel %vm1184, %v3360, %v3341
    %v3476 = vsel %vm1186, %v3379, %v3475
    %v3477 = vsel %vm1188, %v3398, %v3476
    %v3478 = vsel %vm1190, %v3417, %v3477
    %v3479 = vsel %vm1192, %v3436, %v3478
    %v3480 = vsel %vm1194, %v3455, %v3479
    %v3481 = vsel %vm1196, %v3474, %v3480
    %v3483 = vsel %vm1199, %v3481, 0.0
    %3484 = vadd.xlane.f32.xlu0 %v3483
    %v3485 = vpop.xlane.xlu0 %3484
    %v3487 = vlaneseq
    %v3488 = vshrl.u32 %v3487, 7
    %v3489 = vsub.s32 0, %v3488
    %v3490 = vrot.slane %v3485, %v3489
    %v3491 = vlaneseq
    %v3492 = vshrl.u32 %v3491, 7
    %v3493 = vsub.s32 1, %v3492
    %v3494 = vrot.slane %v3485, %v3493
    %v3495 = vlaneseq
    %v3496 = vshrl.u32 %v3495, 7
    %v3497 = vsub.s32 2, %v3496
    %v3498 = vrot.slane %v3485, %v3497
    %v3499 = vlaneseq
    %v3500 = vshrl.u32 %v3499, 7
    %v3501 = vsub.s32 3, %v3500
    %v3502 = vrot.slane %v3485, %v3501
    %v3503 = vlaneseq
    %v3504 = vshrl.u32 %v3503, 7
    %v3505 = vsub.s32 4, %v3504
    %v3506 = vrot.slane %v3485, %v3505
    %v3507 = vlaneseq
    %v3508 = vshrl.u32 %v3507, 7
    %v3509 = vsub.s32 5, %v3508
    %v3510 = vrot.slane %v3485, %v3509
    %v3511 = vlaneseq
    %v3512 = vshrl.u32 %v3511, 7
    %v3513 = vsub.s32 6, %v3512
    %v3514 = vrot.slane %v3485, %v3513
    %v3515 = vlaneseq
    %v3516 = vshrl.u32 %v3515, 7
    %v3517 = vsub.s32 7, %v3516
    %v3518 = vrot.slane %v3485, %v3517
    %v3527 = vrcp.pop %v3490
    %v3528 = vmul.f32 %v3132, %v3527
    %v3529 = vmul.f32 %v3134, %v3527
    %v3530 = vmul.f32 %v3136, %v3527
    %v3531 = vmul.f32 %v3138, %v3527
    %v3532 = vrcp.pop %v3494
    %v3533 = vmul.f32 %v3140, %v3532
    %v3534 = vmul.f32 %v3142, %v3532
    %v3535 = vmul.f32 %v3144, %v3532
    %v3536 = vmul.f32 %v3146, %v3532
    %v3537 = vrcp.pop %v3498
    %v3538 = vmul.f32 %v3148, %v3537
    %v3539 = vmul.f32 %v3150, %v3537
    %v3540 = vmul.f32 %v3152, %v3537
    %v3541 = vmul.f32 %v3154, %v3537
    %v3542 = vrcp.pop %v3502
    %v3543 = vmul.f32 %v3156, %v3542
    %v3544 = vmul.f32 %v3158, %v3542
    %v3545 = vmul.f32 %v3160, %v3542
    %v3546 = vmul.f32 %v3162, %v3542
    %v3547 = vrcp.pop %v3506
    %v3548 = vmul.f32 %v3164, %v3547
    %v3549 = vmul.f32 %v3166, %v3547
    %v3550 = vmul.f32 %v3168, %v3547
    %v3551 = vmul.f32 %v3170, %v3547
    %v3552 = vrcp.pop %v3510
    %v3553 = vmul.f32 %v3172, %v3552
    %v3554 = vmul.f32 %v3174, %v3552
    %v3555 = vmul.f32 %v3176, %v3552
    %v3556 = vmul.f32 %v3178, %v3552
    %v3557 = vrcp.pop %v3514
    %v3558 = vmul.f32 %v3180, %v3557
    %v3559 = vmul.f32 %v3182, %v3557
    %v3560 = vmul.f32 %v3184, %v3557
    %v3561 = vmul.f32 %v3186, %v3557
    %v3562 = vrcp.pop %v3518
    %v3563 = vmul.f32 %v3188, %v3562
    %v3564 = vmul.f32 %v3190, %v3562
    %v3565 = vmul.f32 %v3192, %v3562
    %v3566 = vmul.f32 %v3194, %v3562
    %3599 = vset.pattern.permute.xlu0 0
    %3600 = vperm.xlu0 %3599, %v3528
    %v3601 = vpop.permute.xlu0 %3600
    %3602 = vset.pattern.permute.xlu0 0
    %3603 = vperm.xlu0 %3602, %v3529
    %v3604 = vpop.permute.xlu0 %3603
    %3605 = vset.pattern.permute.xlu0 0
    %3606 = vperm.xlu0 %3605, %v3530
    %v3607 = vpop.permute.xlu0 %3606
    %3608 = vset.pattern.permute.xlu0 0
    %3609 = vperm.xlu0 %3608, %v3531
    %v3610 = vpop.permute.xlu0 %3609
    %3611 = vset.pattern.permute.xlu0 0
    %3612 = vperm.xlu0 %3611, %v3533
    %v3613 = vpop.permute.xlu0 %3612
    %3614 = vset.pattern.permute.xlu0 0
    %3615 = vperm.xlu0 %3614, %v3534
    %v3616 = vpop.permute.xlu0 %3615
    %3617 = vset.pattern.permute.xlu0 0
    %3618 = vperm.xlu0 %3617, %v3535
    %v3619 = vpop.permute.xlu0 %3618
    %3620 = vset.pattern.permute.xlu0 0
    %3621 = vperm.xlu0 %3620, %v3536
    %v3622 = vpop.permute.xlu0 %3621
    %3623 = vset.pattern.permute.xlu0 0
    %3624 = vperm.xlu0 %3623, %v3538
    %v3625 = vpop.permute.xlu0 %3624
    %3626 = vset.pattern.permute.xlu0 0
    %3627 = vperm.xlu0 %3626, %v3539
    %v3628 = vpop.permute.xlu0 %3627
    %3629 = vset.pattern.permute.xlu0 0
    %3630 = vperm.xlu0 %3629, %v3540
    %v3631 = vpop.permute.xlu0 %3630
    %3632 = vset.pattern.permute.xlu0 0
    %3633 = vperm.xlu0 %3632, %v3541
    %v3634 = vpop.permute.xlu0 %3633
    %3635 = vset.pattern.permute.xlu0 0
    %3636 = vperm.xlu0 %3635, %v3543
    %v3637 = vpop.permute.xlu0 %3636
    %3638 = vset.pattern.permute.xlu0 0
    %3639 = vperm.xlu0 %3638, %v3544
    %v3640 = vpop.permute.xlu0 %3639
    %3641 = vset.pattern.permute.xlu0 0
    %3642 = vperm.xlu0 %3641, %v3545
    %v3643 = vpop.permute.xlu0 %3642
    %3644 = vset.pattern.permute.xlu0 0
    %3645 = vperm.xlu0 %3644, %v3546
    %v3646 = vpop.permute.xlu0 %3645
    %3647 = vset.pattern.permute.xlu0 0
    %3648 = vperm.xlu0 %3647, %v3548
    %v3649 = vpop.permute.xlu0 %3648
    %3650 = vset.pattern.permute.xlu0 0
    %3651 = vperm.xlu0 %3650, %v3549
    %v3652 = vpop.permute.xlu0 %3651
    %3653 = vset.pattern.permute.xlu0 0
    %3654 = vperm.xlu0 %3653, %v3550
    %v3655 = vpop.permute.xlu0 %3654
    %3656 = vset.pattern.permute.xlu0 0
    %3657 = vperm.xlu0 %3656, %v3551
    %v3658 = vpop.permute.xlu0 %3657
    %3659 = vset.pattern.permute.xlu0 0
    %3660 = vperm.xlu0 %3659, %v3553
    %v3661 = vpop.permute.xlu0 %3660
    %3662 = vset.pattern.permute.xlu0 0
    %3663 = vperm.xlu0 %3662, %v3554
    %v3664 = vpop.permute.xlu0 %3663
    %3665 = vset.pattern.permute.xlu0 0
    %3666 = vperm.xlu0 %3665, %v3555
    %v3667 = vpop.permute.xlu0 %3666
    %3668 = vset.pattern.permute.xlu0 0
    %3669 = vperm.xlu0 %3668, %v3556
    %v3670 = vpop.permute.xlu0 %3669
    %3671 = vset.pattern.permute.xlu0 0
    %3672 = vperm.xlu0 %3671, %v3558
    %v3673 = vpop.permute.xlu0 %3672
    %3674 = vset.pattern.permute.xlu0 0
    %3675 = vperm.xlu0 %3674, %v3559
    %v3676 = vpop.permute.xlu0 %3675
    %3677 = vset.pattern.permute.xlu0 0
    %3678 = vperm.xlu0 %3677, %v3560
    %v3679 = vpop.permute.xlu0 %3678
    %3680 = vset.pattern.permute.xlu0 0
    %3681 = vperm.xlu0 %3680, %v3561
    %v3682 = vpop.permute.xlu0 %3681
    %3683 = vset.pattern.permute.xlu0 0
    %3684 = vperm.xlu0 %3683, %v3563
    %v3685 = vpop.permute.xlu0 %3684
    %3686 = vset.pattern.permute.xlu0 0
    %3687 = vperm.xlu0 %3686, %v3564
    %v3688 = vpop.permute.xlu0 %3687
    %3689 = vset.pattern.permute.xlu0 0
    %3690 = vperm.xlu0 %3689, %v3565
    %v3691 = vpop.permute.xlu0 %3690
    %3692 = vset.pattern.permute.xlu0 0
    %3693 = vperm.xlu0 %3692, %v3566
    %v3694 = vpop.permute.xlu0 %3693
    %v3695 = vlaneseq
    %v3696 = vshrl.u32 %v3695, 7
    %v3697 = vsub.s32 %v1025, %v3696
    %v3698 = vrot.slane %v3601, %v3697
    %v3699 = vlaneseq
    %v3700 = vshrl.u32 %v3699, 7
    %v3701 = vsub.s32 %v1030, %v3700
    %v3702 = vrot.slane %v3604, %v3701
    %v3703 = vsel %vm1035, %v3702, %v3698
    %v3704 = vlaneseq
    %v3705 = vshrl.u32 %v3704, 7
    %v3706 = vsub.s32 %v1037, %v3705
    %v3707 = vrot.slane %v3607, %v3706
    %v3708 = vsel %vm1042, %v3707, %v3703
    %v3709 = vlaneseq
    %v3710 = vshrl.u32 %v3709, 7
    %v3711 = vsub.s32 %v1044, %v3710
    %v3712 = vrot.slane %v3610, %v3711
    %v3713 = vsel %vm1049, %v3712, %v3708
    %v3714 = vlaneseq
    %v3715 = vshrl.u32 %v3714, 7
    %v3716 = vsub.s32 %v1025, %v3715
    %v3717 = vrot.slane %v3613, %v3716
    %v3718 = vlaneseq
    %v3719 = vshrl.u32 %v3718, 7
    %v3720 = vsub.s32 %v1030, %v3719
    %v3721 = vrot.slane %v3616, %v3720
    %v3722 = vsel %vm1035, %v3721, %v3717
    %v3723 = vlaneseq
    %v3724 = vshrl.u32 %v3723, 7
    %v3725 = vsub.s32 %v1037, %v3724
    %v3726 = vrot.slane %v3619, %v3725
    %v3727 = vsel %vm1042, %v3726, %v3722
    %v3728 = vlaneseq
    %v3729 = vshrl.u32 %v3728, 7
    %v3730 = vsub.s32 %v1044, %v3729
    %v3731 = vrot.slane %v3622, %v3730
    %v3732 = vsel %vm1049, %v3731, %v3727
    %v3733 = vlaneseq
    %v3734 = vshrl.u32 %v3733, 7
    %v3735 = vsub.s32 %v1025, %v3734
    %v3736 = vrot.slane %v3625, %v3735
    %v3737 = vlaneseq
    %v3738 = vshrl.u32 %v3737, 7
    %v3739 = vsub.s32 %v1030, %v3738
    %v3740 = vrot.slane %v3628, %v3739
    %v3741 = vsel %vm1035, %v3740, %v3736
    %v3742 = vlaneseq
    %v3743 = vshrl.u32 %v3742, 7
    %v3744 = vsub.s32 %v1037, %v3743
    %v3745 = vrot.slane %v3631, %v3744
    %v3746 = vsel %vm1042, %v3745, %v3741
    %v3747 = vlaneseq
    %v3748 = vshrl.u32 %v3747, 7
    %v3749 = vsub.s32 %v1044, %v3748
    %v3750 = vrot.slane %v3634, %v3749
    %v3751 = vsel %vm1049, %v3750, %v3746
    %v3752 = vlaneseq
    %v3753 = vshrl.u32 %v3752, 7
    %v3754 = vsub.s32 %v1025, %v3753
    %v3755 = vrot.slane %v3637, %v3754
    %v3756 = vlaneseq
    %v3757 = vshrl.u32 %v3756, 7
    %v3758 = vsub.s32 %v1030, %v3757
    %v3759 = vrot.slane %v3640, %v3758
    %v3760 = vsel %vm1035, %v3759, %v3755
    %v3761 = vlaneseq
    %v3762 = vshrl.u32 %v3761, 7
    %v3763 = vsub.s32 %v1037, %v3762
    %v3764 = vrot.slane %v3643, %v3763
    %v3765 = vsel %vm1042, %v3764, %v3760
    %v3766 = vlaneseq
    %v3767 = vshrl.u32 %v3766, 7
    %v3768 = vsub.s32 %v1044, %v3767
    %v3769 = vrot.slane %v3646, %v3768
    %v3770 = vsel %vm1049, %v3769, %v3765
    %v3771 = vlaneseq
    %v3772 = vshrl.u32 %v3771, 7
    %v3773 = vsub.s32 %v1025, %v3772
    %v3774 = vrot.slane %v3649, %v3773
    %v3775 = vlaneseq
    %v3776 = vshrl.u32 %v3775, 7
    %v3777 = vsub.s32 %v1030, %v3776
    %v3778 = vrot.slane %v3652, %v3777
    %v3779 = vsel %vm1035, %v3778, %v3774
    %v3780 = vlaneseq
    %v3781 = vshrl.u32 %v3780, 7
    %v3782 = vsub.s32 %v1037, %v3781
    %v3783 = vrot.slane %v3655, %v3782
    %v3784 = vsel %vm1042, %v3783, %v3779
    %v3785 = vlaneseq
    %v3786 = vshrl.u32 %v3785, 7
    %v3787 = vsub.s32 %v1044, %v3786
    %v3788 = vrot.slane %v3658, %v3787
    %v3789 = vsel %vm1049, %v3788, %v3784
    %v3790 = vlaneseq
    %v3791 = vshrl.u32 %v3790, 7
    %v3792 = vsub.s32 %v1025, %v3791
    %v3793 = vrot.slane %v3661, %v3792
    %v3794 = vlaneseq
    %v3795 = vshrl.u32 %v3794, 7
    %v3796 = vsub.s32 %v1030, %v3795
    %v3797 = vrot.slane %v3664, %v3796
    %v3798 = vsel %vm1035, %v3797, %v3793
    %v3799 = vlaneseq
    %v3800 = vshrl.u32 %v3799, 7
    %v3801 = vsub.s32 %v1037, %v3800
    %v3802 = vrot.slane %v3667, %v3801
    %v3803 = vsel %vm1042, %v3802, %v3798
    %v3804 = vlaneseq
    %v3805 = vshrl.u32 %v3804, 7
    %v3806 = vsub.s32 %v1044, %v3805
    %v3807 = vrot.slane %v3670, %v3806
    %v3808 = vsel %vm1049, %v3807, %v3803
    %v3809 = vlaneseq
    %v3810 = vshrl.u32 %v3809, 7
    %v3811 = vsub.s32 %v1025, %v3810
    %v3812 = vrot.slane %v3673, %v3811
    %v3813 = vlaneseq
    %v3814 = vshrl.u32 %v3813, 7
    %v3815 = vsub.s32 %v1030, %v3814
    %v3816 = vrot.slane %v3676, %v3815
    %v3817 = vsel %vm1035, %v3816, %v3812
    %v3818 = vlaneseq
    %v3819 = vshrl.u32 %v3818, 7
    %v3820 = vsub.s32 %v1037, %v3819
    %v3821 = vrot.slane %v3679, %v3820
    %v3822 = vsel %vm1042, %v3821, %v3817
    %v3823 = vlaneseq
    %v3824 = vshrl.u32 %v3823, 7
    %v3825 = vsub.s32 %v1044, %v3824
    %v3826 = vrot.slane %v3682, %v3825
    %v3827 = vsel %vm1049, %v3826, %v3822
    %v3828 = vlaneseq
    %v3829 = vshrl.u32 %v3828, 7
    %v3830 = vsub.s32 %v1025, %v3829
    %v3831 = vrot.slane %v3685, %v3830
    %v3832 = vlaneseq
    %v3833 = vshrl.u32 %v3832, 7
    %v3834 = vsub.s32 %v1030, %v3833
    %v3835 = vrot.slane %v3688, %v3834
    %v3836 = vsel %vm1035, %v3835, %v3831
    %v3837 = vlaneseq
    %v3838 = vshrl.u32 %v3837, 7
    %v3839 = vsub.s32 %v1037, %v3838
    %v3840 = vrot.slane %v3691, %v3839
    %v3841 = vsel %vm1042, %v3840, %v3836
    %v3842 = vlaneseq
    %v3843 = vshrl.u32 %v3842, 7
    %v3844 = vsub.s32 %v1044, %v3843
    %v3845 = vrot.slane %v3694, %v3844
    %v3846 = vsel %vm1049, %v3845, %v3841
    %v3847 = vsel %vm1184, %v3732, %v3713
    %v3848 = vsel %vm1186, %v3751, %v3847
    %v3849 = vsel %vm1188, %v3770, %v3848
    %v3850 = vsel %vm1190, %v3789, %v3849
    %v3851 = vsel %vm1192, %v3808, %v3850
    %v3852 = vsel %vm1194, %v3827, %v3851
    %v3853 = vsel %vm1196, %v3846, %v3852
    %s3855 = scalar_lea.vmem [#allocation36], 8
    %3856 = vst.msk [vmem:[%s3855] sm:$0xff] %vm1199, %v3853
    %s3857 = scalar_lea.vmem [#allocation38], 8
    %3858 = vst.msk [vmem:[%s3857] sm:$0xff] %vm1199, %v3053
    %v3859 = vsel %vm1199, %v3853, 0
    %v3861 = vsel %vm2004, %v2433, 0
    %3863 = vmatprep.subr.mxu0 0.0
    %3864 = vmatpush1.msra.mxu0 0.0
    %3865 = vmatprep.subr.mxu0 0.0
    %3866 = vmatpush1.msra.mxu0 0.0
    %3867 = vmatprep.subr.mxu0 0.0
    %3868 = vmatpush1.msra.mxu0 0.0
    %3869 = vmatprep.subr.mxu0 0.0
    %3870 = vmatpush1.msra.mxu0 0.0
    %3871 = vmatprep.subr.mxu0 0.0
    %3872 = vmatpush1.msra.mxu0 0.0
    %3873 = vmatprep.subr.mxu0 0.0
    %3874 = vmatpush1.msra.mxu0 0.0
    %3875 = vmatprep.subr.mxu0 0.0
    %3876 = vmatpush1.msra.mxu0 0.0
    %3877 = vmatprep.subr.mxu0 0.0
    %3878 = vmatpush1.msra.mxu0 0.0
    %3879 = vmatprep.subr.mxu0 0.0
    %3880 = vmatpush1.msra.mxu0 0.0
    %3881 = vmatprep.subr.mxu0 0.0
    %3882 = vmatpush1.msra.mxu0 0.0
    %3883 = vmatprep.subr.mxu0 0.0
    %3884 = vmatpush1.msra.mxu0 0.0
    %3885 = vmatprep.subr.mxu0 0.0
    %3886 = vmatpush1.msra.mxu0 0.0
    %3887 = vmatprep.subr.mxu0 0.0
    %3888 = vmatpush1.msra.mxu0 %v3861
    %3889 = vmatprep.subr.mxu0 0.0
    %3890 = vmatpush1.msra.mxu0 %v2432
    %3891 = vmatprep.subr.mxu0 0.0
    %3892 = vmatpush1.msra.mxu0 %v2431
    %3893 = vmatprep.subr.mxu0 0.0
    %3894 = vmatpush1.msra.mxu0 %v2430
    %3895 = vmatprep.subr.mxu0 0.0
    %3896 = vmatpush2.msra.mxu0 0.0
    %3897 = vmatprep.subr.mxu0 0.0
    %3898 = vmatpush2.msra.mxu0 0.0
    %3899 = vmatprep.subr.mxu0 0.0
    %3900 = vmatpush2.msra.mxu0 0.0
    %3901 = vmatprep.subr.mxu0 0.0
    %3902 = vmatpush2.msra.mxu0 0.0
    %3903 = vmatprep.subr.mxu0 0.0
    %3904 = vmatpush2.msra.mxu0 0.0
    %3905 = vmatprep.subr.mxu0 0.0
    %3906 = vmatpush2.msra.mxu0 0.0
    %3907 = vmatprep.subr.mxu0 0.0
    %3908 = vmatpush2.msra.mxu0 0.0
    %3909 = vmatprep.subr.mxu0 0.0
    %3910 = vmatpush2.msra.mxu0 0.0
    %3911 = vmatprep.subr.mxu0 0.0
    %3912 = vmatpush2.msra.mxu0 0.0
    %3913 = vmatprep.subr.mxu0 0.0
    %3914 = vmatpush2.msra.mxu0 0.0
    %3915 = vmatprep.subr.mxu0 0.0
    %3916 = vmatpush2.msra.mxu0 0.0
    %3917 = vmatprep.subr.mxu0 0.0
    %3918 = vmatpush2.msra.mxu0 0.0
    %3919 = vmatprep.subr.mxu0 0.0
    %3920 = vmatpush2.msra.mxu0 0.0
    %3921 = vmatprep.subr.mxu0 0.0
    %3922 = vmatpush2.msra.mxu0 0.0
    %3923 = vmatprep.subr.mxu0 0.0
    %3924 = vmatpush2.msra.mxu0 0.0
    %3925 = vmatprep.subr.mxu0 0.0
    %3926 = vmatpush2.msra.mxu0 0.0
    %3927 = vmatprep.mubr.f32.mxu0 0.0
    %3928 = vmatmul.mubr.f32.gmra.mxu0 %v3859
    %v3929 = vpop.f32.mrf.mxu0
    %v3930 = vadd.f32 0.0, %v3929
    %v3931 = vpop.f32.mrf.mxu0
    %3932 = vdwg.mxu0
    %v3933 = vld [vmem:[%s21] sm:$0xff]
    %v3934 = vld [vmem:[%s21 + $0x8] sm:$0xff]
    %v3935 = vld [vmem:[%s21 + $0x10] sm:$0xff]
    %v3936 = vld [vmem:[%s21 + $0x18] sm:$0x3]
    %v3938 = vsel %vm1199, %v3933, 0
    %v3941 = vsel %vm1199, %v3934, 0
    %v3944 = vsel %vm1199, %v3935, 0
    %v3947 = vsel %vm1199, %v3936, 0
    %3949 = vmatprep.subr.mxu0 0.0
    %3950 = vmatpush1.msra.mxu0 0.0
    %3951 = vmatprep.subr.mxu0 0.0
    %3952 = vmatpush1.msra.mxu0 0.0
    %3953 = vmatprep.subr.mxu0 0.0
    %3954 = vmatpush1.msra.mxu0 0.0
    %3955 = vmatprep.subr.mxu0 0.0
    %3956 = vmatpush1.msra.mxu0 0.0
    %3957 = vmatprep.subr.mxu0 0.0
    %3958 = vmatpush1.msra.mxu0 0.0
    %3959 = vmatprep.subr.mxu0 0.0
    %3960 = vmatpush1.msra.mxu0 0.0
    %3961 = vmatprep.subr.mxu0 0.0
    %3962 = vmatpush1.msra.mxu0 0.0
    %3963 = vmatprep.subr.mxu0 0.0
    %3964 = vmatpush1.msra.mxu0 0.0
    %3965 = vmatprep.subr.mxu0 0.0
    %3966 = vmatpush1.msra.mxu0 0.0
    %3967 = vmatprep.subr.mxu0 0.0
    %3968 = vmatpush1.msra.mxu0 0.0
    %3969 = vmatprep.subr.mxu0 0.0
    %3970 = vmatpush1.msra.mxu0 0.0
    %3971 = vmatprep.subr.mxu0 0.0
    %3972 = vmatpush1.msra.mxu0 0.0
    %3973 = vmatprep.subr.mxu0 0.0
    %3974 = vmatpush1.msra.mxu0 %v3861
    %3975 = vmatprep.subr.mxu0 0.0
    %3976 = vmatpush1.msra.mxu0 %v2432
    %3977 = vmatprep.subr.mxu0 0.0
    %3978 = vmatpush1.msra.mxu0 %v2431
    %3979 = vmatprep.subr.mxu0 0.0
    %3980 = vmatpush1.msra.mxu0 %v2430
    %3981 = vmatprep.subr.mxu0 0.0
    %3982 = vmatpush2.msra.mxu0 0.0
    %3983 = vmatprep.subr.mxu0 0.0
    %3984 = vmatpush2.msra.mxu0 0.0
    %3985 = vmatprep.subr.mxu0 0.0
    %3986 = vmatpush2.msra.mxu0 0.0
    %3987 = vmatprep.subr.mxu0 0.0
    %3988 = vmatpush2.msra.mxu0 0.0
    %3989 = vmatprep.subr.mxu0 0.0
    %3990 = vmatpush2.msra.mxu0 0.0
    %3991 = vmatprep.subr.mxu0 0.0
    %3992 = vmatpush2.msra.mxu0 0.0
    %3993 = vmatprep.subr.mxu0 0.0
    %3994 = vmatpush2.msra.mxu0 0.0
    %3995 = vmatprep.subr.mxu0 0.0
    %3996 = vmatpush2.msra.mxu0 0.0
    %3997 = vmatprep.subr.mxu0 0.0
    %3998 = vmatpush2.msra.mxu0 0.0
    %3999 = vmatprep.subr.mxu0 0.0
    %4000 = vmatpush2.msra.mxu0 0.0
    %4001 = vmatprep.subr.mxu0 0.0
    %4002 = vmatpush2.msra.mxu0 0.0
    %4003 = vmatprep.subr.mxu0 0.0
    %4004 = vmatpush2.msra.mxu0 0.0
    %4005 = vmatprep.subr.mxu0 0.0
    %4006 = vmatpush2.msra.mxu0 0.0
    %4007 = vmatprep.subr.mxu0 0.0
    %4008 = vmatpush2.msra.mxu0 0.0
    %4009 = vmatprep.subr.mxu0 0.0
    %4010 = vmatpush2.msra.mxu0 0.0
    %4011 = vmatprep.subr.mxu0 0.0
    %4012 = vmatpush2.msra.mxu0 0.0
    %4013 = vmatprep.mubr.f32.mxu0 0.0
    %4014 = vmatmul.mubr.f32.gmra.mxu0 %v3938
    %v4015 = vpop.f32.mrf.mxu0
    %v4016 = vadd.f32 0.0, %v4015
    %v4017 = vpop.f32.mrf.mxu0
    %4018 = vmatprep.mubr.f32.mxu0 0.0
    %4019 = vmatmul.mubr.f32.gmra.mxu0 %v3941
    %v4020 = vpop.f32.mrf.mxu0
    %v4021 = vadd.f32 0.0, %v4020
    %v4022 = vpop.f32.mrf.mxu0
    %4023 = vmatprep.mubr.f32.mxu0 0.0
    %4024 = vmatmul.mubr.f32.gmra.mxu0 %v3944
    %v4025 = vpop.f32.mrf.mxu0
    %v4026 = vadd.f32 0.0, %v4025
    %v4027 = vpop.f32.mrf.mxu0
    %4028 = vmatprep.mubr.f32.mxu0 0.0
    %4029 = vmatmul.mubr.f32.gmra.mxu0 %v3947
    %v4030 = vpop.f32.mrf.mxu0
    %v4031 = vadd.f32 0.0, %v4030
    %v4032 = vpop.f32.mrf.mxu0
    %4033 = vdwg.mxu0
    %v4035 = vsel %vm391, %v555, 0
    %v4038 = vsel %vm391, %v4016, 0
    %v4041 = vsel %vm391, %v4021, 0
    %v4044 = vsel %vm391, %v4026, 0
    %v4047 = vsel %vm391, %v4031, 0
    %4049 = vmatprep.subr.mxu0 0.0
    %4050 = vmatpush1.xpose.msra.mxu0 0.0
    %4051 = vmatprep.subr.mxu0 0.0
    %4052 = vmatpush1.xpose.msra.mxu0 0.0
    %4053 = vmatprep.subr.mxu0 0.0
    %4054 = vmatpush1.xpose.msra.mxu0 0.0
    %4055 = vmatprep.subr.mxu0 0.0
    %4056 = vmatpush1.xpose.msra.mxu0 0.0
    %4057 = vmatprep.subr.mxu0 0.0
    %4058 = vmatpush1.xpose.msra.mxu0 0.0
    %4059 = vmatprep.subr.mxu0 0.0
    %4060 = vmatpush1.xpose.msra.mxu0 0.0
    %4061 = vmatprep.subr.mxu0 0.0
    %4062 = vmatpush1.xpose.msra.mxu0 0.0
    %4063 = vmatprep.subr.mxu0 0.0
    %4064 = vmatpush1.xpose.msra.mxu0 0.0
    %4065 = vmatprep.subr.mxu0 0.0
    %4066 = vmatpush1.xpose.msra.mxu0 0.0
    %4067 = vmatprep.subr.mxu0 0.0
    %4068 = vmatpush1.xpose.msra.mxu0 0.0
    %4069 = vmatprep.subr.mxu0 0.0
    %4070 = vmatpush1.xpose.msra.mxu0 0.0
    %4071 = vmatprep.subr.mxu0 0.0
    %4072 = vmatpush1.xpose.msra.mxu0 0.0
    %4073 = vmatprep.subr.mxu0 0.0
    %4074 = vmatpush1.xpose.msra.mxu0 %v4047
    %4075 = vmatprep.subr.mxu0 0.0
    %4076 = vmatpush1.xpose.msra.mxu0 %v4044
    %4077 = vmatprep.subr.mxu0 0.0
    %4078 = vmatpush1.xpose.msra.mxu0 %v4041
    %4079 = vmatprep.subr.mxu0 0.0
    %4080 = vmatpush1.xpose.msra.mxu0 %v4038
    %4081 = vmatprep.subr.mxu0 0.0
    %4082 = vmatpush2.xpose.msra.mxu0 0.0
    %4083 = vmatprep.subr.mxu0 0.0
    %4084 = vmatpush2.xpose.msra.mxu0 0.0
    %4085 = vmatprep.subr.mxu0 0.0
    %4086 = vmatpush2.xpose.msra.mxu0 0.0
    %4087 = vmatprep.subr.mxu0 0.0
    %4088 = vmatpush2.xpose.msra.mxu0 0.0
    %4089 = vmatprep.subr.mxu0 0.0
    %4090 = vmatpush2.xpose.msra.mxu0 0.0
    %4091 = vmatprep.subr.mxu0 0.0
    %4092 = vmatpush2.xpose.msra.mxu0 0.0
    %4093 = vmatprep.subr.mxu0 0.0
    %4094 = vmatpush2.xpose.msra.mxu0 0.0
    %4095 = vmatprep.subr.mxu0 0.0
    %4096 = vmatpush2.xpose.msra.mxu0 0.0
    %4097 = vmatprep.subr.mxu0 0.0
    %4098 = vmatpush2.xpose.msra.mxu0 0.0
    %4099 = vmatprep.subr.mxu0 0.0
    %4100 = vmatpush2.xpose.msra.mxu0 0.0
    %4101 = vmatprep.subr.mxu0 0.0
    %4102 = vmatpush2.xpose.msra.mxu0 0.0
    %4103 = vmatprep.subr.mxu0 0.0
    %4104 = vmatpush2.xpose.msra.mxu0 0.0
    %4105 = vmatprep.subr.mxu0 0.0
    %4106 = vmatpush2.xpose.msra.mxu0 0.0
    %4107 = vmatprep.subr.mxu0 0.0
    %4108 = vmatpush2.xpose.msra.mxu0 0.0
    %4109 = vmatprep.subr.mxu0 0.0
    %4110 = vmatpush2.xpose.msra.mxu0 0.0
    %4111 = vmatprep.subr.mxu0 0.0
    %4112 = vmatpush2.xpose.msra.mxu0 0.0
    %4113 = vmatprep.mubr.f32.mxu0 0.0
    %4114 = vmatmul.mubr.f32.gmra.mxu0 %v4035
    %v4115 = vpop.f32.mrf.mxu0
    %v4116 = vadd.f32 0.0, %v4115
    %v4117 = vpop.f32.mrf.mxu0
    %4118 = vdwg.mxu0
    %v4119 = vmul.f32 %v4116, 0.1
    %v4120 = vsel %vm2264, %v4119, -inf
    %4121 = vmax.xlane.f32.xlu0 %v4120
    %v4122 = vpop.xlane.xlu0 %4121
    %v4123 = vsub.f32 %v4119, %v4122
    %v4124 = vmul.f32 %v4123, 1.442695
    %v4125 = vpow.pop %v4124
    %v4126 = vld [vmem:[%s23] sm:$0xff]
    %v4127 = vld [vmem:[%s23 + $0x8] sm:$0xff]
    %v4128 = vld [vmem:[%s23 + $0x10] sm:$0xff]
    %v4129 = vld [vmem:[%s23 + $0x18] sm:$0x3]
    %v4131 = vsel %vm2264, %v4125, 0
    %v4134 = vsel %vm2278, %v4129, 0
    %4136 = vmatprep.subr.mxu0 0.0
    %4137 = vmatpush1.msra.mxu0 0.0
    %4138 = vmatprep.subr.mxu0 0.0
    %4139 = vmatpush1.msra.mxu0 0.0
    %4140 = vmatprep.subr.mxu0 0.0
    %4141 = vmatpush1.msra.mxu0 0.0
    %4142 = vmatprep.subr.mxu0 0.0
    %4143 = vmatpush1.msra.mxu0 0.0
    %4144 = vmatprep.subr.mxu0 0.0
    %4145 = vmatpush1.msra.mxu0 0.0
    %4146 = vmatprep.subr.mxu0 0.0
    %4147 = vmatpush1.msra.mxu0 0.0
    %4148 = vmatprep.subr.mxu0 0.0
    %4149 = vmatpush1.msra.mxu0 0.0
    %4150 = vmatprep.subr.mxu0 0.0
    %4151 = vmatpush1.msra.mxu0 0.0
    %4152 = vmatprep.subr.mxu0 0.0
    %4153 = vmatpush1.msra.mxu0 0.0
    %4154 = vmatprep.subr.mxu0 0.0
    %4155 = vmatpush1.msra.mxu0 0.0
    %4156 = vmatprep.subr.mxu0 0.0
    %4157 = vmatpush1.msra.mxu0 0.0
    %4158 = vmatprep.subr.mxu0 0.0
    %4159 = vmatpush1.msra.mxu0 0.0
    %4160 = vmatprep.subr.mxu0 0.0
    %4161 = vmatpush1.msra.mxu0 %v4134
    %4162 = vmatprep.subr.mxu0 0.0
    %4163 = vmatpush1.msra.mxu0 %v4128
    %4164 = vmatprep.subr.mxu0 0.0
    %4165 = vmatpush1.msra.mxu0 %v4127
    %4166 = vmatprep.subr.mxu0 0.0
    %4167 = vmatpush1.msra.mxu0 %v4126
    %4168 = vmatprep.subr.mxu0 0.0
    %4169 = vmatpush2.msra.mxu0 0.0
    %4170 = vmatprep.subr.mxu0 0.0
    %4171 = vmatpush2.msra.mxu0 0.0
    %4172 = vmatprep.subr.mxu0 0.0
    %4173 = vmatpush2.msra.mxu0 0.0
    %4174 = vmatprep.subr.mxu0 0.0
    %4175 = vmatpush2.msra.mxu0 0.0
    %4176 = vmatprep.subr.mxu0 0.0
    %4177 = vmatpush2.msra.mxu0 0.0
    %4178 = vmatprep.subr.mxu0 0.0
    %4179 = vmatpush2.msra.mxu0 0.0
    %4180 = vmatprep.subr.mxu0 0.0
    %4181 = vmatpush2.msra.mxu0 0.0
    %4182 = vmatprep.subr.mxu0 0.0
    %4183 = vmatpush2.msra.mxu0 0.0
    %4184 = vmatprep.subr.mxu0 0.0
    %4185 = vmatpush2.msra.mxu0 0.0
    %4186 = vmatprep.subr.mxu0 0.0
    %4187 = vmatpush2.msra.mxu0 0.0
    %4188 = vmatprep.subr.mxu0 0.0
    %4189 = vmatpush2.msra.mxu0 0.0
    %4190 = vmatprep.subr.mxu0 0.0
    %4191 = vmatpush2.msra.mxu0 0.0
    %4192 = vmatprep.subr.mxu0 0.0
    %4193 = vmatpush2.msra.mxu0 0.0
    %4194 = vmatprep.subr.mxu0 0.0
    %4195 = vmatpush2.msra.mxu0 0.0
    %4196 = vmatprep.subr.mxu0 0.0
    %4197 = vmatpush2.msra.mxu0 0.0
    %4198 = vmatprep.subr.mxu0 0.0
    %4199 = vmatpush2.msra.mxu0 0.0
    %4200 = vmatprep.mubr.f32.mxu0 0.0
    %4201 = vmatmul.mubr.f32.gmra.mxu0 %v4131
    %v4202 = vpop.f32.mrf.mxu0
    %v4203 = vadd.f32 0.0, %v4202
    %v4204 = vpop.f32.mrf.mxu0
    %4205 = vdwg.mxu0
    %v4206 = vrcp.pop %v4203
    %v4207 = vmul.f32 %v4125, %v4206
    %v4209 = vsel %vm2264, %v4207, 0
    %v4211 = vsel %vm2278, %v4031, 0
    %4213 = vmatprep.subr.mxu0 0.0
    %4214 = vmatpush1.msra.mxu0 0.0
    %4215 = vmatprep.subr.mxu0 0.0
    %4216 = vmatpush1.msra.mxu0 0.0
    %4217 = vmatprep.subr.mxu0 0.0
    %4218 = vmatpush1.msra.mxu0 0.0
    %4219 = vmatprep.subr.mxu0 0.0
    %4220 = vmatpush1.msra.mxu0 0.0
    %4221 = vmatprep.subr.mxu0 0.0
    %4222 = vmatpush1.msra.mxu0 0.0
    %4223 = vmatprep.subr.mxu0 0.0
    %4224 = vmatpush1.msra.mxu0 0.0
    %4225 = vmatprep.subr.mxu0 0.0
    %4226 = vmatpush1.msra.mxu0 0.0
    %4227 = vmatprep.subr.mxu0 0.0
    %4228 = vmatpush1.msra.mxu0 0.0
    %4229 = vmatprep.subr.mxu0 0.0
    %4230 = vmatpush1.msra.mxu0 0.0
    %4231 = vmatprep.subr.mxu0 0.0
    %4232 = vmatpush1.msra.mxu0 0.0
    %4233 = vmatprep.subr.mxu0 0.0
    %4234 = vmatpush1.msra.mxu0 0.0
    %4235 = vmatprep.subr.mxu0 0.0
    %4236 = vmatpush1.msra.mxu0 0.0
    %4237 = vmatprep.subr.mxu0 0.0
    %4238 = vmatpush1.msra.mxu0 %v4211
    %4239 = vmatprep.subr.mxu0 0.0
    %4240 = vmatpush1.msra.mxu0 %v4026
    %4241 = vmatprep.subr.mxu0 0.0
    %4242 = vmatpush1.msra.mxu0 %v4021
    %4243 = vmatprep.subr.mxu0 0.0
    %4244 = vmatpush1.msra.mxu0 %v4016
    %4245 = vmatprep.subr.mxu0 0.0
    %4246 = vmatpush2.msra.mxu0 0.0
    %4247 = vmatprep.subr.mxu0 0.0
    %4248 = vmatpush2.msra.mxu0 0.0
    %4249 = vmatprep.subr.mxu0 0.0
    %4250 = vmatpush2.msra.mxu0 0.0
    %4251 = vmatprep.subr.mxu0 0.0
    %4252 = vmatpush2.msra.mxu0 0.0
    %4253 = vmatprep.subr.mxu0 0.0
    %4254 = vmatpush2.msra.mxu0 0.0
    %4255 = vmatprep.subr.mxu0 0.0
    %4256 = vmatpush2.msra.mxu0 0.0
    %4257 = vmatprep.subr.mxu0 0.0
    %4258 = vmatpush2.msra.mxu0 0.0
    %4259 = vmatprep.subr.mxu0 0.0
    %4260 = vmatpush2.msra.mxu0 0.0
    %4261 = vmatprep.subr.mxu0 0.0
    %4262 = vmatpush2.msra.mxu0 0.0
    %4263 = vmatprep.subr.mxu0 0.0
    %4264 = vmatpush2.msra.mxu0 0.0
    %4265 = vmatprep.subr.mxu0 0.0
    %4266 = vmatpush2.msra.mxu0 0.0
    %4267 = vmatprep.subr.mxu0 0.0
    %4268 = vmatpush2.msra.mxu0 0.0
    %4269 = vmatprep.subr.mxu0 0.0
    %4270 = vmatpush2.msra.mxu0 0.0
    %4271 = vmatprep.subr.mxu0 0.0
    %4272 = vmatpush2.msra.mxu0 0.0
    %4273 = vmatprep.subr.mxu0 0.0
    %4274 = vmatpush2.msra.mxu0 0.0
    %4275 = vmatprep.subr.mxu0 0.0
    %4276 = vmatpush2.msra.mxu0 0.0
    %4277 = vmatprep.mubr.f32.mxu0 0.0
    %4278 = vmatmul.mubr.f32.gmra.mxu0 %v4209
    %v4279 = vpop.f32.mrf.mxu0
    %v4280 = vadd.f32 0.0, %v4279
    %v4281 = vpop.f32.mrf.mxu0
    %4282 = vdwg.mxu0
    %v4283 = vmul.f32 %v2426, 0.2
    %v4284 = vmul.f32 %v4280, 0.2
    %v4285 = vld [vmem:[#allocation17] sm:$0xff]
    %v4286 = vld [vmem:[#allocation17 + $0x8] sm:$0xff]
    %v4287 = vld [vmem:[#allocation17 + $0x10] sm:$0xff]
    %v4288 = vld [vmem:[#allocation17 + $0x18] sm:$0xff]
    %v4289 = vld [vmem:[#allocation18] sm:$0x1]
    %v4291 = vlaneseq
    %v4292 = vshrl.u32 %v4291, 7
    %v4293 = vsub.s32 0, %v4292
    %v4294 = vrot.slane %v4289, %v4293
    %v4297 = vsel %vm391, %v4283, 0
    %v4300 = vsel %vm391, %v4284, 0
    %4302 = vmatprep.subr.mxu0 0.0
    %4303 = vmatpush1.msra.mxu0 0.0
    %4304 = vmatprep.subr.mxu0 0.0
    %4305 = vmatpush1.msra.mxu0 0.0
    %4306 = vmatprep.subr.mxu0 0.0
    %4307 = vmatpush1.msra.mxu0 0.0
    %4308 = vmatprep.subr.mxu0 0.0
    %4309 = vmatpush1.msra.mxu0 0.0
    %4310 = vmatprep.subr.mxu0 0.0
    %4311 = vmatpush1.msra.mxu0 0.0
    %4312 = vmatprep.subr.mxu0 0.0
    %4313 = vmatpush1.msra.mxu0 0.0
    %4314 = vmatprep.subr.mxu0 0.0
    %4315 = vmatpush1.msra.mxu0 0.0
    %4316 = vmatprep.subr.mxu0 0.0
    %4317 = vmatpush1.msra.mxu0 0.0
    %4318 = vmatprep.subr.mxu0 0.0
    %4319 = vmatpush1.msra.mxu0 0.0
    %4320 = vmatprep.subr.mxu0 0.0
    %4321 = vmatpush1.msra.mxu0 0.0
    %4322 = vmatprep.subr.mxu0 0.0
    %4323 = vmatpush1.msra.mxu0 0.0
    %4324 = vmatprep.subr.mxu0 0.0
    %4325 = vmatpush1.msra.mxu0 0.0
    %4326 = vmatprep.subr.mxu0 0.0
    %4327 = vmatpush1.msra.mxu0 %v4288
    %4328 = vmatprep.subr.mxu0 0.0
    %4329 = vmatpush1.msra.mxu0 %v4287
    %4330 = vmatprep.subr.mxu0 0.0
    %4331 = vmatpush1.msra.mxu0 %v4286
    %4332 = vmatprep.subr.mxu0 0.0
    %4333 = vmatpush1.msra.mxu0 %v4285
    %4334 = vmatprep.subr.mxu0 0.0
    %4335 = vmatpush2.msra.mxu0 0.0
    %4336 = vmatprep.subr.mxu0 0.0
    %4337 = vmatpush2.msra.mxu0 0.0
    %4338 = vmatprep.subr.mxu0 0.0
    %4339 = vmatpush2.msra.mxu0 0.0
    %4340 = vmatprep.subr.mxu0 0.0
    %4341 = vmatpush2.msra.mxu0 0.0
    %4342 = vmatprep.subr.mxu0 0.0
    %4343 = vmatpush2.msra.mxu0 0.0
    %4344 = vmatprep.subr.mxu0 0.0
    %4345 = vmatpush2.msra.mxu0 0.0
    %4346 = vmatprep.subr.mxu0 0.0
    %4347 = vmatpush2.msra.mxu0 0.0
    %4348 = vmatprep.subr.mxu0 0.0
    %4349 = vmatpush2.msra.mxu0 0.0
    %4350 = vmatprep.subr.mxu0 0.0
    %4351 = vmatpush2.msra.mxu0 0.0
    %4352 = vmatprep.subr.mxu0 0.0
    %4353 = vmatpush2.msra.mxu0 0.0
    %4354 = vmatprep.subr.mxu0 0.0
    %4355 = vmatpush2.msra.mxu0 0.0
    %4356 = vmatprep.subr.mxu0 0.0
    %4357 = vmatpush2.msra.mxu0 0.0
    %4358 = vmatprep.subr.mxu0 0.0
    %4359 = vmatpush2.msra.mxu0 0.0
    %4360 = vmatprep.subr.mxu0 0.0
    %4361 = vmatpush2.msra.mxu0 0.0
    %4362 = vmatprep.subr.mxu0 0.0
    %4363 = vmatpush2.msra.mxu0 0.0
    %4364 = vmatprep.subr.mxu0 0.0
    %4365 = vmatpush2.msra.mxu0 0.0
    %4366 = vmatprep.mubr.f32.mxu0 0.0
    %4367 = vmatmul.mubr.f32.gmra.mxu0 %v4297
    %v4368 = vpop.f32.mrf.mxu0
    %v4369 = vadd.f32 %v4294, %v4368
    %v4370 = vpop.f32.mrf.mxu0
    %4371 = vmatprep.mubr.f32.mxu0 0.0
    %4372 = vmatmul.mubr.f32.gmra.mxu0 %v4300
    %v4373 = vpop.f32.mrf.mxu0
    %v4374 = vadd.f32 %v4294, %v4373
    %v4375 = vpop.f32.mrf.mxu0
    %4376 = vdwg.mxu0
    %v4377 = vtanh.pop %v4369
    %v4378 = vtanh.pop %v4374
    %v4379 = vadd.f32 %v381, %v4377
    %v4380 = vadd.f32 %v383, %v4378
    %4381 = vst.msk [vmem:[#allocation39] sm:$0xff] %vm391, %v4379
    %s4382 = scalar_lea.vmem [#allocation39], 8
    %4383 = vst.msk [vmem:[%s4382] sm:$0xff] %vm391, %v4380
    %v4384 = vld [vmem:[#allocation20] sm:$0xff]
    %v4385 = vld [vmem:[#allocation20 + $0x8] sm:$0xff]
    %v4386 = vld [vmem:[#allocation20 + $0x10] sm:$0xff]
    %v4387 = vld [vmem:[#allocation20 + $0x18] sm:$0xff]
    %v4388 = vld [vmem:[#allocation21] sm:$0x1]
    %v4390 = vlaneseq
    %v4391 = vshrl.u32 %v4390, 7
    %v4392 = vsub.s32 0, %v4391
    %v4393 = vrot.slane %v4388, %v4392
    %v4396 = vsel %vm391, %v4379, 0
    %v4399 = vsel %vm391, %v4380, 0
    %4401 = vmatprep.subr.mxu0 0.0
    %4402 = vmatpush1.msra.mxu0 0.0
    %4403 = vmatprep.subr.mxu0 0.0
    %4404 = vmatpush1.msra.mxu0 0.0
    %4405 = vmatprep.subr.mxu0 0.0
    %4406 = vmatpush1.msra.mxu0 0.0
    %4407 = vmatprep.subr.mxu0 0.0
    %4408 = vmatpush1.msra.mxu0 0.0
    %4409 = vmatprep.subr.mxu0 0.0
    %4410 = vmatpush1.msra.mxu0 0.0
    %4411 = vmatprep.subr.mxu0 0.0
    %4412 = vmatpush1.msra.mxu0 0.0
    %4413 = vmatprep.subr.mxu0 0.0
    %4414 = vmatpush1.msra.mxu0 0.0
    %4415 = vmatprep.subr.mxu0 0.0
    %4416 = vmatpush1.msra.mxu0 0.0
    %4417 = vmatprep.subr.mxu0 0.0
    %4418 = vmatpush1.msra.mxu0 0.0
    %4419 = vmatprep.subr.mxu0 0.0
    %4420 = vmatpush1.msra.mxu0 0.0
    %4421 = vmatprep.subr.mxu0 0.0
    %4422 = vmatpush1.msra.mxu0 0.0
    %4423 = vmatprep.subr.mxu0 0.0
    %4424 = vmatpush1.msra.mxu0 0.0
    %4425 = vmatprep.subr.mxu0 0.0
    %4426 = vmatpush1.msra.mxu0 %v4387
    %4427 = vmatprep.subr.mxu0 0.0
    %4428 = vmatpush1.msra.mxu0 %v4386
    %4429 = vmatprep.subr.mxu0 0.0
    %4430 = vmatpush1.msra.mxu0 %v4385
    %4431 = vmatprep.subr.mxu0 0.0
    %4432 = vmatpush1.msra.mxu0 %v4384
    %4433 = vmatprep.subr.mxu0 0.0
    %4434 = vmatpush2.msra.mxu0 0.0
    %4435 = vmatprep.subr.mxu0 0.0
    %4436 = vmatpush2.msra.mxu0 0.0
    %4437 = vmatprep.subr.mxu0 0.0
    %4438 = vmatpush2.msra.mxu0 0.0
    %4439 = vmatprep.subr.mxu0 0.0
    %4440 = vmatpush2.msra.mxu0 0.0
    %4441 = vmatprep.subr.mxu0 0.0
    %4442 = vmatpush2.msra.mxu0 0.0
    %4443 = vmatprep.subr.mxu0 0.0
    %4444 = vmatpush2.msra.mxu0 0.0
    %4445 = vmatprep.subr.mxu0 0.0
    %4446 = vmatpush2.msra.mxu0 0.0
    %4447 = vmatprep.subr.mxu0 0.0
    %4448 = vmatpush2.msra.mxu0 0.0
    %4449 = vmatprep.subr.mxu0 0.0
    %4450 = vmatpush2.msra.mxu0 0.0
    %4451 = vmatprep.subr.mxu0 0.0
    %4452 = vmatpush2.msra.mxu0 0.0
    %4453 = vmatprep.subr.mxu0 0.0
    %4454 = vmatpush2.msra.mxu0 0.0
    %4455 = vmatprep.subr.mxu0 0.0
    %4456 = vmatpush2.msra.mxu0 0.0
    %4457 = vmatprep.subr.mxu0 0.0
    %4458 = vmatpush2.msra.mxu0 0.0
    %4459 = vmatprep.subr.mxu0 0.0
    %4460 = vmatpush2.msra.mxu0 0.0
    %4461 = vmatprep.subr.mxu0 0.0
    %4462 = vmatpush2.msra.mxu0 0.0
    %4463 = vmatprep.subr.mxu0 0.0
    %4464 = vmatpush2.msra.mxu0 0.0
    %4465 = vmatprep.mubr.f32.mxu0 0.0
    %4466 = vmatmul.mubr.f32.gmra.mxu0 %v4396
    %v4467 = vpop.f32.mrf.mxu0
    %v4468 = vadd.f32 %v4393, %v4467
    %v4469 = vpop.f32.mrf.mxu0
    %4470 = vmatprep.mubr.f32.mxu0 0.0
    %4471 = vmatmul.mubr.f32.gmra.mxu0 %v4399
    %v4472 = vpop.f32.mrf.mxu0
    %v4473 = vadd.f32 %v4393, %v4472
    %v4474 = vpop.f32.mrf.mxu0
    %4475 = vdwg.mxu0
    %v4476 = vld [vmem:[%s35] sm:$0xff]
    %v4477 = vld [vmem:[%s35 + $0x8] sm:$0xff]
    %v4478 = vld [vmem:[%s35 + $0x10] sm:$0xff]
    %v4479 = vld [vmem:[%s35 + $0x18] sm:$0xff]
    %v4480 = vld [vmem:[#allocation2] sm:$0x1]
    %v4482 = vlaneseq
    %v4483 = vshrl.u32 %v4482, 7
    %v4484 = vsub.s32 0, %v4483
    %v4485 = vrot.slane %v4480, %v4484
    %4487 = vmatprep.subr.mxu0 0.0
    %4488 = vmatpush1.msra.mxu0 0.0
    %4489 = vmatprep.subr.mxu0 0.0
    %4490 = vmatpush1.msra.mxu0 0.0
    %4491 = vmatprep.subr.mxu0 0.0
    %4492 = vmatpush1.msra.mxu0 0.0
    %4493 = vmatprep.subr.mxu0 0.0
    %4494 = vmatpush1.msra.mxu0 0.0
    %4495 = vmatprep.subr.mxu0 0.0
    %4496 = vmatpush1.msra.mxu0 0.0
    %4497 = vmatprep.subr.mxu0 0.0
    %4498 = vmatpush1.msra.mxu0 0.0
    %4499 = vmatprep.subr.mxu0 0.0
    %4500 = vmatpush1.msra.mxu0 0.0
    %4501 = vmatprep.subr.mxu0 0.0
    %4502 = vmatpush1.msra.mxu0 0.0
    %4503 = vmatprep.subr.mxu0 0.0
    %4504 = vmatpush1.msra.mxu0 0.0
    %4505 = vmatprep.subr.mxu0 0.0
    %4506 = vmatpush1.msra.mxu0 0.0
    %4507 = vmatprep.subr.mxu0 0.0
    %4508 = vmatpush1.msra.mxu0 0.0
    %4509 = vmatprep.subr.mxu0 0.0
    %4510 = vmatpush1.msra.mxu0 0.0
    %4511 = vmatprep.subr.mxu0 0.0
    %4512 = vmatpush1.msra.mxu0 %v4479
    %4513 = vmatprep.subr.mxu0 0.0
    %4514 = vmatpush1.msra.mxu0 %v4478
    %4515 = vmatprep.subr.mxu0 0.0
    %4516 = vmatpush1.msra.mxu0 %v4477
    %4517 = vmatprep.subr.mxu0 0.0
    %4518 = vmatpush1.msra.mxu0 %v4476
    %4519 = vmatprep.subr.mxu0 0.0
    %4520 = vmatpush2.msra.mxu0 0.0
    %4521 = vmatprep.subr.mxu0 0.0
    %4522 = vmatpush2.msra.mxu0 0.0
    %4523 = vmatprep.subr.mxu0 0.0
    %4524 = vmatpush2.msra.mxu0 0.0
    %4525 = vmatprep.subr.mxu0 0.0
    %4526 = vmatpush2.msra.mxu0 0.0
    %4527 = vmatprep.subr.mxu0 0.0
    %4528 = vmatpush2.msra.mxu0 0.0
    %4529 = vmatprep.subr.mxu0 0.0
    %4530 = vmatpush2.msra.mxu0 0.0
    %4531 = vmatprep.subr.mxu0 0.0
    %4532 = vmatpush2.msra.mxu0 0.0
    %4533 = vmatprep.subr.mxu0 0.0
    %4534 = vmatpush2.msra.mxu0 0.0
    %4535 = vmatprep.subr.mxu0 0.0
    %4536 = vmatpush2.msra.mxu0 0.0
    %4537 = vmatprep.subr.mxu0 0.0
    %4538 = vmatpush2.msra.mxu0 0.0
    %4539 = vmatprep.subr.mxu0 0.0
    %4540 = vmatpush2.msra.mxu0 0.0
    %4541 = vmatprep.subr.mxu0 0.0
    %4542 = vmatpush2.msra.mxu0 0.0
    %4543 = vmatprep.subr.mxu0 0.0
    %4544 = vmatpush2.msra.mxu0 0.0
    %4545 = vmatprep.subr.mxu0 0.0
    %4546 = vmatpush2.msra.mxu0 0.0
    %4547 = vmatprep.subr.mxu0 0.0
    %4548 = vmatpush2.msra.mxu0 0.0
    %4549 = vmatprep.subr.mxu0 0.0
    %4550 = vmatpush2.msra.mxu0 0.0
    %4551 = vmatprep.mubr.f32.mxu0 0.0
    %4552 = vmatmul.mubr.f32.gmra.mxu0 %v4396
    %v4553 = vpop.f32.mrf.mxu0
    %v4554 = vadd.f32 %v4485, %v4553
    %v4555 = vpop.f32.mrf.mxu0
    %4556 = vmatprep.mubr.f32.mxu0 0.0
    %4557 = vmatmul.mubr.f32.gmra.mxu0 %v4399
    %v4558 = vpop.f32.mrf.mxu0
    %v4559 = vadd.f32 %v4485, %v4558
    %v4560 = vpop.f32.mrf.mxu0
    %4561 = vdwg.mxu0
    %vm4562 = vcmp.ge.f32.partialorder %v4554, 0.0
    %vm4563 = vcmp.ge.f32.partialorder %v4559, 0.0
    %v4564 = vmul.f32 %v4554, 0.01
    %v4565 = vmul.f32 %v4559, 0.01
    %v4566 = vsel %vm4562, %v4554, %v4564
    %v4567 = vsel %vm4563, %v4559, %v4565
    %4569 = vset.pattern.permute.xlu0 0
    %4570 = vperm.xlu0 %4569, %v4566
    %v4571 = vpop.permute.xlu0 %4570
    %4574 = vset.pattern.permute.xlu0 0
    %4575 = vperm.xlu0 %4574, %v4567
    %v4576 = vpop.permute.xlu0 %4575
    %v4578 = vmul.f32 %v4571, %v4468
    %v4579 = vmul.f32 %v4576, %v4473
    %4582 = vrot.lane.b32.xlu0 %v2074, 32
    %v4583 = vpop.permute.xlu0 %4582
    %4584 = vrot.lane.b32.xlu0 %v3930, 32
    %v4585 = vpop.permute.xlu0 %4584
    %4588 = vrot.lane.b32.xlu0 %v384, 64
    %v4589 = vpop.permute.xlu0 %4588
    %4590 = vrot.lane.b32.xlu0 %v386, 64
    %v4591 = vpop.permute.xlu0 %4590
    %v4594 = vsel %vm391, %v4578, %v4583
    %v4595 = vsel %vm391, %v4579, %v4585
    %vm4596 = vcmask 523264
    %v4597 = vsel %vm4596, %v4594, %v4589
    %v4598 = vsel %vm4596, %v4595, %v4591
    %s4599 = scalar_lea.vmem [#allocation8], 2
    %v4600 = vld [vmem:[%s4599] sm:$0x3]
    %v4601 = vld [vmem:[#allocation23] sm:$0xff]
    %v4602 = vld [vmem:[#allocation23 + $0x8] sm:$0xff]
    %v4603 = vld [vmem:[#allocation23 + $0x10] sm:$0xff]
    %v4604 = vld [vmem:[#allocation23 + $0x18] sm:$0xff]
    %v4606 = vsel %vm391, %v4600, 0
    %4608 = vmatprep.subr.mxu0 0.0
    %4609 = vmatpush1.msra.mxu0 0.0
    %4610 = vmatprep.subr.mxu0 0.0
    %4611 = vmatpush1.msra.mxu0 0.0
    %4612 = vmatprep.subr.mxu0 0.0
    %4613 = vmatpush1.msra.mxu0 0.0
    %4614 = vmatprep.subr.mxu0 0.0
    %4615 = vmatpush1.msra.mxu0 0.0
    %4616 = vmatprep.subr.mxu0 0.0
    %4617 = vmatpush1.msra.mxu0 0.0
    %4618 = vmatprep.subr.mxu0 0.0
    %4619 = vmatpush1.msra.mxu0 0.0
    %4620 = vmatprep.subr.mxu0 0.0
    %4621 = vmatpush1.msra.mxu0 0.0
    %4622 = vmatprep.subr.mxu0 0.0
    %4623 = vmatpush1.msra.mxu0 0.0
    %4624 = vmatprep.subr.mxu0 0.0
    %4625 = vmatpush1.msra.mxu0 0.0
    %4626 = vmatprep.subr.mxu0 0.0
    %4627 = vmatpush1.msra.mxu0 0.0
    %4628 = vmatprep.subr.mxu0 0.0
    %4629 = vmatpush1.msra.mxu0 0.0
    %4630 = vmatprep.subr.mxu0 0.0
    %4631 = vmatpush1.msra.mxu0 0.0
    %4632 = vmatprep.subr.mxu0 0.0
    %4633 = vmatpush1.msra.mxu0 %v4604
    %4634 = vmatprep.subr.mxu0 0.0
    %4635 = vmatpush1.msra.mxu0 %v4603
    %4636 = vmatprep.subr.mxu0 0.0
    %4637 = vmatpush1.msra.mxu0 %v4602
    %4638 = vmatprep.subr.mxu0 0.0
    %4639 = vmatpush1.msra.mxu0 %v4601
    %4640 = vmatprep.subr.mxu0 0.0
    %4641 = vmatpush2.msra.mxu0 0.0
    %4642 = vmatprep.subr.mxu0 0.0
    %4643 = vmatpush2.msra.mxu0 0.0
    %4644 = vmatprep.subr.mxu0 0.0
    %4645 = vmatpush2.msra.mxu0 0.0
    %4646 = vmatprep.subr.mxu0 0.0
    %4647 = vmatpush2.msra.mxu0 0.0
    %4648 = vmatprep.subr.mxu0 0.0
    %4649 = vmatpush2.msra.mxu0 0.0
    %4650 = vmatprep.subr.mxu0 0.0
    %4651 = vmatpush2.msra.mxu0 0.0
    %4652 = vmatprep.subr.mxu0 0.0
    %4653 = vmatpush2.msra.mxu0 0.0
    %4654 = vmatprep.subr.mxu0 0.0
    %4655 = vmatpush2.msra.mxu0 0.0
    %4656 = vmatprep.subr.mxu0 0.0
    %4657 = vmatpush2.msra.mxu0 0.0
    %4658 = vmatprep.subr.mxu0 0.0
    %4659 = vmatpush2.msra.mxu0 0.0
    %4660 = vmatprep.subr.mxu0 0.0
    %4661 = vmatpush2.msra.mxu0 0.0
    %4662 = vmatprep.subr.mxu0 0.0
    %4663 = vmatpush2.msra.mxu0 0.0
    %4664 = vmatprep.subr.mxu0 0.0
    %4665 = vmatpush2.msra.mxu0 0.0
    %4666 = vmatprep.subr.mxu0 0.0
    %4667 = vmatpush2.msra.mxu0 0.0
    %4668 = vmatprep.subr.mxu0 0.0
    %4669 = vmatpush2.msra.mxu0 0.0
    %4670 = vmatprep.subr.mxu0 0.0
    %4671 = vmatpush2.msra.mxu0 0.0
    %4672 = vmatprep.mubr.f32.mxu0 0.0
    %4673 = vmatmul.mubr.f32.gmra.mxu0 %v4606
    %v4674 = vpop.f32.mrf.mxu0
    %v4675 = vadd.f32 0.0, %v4674
    %v4676 = vpop.f32.mrf.mxu0
    %4677 = vdwg.mxu0
    %v4678 = vld [vmem:[%s47] sm:$0xff]
    %v4679 = vld [vmem:[%s47 + $0x8] sm:$0xff]
    %v4680 = vld [vmem:[%s41] sm:$0xff]
    %v4681 = vld [vmem:[%s41 + $0x8] sm:$0xff]
    %v4682 = vld [vmem:[%s41 + $0x10] sm:$0xff]
    %v4683 = vld [vmem:[%s41 + $0x18] sm:$0xff]
    %v4684 = vld [vmem:[%s41 + $0x20] sm:$0xff]
    %v4685 = vld [vmem:[%s41 + $0x28] sm:$0xff]
    %v4686 = vld [vmem:[%s41 + $0x30] sm:$0xff]
    %v4687 = vld [vmem:[%s41 + $0x38] sm:$0xff]
    %v4688 = vld [vmem:[%s41 + $0x40] sm:$0xff]
    %v4689 = vld [vmem:[%s41 + $0x48] sm:$0xff]
    %v4690 = vld [vmem:[%s41 + $0x50] sm:$0xff]
    %v4691 = vld [vmem:[%s41 + $0x58] sm:$0xff]
    %vm4692 = vcmask 785408
    %v4694 = vsel %vm4692, %v4597, 0
    %v4697 = vsel %vm4692, %v4598, 0
    %4699 = vmatprep.subr.mxu0 0.0
    %4700 = vmatpush1.msra.mxu0 0.0
    %4701 = vmatprep.subr.mxu0 0.0
    %4702 = vmatpush1.msra.mxu0 0.0
    %4703 = vmatprep.subr.mxu0 0.0
    %4704 = vmatpush1.msra.mxu0 0.0
    %4705 = vmatprep.subr.mxu0 0.0
    %4706 = vmatpush1.msra.mxu0 0.0
    %4707 = vmatprep.subr.mxu0 0.0
    %4708 = vmatpush1.msra.mxu0 %v4691
    %4709 = vmatprep.subr.mxu0 0.0
    %4710 = vmatpush1.msra.mxu0 %v4690
    %4711 = vmatprep.subr.mxu0 0.0
    %4712 = vmatpush1.msra.mxu0 %v4689
    %4713 = vmatprep.subr.mxu0 0.0
    %4714 = vmatpush1.msra.mxu0 %v4688
    %4715 = vmatprep.subr.mxu0 0.0
    %4716 = vmatpush1.msra.mxu0 %v4687
    %4717 = vmatprep.subr.mxu0 0.0
    %4718 = vmatpush1.msra.mxu0 %v4686
    %4719 = vmatprep.subr.mxu0 0.0
    %4720 = vmatpush1.msra.mxu0 %v4685
    %4721 = vmatprep.subr.mxu0 0.0
    %4722 = vmatpush1.msra.mxu0 %v4684
    %4723 = vmatprep.subr.mxu0 0.0
    %4724 = vmatpush1.msra.mxu0 %v4683
    %4725 = vmatprep.subr.mxu0 0.0
    %4726 = vmatpush1.msra.mxu0 %v4682
    %4727 = vmatprep.subr.mxu0 0.0
    %4728 = vmatpush1.msra.mxu0 %v4681
    %4729 = vmatprep.subr.mxu0 0.0
    %4730 = vmatpush1.msra.mxu0 %v4680
    %4731 = vmatprep.subr.mxu0 0.0
    %4732 = vmatpush2.msra.mxu0 0.0
    %4733 = vmatprep.subr.mxu0 0.0
    %4734 = vmatpush2.msra.mxu0 0.0
    %4735 = vmatprep.subr.mxu0 0.0
    %4736 = vmatpush2.msra.mxu0 0.0
    %4737 = vmatprep.subr.mxu0 0.0
    %4738 = vmatpush2.msra.mxu0 0.0
    %4739 = vmatprep.subr.mxu0 0.0
    %4740 = vmatpush2.msra.mxu0 0.0
    %4741 = vmatprep.subr.mxu0 0.0
    %4742 = vmatpush2.msra.mxu0 0.0
    %4743 = vmatprep.subr.mxu0 0.0
    %4744 = vmatpush2.msra.mxu0 0.0
    %4745 = vmatprep.subr.mxu0 0.0
    %4746 = vmatpush2.msra.mxu0 0.0
    %4747 = vmatprep.subr.mxu0 0.0
    %4748 = vmatpush2.msra.mxu0 0.0
    %4749 = vmatprep.subr.mxu0 0.0
    %4750 = vmatpush2.msra.mxu0 0.0
    %4751 = vmatprep.subr.mxu0 0.0
    %4752 = vmatpush2.msra.mxu0 0.0
    %4753 = vmatprep.subr.mxu0 0.0
    %4754 = vmatpush2.msra.mxu0 0.0
    %4755 = vmatprep.subr.mxu0 0.0
    %4756 = vmatpush2.msra.mxu0 0.0
    %4757 = vmatprep.subr.mxu0 0.0
    %4758 = vmatpush2.msra.mxu0 0.0
    %4759 = vmatprep.subr.mxu0 0.0
    %4760 = vmatpush2.msra.mxu0 0.0
    %4761 = vmatprep.subr.mxu0 0.0
    %4762 = vmatpush2.msra.mxu0 0.0
    %4763 = vmatprep.mubr.f32.mxu0 0.0
    %4764 = vmatmul.mubr.f32.gmra.mxu0 %v4694
    %v4765 = vpop.f32.mrf.mxu0
    %v4766 = vadd.f32 0.0, %v4765
    %v4767 = vpop.f32.mrf.mxu0
    %4768 = vmatprep.mubr.f32.mxu0 0.0
    %4769 = vmatmul.mubr.f32.gmra.mxu0 %v4697
    %v4770 = vpop.f32.mrf.mxu0
    %v4771 = vadd.f32 0.0, %v4770
    %v4772 = vpop.f32.mrf.mxu0
    %4773 = vdwg.mxu0
    %vm4774 = vcmask 15360
    %v4776 = vsel %vm4774, %v4678, 0
    %v4779 = vsel %vm4774, %v4679, 0
    %v4782 = vsel %vm2278, %v4675, 0
    %4784 = vmatprep.subr.mxu0 0.0
    %4785 = vmatpush1.msra.mxu0 0.0
    %4786 = vmatprep.subr.mxu0 0.0
    %4787 = vmatpush1.msra.mxu0 0.0
    %4788 = vmatprep.subr.mxu0 0.0
    %4789 = vmatpush1.msra.mxu0 0.0
    %4790 = vmatprep.subr.mxu0 0.0
    %4791 = vmatpush1.msra.mxu0 0.0
    %4792 = vmatprep.subr.mxu0 0.0
    %4793 = vmatpush1.msra.mxu0 0.0
    %4794 = vmatprep.subr.mxu0 0.0
    %4795 = vmatpush1.msra.mxu0 0.0
    %4796 = vmatprep.subr.mxu0 0.0
    %4797 = vmatpush1.msra.mxu0 0.0
    %4798 = vmatprep.subr.mxu0 0.0
    %4799 = vmatpush1.msra.mxu0 0.0
    %4800 = vmatprep.subr.mxu0 0.0
    %4801 = vmatpush1.msra.mxu0 0.0
    %4802 = vmatprep.subr.mxu0 0.0
    %4803 = vmatpush1.msra.mxu0 0.0
    %4804 = vmatprep.subr.mxu0 0.0
    %4805 = vmatpush1.msra.mxu0 0.0
    %4806 = vmatprep.subr.mxu0 0.0
    %4807 = vmatpush1.msra.mxu0 0.0
    %4808 = vmatprep.subr.mxu0 0.0
    %4809 = vmatpush1.msra.mxu0 0.0
    %4810 = vmatprep.subr.mxu0 0.0
    %4811 = vmatpush1.msra.mxu0 0.0
    %4812 = vmatprep.subr.mxu0 0.0
    %4813 = vmatpush1.msra.mxu0 0.0
    %4814 = vmatprep.subr.mxu0 0.0
    %4815 = vmatpush1.msra.mxu0 %v4782
    %4816 = vmatprep.subr.mxu0 0.0
    %4817 = vmatpush2.msra.mxu0 0.0
    %4818 = vmatprep.subr.mxu0 0.0
    %4819 = vmatpush2.msra.mxu0 0.0
    %4820 = vmatprep.subr.mxu0 0.0
    %4821 = vmatpush2.msra.mxu0 0.0
    %4822 = vmatprep.subr.mxu0 0.0
    %4823 = vmatpush2.msra.mxu0 0.0
    %4824 = vmatprep.subr.mxu0 0.0
    %4825 = vmatpush2.msra.mxu0 0.0
    %4826 = vmatprep.subr.mxu0 0.0
    %4827 = vmatpush2.msra.mxu0 0.0
    %4828 = vmatprep.subr.mxu0 0.0
    %4829 = vmatpush2.msra.mxu0 0.0
    %4830 = vmatprep.subr.mxu0 0.0
    %4831 = vmatpush2.msra.mxu0 0.0
    %4832 = vmatprep.subr.mxu0 0.0
    %4833 = vmatpush2.msra.mxu0 0.0
    %4834 = vmatprep.subr.mxu0 0.0
    %4835 = vmatpush2.msra.mxu0 0.0
    %4836 = vmatprep.subr.mxu0 0.0
    %4837 = vmatpush2.msra.mxu0 0.0
    %4838 = vmatprep.subr.mxu0 0.0
    %4839 = vmatpush2.msra.mxu0 0.0
    %4840 = vmatprep.subr.mxu0 0.0
    %4841 = vmatpush2.msra.mxu0 0.0
    %4842 = vmatprep.subr.mxu0 0.0
    %4843 = vmatpush2.msra.mxu0 0.0
    %4844 = vmatprep.subr.mxu0 0.0
    %4845 = vmatpush2.msra.mxu0 0.0
    %4846 = vmatprep.subr.mxu0 0.0
    %4847 = vmatpush2.msra.mxu0 0.0
    %4848 = vmatprep.mubr.f32.mxu0 0.0
    %4849 = vmatmul.mubr.f32.gmra.mxu0 %v4776
    %v4850 = vpop.f32.mrf.mxu0
    %v4851 = vadd.f32 %v4766, %v4850
    %v4852 = vpop.f32.mrf.mxu0
    %4853 = vmatprep.mubr.f32.mxu0 0.0
    %4854 = vmatmul.mubr.f32.gmra.mxu0 %v4779
    %v4855 = vpop.f32.mrf.mxu0
    %v4856 = vadd.f32 %v4771, %v4855
    %v4857 = vpop.f32.mrf.mxu0
    %4858 = vdwg.mxu0
    %v4859 = vld [vmem:[#allocation24] sm:$0x1]
    %v4861 = vlaneseq
    %v4862 = vshrl.u32 %v4861, 7
    %v4863 = vsub.s32 0, %v4862
    %v4864 = vrot.slane %v4859, %v4863
    %v4866 = vadd.f32 %v4851, %v4864
    %v4867 = vadd.f32 %v4856, %v4864
    %v4868 = vtanh.pop %v4866
    %v4869 = vtanh.pop %v4867
    %v4870 = vld [vmem:[%s45] sm:$0xff]
    %v4871 = vld [vmem:[%s45 + $0x8] sm:$0xff]
    %v4872 = vld [vmem:[%s45 + $0x10] sm:$0xff]
    %v4873 = vld [vmem:[%s45 + $0x18] sm:$0xff]
    %v4875 = vsel %vm391, %v4868, 0
    %v4878 = vsel %vm391, %v4869, 0
    %4880 = vmatprep.subr.mxu0 0.0
    %4881 = vmatpush1.msra.mxu0 0.0
    %4882 = vmatprep.subr.mxu0 0.0
    %4883 = vmatpush1.msra.mxu0 0.0
    %4884 = vmatprep.subr.mxu0 0.0
    %4885 = vmatpush1.msra.mxu0 0.0
    %4886 = vmatprep.subr.mxu0 0.0
    %4887 = vmatpush1.msra.mxu0 0.0
    %4888 = vmatprep.subr.mxu0 0.0
    %4889 = vmatpush1.msra.mxu0 0.0
    %4890 = vmatprep.subr.mxu0 0.0
    %4891 = vmatpush1.msra.mxu0 0.0
    %4892 = vmatprep.subr.mxu0 0.0
    %4893 = vmatpush1.msra.mxu0 0.0
    %4894 = vmatprep.subr.mxu0 0.0
    %4895 = vmatpush1.msra.mxu0 0.0
    %4896 = vmatprep.subr.mxu0 0.0
    %4897 = vmatpush1.msra.mxu0 0.0
    %4898 = vmatprep.subr.mxu0 0.0
    %4899 = vmatpush1.msra.mxu0 0.0
    %4900 = vmatprep.subr.mxu0 0.0
    %4901 = vmatpush1.msra.mxu0 0.0
    %4902 = vmatprep.subr.mxu0 0.0
    %4903 = vmatpush1.msra.mxu0 0.0
    %4904 = vmatprep.subr.mxu0 0.0
    %4905 = vmatpush1.msra.mxu0 %v4873
    %4906 = vmatprep.subr.mxu0 0.0
    %4907 = vmatpush1.msra.mxu0 %v4872
    %4908 = vmatprep.subr.mxu0 0.0
    %4909 = vmatpush1.msra.mxu0 %v4871
    %4910 = vmatprep.subr.mxu0 0.0
    %4911 = vmatpush1.msra.mxu0 %v4870
    %4912 = vmatprep.subr.mxu0 0.0
    %4913 = vmatpush2.msra.mxu0 0.0
    %4914 = vmatprep.subr.mxu0 0.0
    %4915 = vmatpush2.msra.mxu0 0.0
    %4916 = vmatprep.subr.mxu0 0.0
    %4917 = vmatpush2.msra.mxu0 0.0
    %4918 = vmatprep.subr.mxu0 0.0
    %4919 = vmatpush2.msra.mxu0 0.0
    %4920 = vmatprep.subr.mxu0 0.0
    %4921 = vmatpush2.msra.mxu0 0.0
    %4922 = vmatprep.subr.mxu0 0.0
    %4923 = vmatpush2.msra.mxu0 0.0
    %4924 = vmatprep.subr.mxu0 0.0
    %4925 = vmatpush2.msra.mxu0 0.0
    %4926 = vmatprep.subr.mxu0 0.0
    %4927 = vmatpush2.msra.mxu0 0.0
    %4928 = vmatprep.subr.mxu0 0.0
    %4929 = vmatpush2.msra.mxu0 0.0
    %4930 = vmatprep.subr.mxu0 0.0
    %4931 = vmatpush2.msra.mxu0 0.0
    %4932 = vmatprep.subr.mxu0 0.0
    %4933 = vmatpush2.msra.mxu0 0.0
    %4934 = vmatprep.subr.mxu0 0.0
    %4935 = vmatpush2.msra.mxu0 0.0
    %4936 = vmatprep.subr.mxu0 0.0
    %4937 = vmatpush2.msra.mxu0 0.0
    %4938 = vmatprep.subr.mxu0 0.0
    %4939 = vmatpush2.msra.mxu0 0.0
    %4940 = vmatprep.subr.mxu0 0.0
    %4941 = vmatpush2.msra.mxu0 0.0
    %4942 = vmatprep.subr.mxu0 0.0
    %4943 = vmatpush2.msra.mxu0 0.0
    %4944 = vmatprep.mubr.f32.mxu0 0.0
    %4945 = vmatmul.mubr.f32.gmra.mxu0 %v4875
    %v4946 = vpop.f32.mrf.mxu0
    %v4947 = vadd.f32 0.0, %v4946
    %v4948 = vpop.f32.mrf.mxu0
    %4949 = vmatprep.mubr.f32.mxu0 0.0
    %4950 = vmatmul.mubr.f32.gmra.mxu0 %v4878
    %v4951 = vpop.f32.mrf.mxu0
    %v4952 = vadd.f32 0.0, %v4951
    %v4953 = vpop.f32.mrf.mxu0
    %4954 = vdwg.mxu0
    %vm4955 = vcmask 7168
    %v4956 = vsel %vm4955, %v4947, -inf
    %v4957 = vrot.slane %v4956, 4
    %v4958 = vmax.f32 %v4956, %v4957
    %v4959 = vrot.slane %v4958, 2
    %v4960 = vmax.f32 %v4958, %v4959
    %v4961 = vrot.slane %v4960, 1
    %v4962 = vmax.f32 %v4960, %v4961
    %v4963 = vsub.f32 %v4947, %v4962
    %v4964 = vmul.f32 %v4963, 1.442695
    %v4965 = vpow.pop %v4964
    %v4966 = vsel %vm4955, %v4965, 0.0
    %v4967 = vrot.slane %v4966, 4
    %v4968 = vadd.f32 %v4966, %v4967
    %v4969 = vrot.slane %v4968, 2
    %v4970 = vadd.f32 %v4968, %v4969
    %v4971 = vrot.slane %v4970, 1
    %v4972 = vadd.f32 %v4970, %v4971
    %v4973 = vrcp.pop %v4972
    %v4974 = vmul.f32 %v4965, %v4973
    %4976 = vset.pattern.permute.xlu0 0
    %4977 = vperm.xlu0 %4976, %v4974
    %v4978 = vpop.permute.xlu0 %4977
    %v4980 = vmul.f32 %v4978, %v4597
    %v4981 = vsel %vm4692, %v4980, 0.0
    %v4982 = vrot.slane %v4981, 4
    %v4983 = vadd.f32 %v4981, %v4982
    %v4984 = vrot.slane %v4983, 2
    %v4985 = vadd.f32 %v4983, %v4984
    %v4986 = vrot.slane %v4985, 1
    %v4987 = vadd.f32 %v4985, %v4986
    %v4988 = vsel %vm4955, %v4952, -inf
    %v4989 = vrot.slane %v4988, 4
    %v4990 = vmax.f32 %v4988, %v4989
    %v4991 = vrot.slane %v4990, 2
    %v4992 = vmax.f32 %v4990, %v4991
    %v4993 = vrot.slane %v4992, 1
    %v4994 = vmax.f32 %v4992, %v4993
    %v4995 = vsub.f32 %v4952, %v4994
    %v4996 = vmul.f32 %v4995, 1.442695
    %v4997 = vpow.pop %v4996
    %v4998 = vsel %vm4955, %v4997, 0.0
    %v4999 = vrot.slane %v4998, 4
    %v5000 = vadd.f32 %v4998, %v4999
    %v5001 = vrot.slane %v5000, 2
    %v5002 = vadd.f32 %v5000, %v5001
    %v5003 = vrot.slane %v5002, 1
    %v5004 = vadd.f32 %v5002, %v5003
    %v5005 = vrcp.pop %v5004
    %v5006 = vmul.f32 %v4997, %v5005
    %5008 = vset.pattern.permute.xlu0 0
    %5009 = vperm.xlu0 %5008, %v5006
    %v5010 = vpop.permute.xlu0 %5009
    %v5012 = vmul.f32 %v5010, %v4598
    %v5013 = vsel %vm4692, %v5012, 0.0
    %v5014 = vrot.slane %v5013, 4
    %v5015 = vadd.f32 %v5013, %v5014
    %v5016 = vrot.slane %v5015, 2
    %v5017 = vadd.f32 %v5015, %v5016
    %v5018 = vrot.slane %v5017, 1
    %v5019 = vadd.f32 %v5017, %v5018
    %vm5020 = vcmask 1040384
    %v5021 = vsel %vm5020, %v4987, %v5019
    %v5022 = vld [vmem:[#allocation6] sm:$0x3]
    %5024 = vrot.lane.b32.xlu0 %v5022, 96
    %v5025 = vpop.permute.xlu0 %5024
    %v5027 = vsel %vm4692, %v5021, %v5025
    %v5028 = vld [vmem:[%s49] sm:$0xff]
    %v5029 = vld [vmem:[%s49 + $0x8] sm:$0xff]
    %v5030 = vld [vmem:[%s49 + $0x10] sm:$0xff]
    %v5031 = vld [vmem:[%s49 + $0x18] sm:$0xff]
    %v5032 = vld [vmem:[%s49 + $0x20] sm:$0xff]
    %v5033 = vld [vmem:[%s49 + $0x28] sm:$0xff]
    %v5034 = vld [vmem:[%s49 + $0x30] sm:$0xff]
    %v5035 = vld [vmem:[%s49 + $0x38] sm:$0xff]
    %v5036 = vld [vmem:[%s49 + $0x40] sm:$0xff]
    %v5037 = vld [vmem:[%s49 + $0x48] sm:$0xff]
    %v5038 = vld [vmem:[%s49 + $0x50] sm:$0xff]
    %v5039 = vld [vmem:[%s49 + $0x58] sm:$0xff]
    %v5040 = vld [vmem:[%s49 + $0x60] sm:$0xff]
    %v5041 = vld [vmem:[%s49 + $0x68] sm:$0xff]
    %v5042 = vld [vmem:[%s49 + $0x70] sm:$0xff]
    %v5043 = vld [vmem:[%s49 + $0x78] sm:$0xff]
    %v5044 = vld [vmem:[#allocation8] sm:$0x3]
    %v5045 = vld [vmem:[#allocation26] sm:$0xff]
    %v5046 = vld [vmem:[#allocation26 + $0x8] sm:$0xff]
    %v5047 = vld [vmem:[#allocation26 + $0x10] sm:$0xff]
    %v5048 = vld [vmem:[#allocation26 + $0x18] sm:$0xff]
    %v5050 = vsel %vm391, %v5044, 0
    %5052 = vmatprep.subr.mxu0 0.0
    %5053 = vmatpush1.msra.mxu0 0.0
    %5054 = vmatprep.subr.mxu0 0.0
    %5055 = vmatpush1.msra.mxu0 0.0
    %5056 = vmatprep.subr.mxu0 0.0
    %5057 = vmatpush1.msra.mxu0 0.0
    %5058 = vmatprep.subr.mxu0 0.0
    %5059 = vmatpush1.msra.mxu0 0.0
    %5060 = vmatprep.subr.mxu0 0.0
    %5061 = vmatpush1.msra.mxu0 0.0
    %5062 = vmatprep.subr.mxu0 0.0
    %5063 = vmatpush1.msra.mxu0 0.0
    %5064 = vmatprep.subr.mxu0 0.0
    %5065 = vmatpush1.msra.mxu0 0.0
    %5066 = vmatprep.subr.mxu0 0.0
    %5067 = vmatpush1.msra.mxu0 0.0
    %5068 = vmatprep.subr.mxu0 0.0
    %5069 = vmatpush1.msra.mxu0 0.0
    %5070 = vmatprep.subr.mxu0 0.0
    %5071 = vmatpush1.msra.mxu0 0.0
    %5072 = vmatprep.subr.mxu0 0.0
    %5073 = vmatpush1.msra.mxu0 0.0
    %5074 = vmatprep.subr.mxu0 0.0
    %5075 = vmatpush1.msra.mxu0 0.0
    %5076 = vmatprep.subr.mxu0 0.0
    %5077 = vmatpush1.msra.mxu0 %v5048
    %5078 = vmatprep.subr.mxu0 0.0
    %5079 = vmatpush1.msra.mxu0 %v5047
    %5080 = vmatprep.subr.mxu0 0.0
    %5081 = vmatpush1.msra.mxu0 %v5046
    %5082 = vmatprep.subr.mxu0 0.0
    %5083 = vmatpush1.msra.mxu0 %v5045
    %5084 = vmatprep.subr.mxu0 0.0
    %5085 = vmatpush2.msra.mxu0 0.0
    %5086 = vmatprep.subr.mxu0 0.0
    %5087 = vmatpush2.msra.mxu0 0.0
    %5088 = vmatprep.subr.mxu0 0.0
    %5089 = vmatpush2.msra.mxu0 0.0
    %5090 = vmatprep.subr.mxu0 0.0
    %5091 = vmatpush2.msra.mxu0 0.0
    %5092 = vmatprep.subr.mxu0 0.0
    %5093 = vmatpush2.msra.mxu0 0.0
    %5094 = vmatprep.subr.mxu0 0.0
    %5095 = vmatpush2.msra.mxu0 0.0
    %5096 = vmatprep.subr.mxu0 0.0
    %5097 = vmatpush2.msra.mxu0 0.0
    %5098 = vmatprep.subr.mxu0 0.0
    %5099 = vmatpush2.msra.mxu0 0.0
    %5100 = vmatprep.subr.mxu0 0.0
    %5101 = vmatpush2.msra.mxu0 0.0
    %5102 = vmatprep.subr.mxu0 0.0
    %5103 = vmatpush2.msra.mxu0 0.0
    %5104 = vmatprep.subr.mxu0 0.0
    %5105 = vmatpush2.msra.mxu0 0.0
    %5106 = vmatprep.subr.mxu0 0.0
    %5107 = vmatpush2.msra.mxu0 0.0
    %5108 = vmatprep.subr.mxu0 0.0
    %5109 = vmatpush2.msra.mxu0 0.0
    %5110 = vmatprep.subr.mxu0 0.0
    %5111 = vmatpush2.msra.mxu0 0.0
    %5112 = vmatprep.subr.mxu0 0.0
    %5113 = vmatpush2.msra.mxu0 0.0
    %5114 = vmatprep.subr.mxu0 0.0
    %5115 = vmatpush2.msra.mxu0 0.0
    %5116 = vmatprep.mubr.f32.mxu0 0.0
    %5117 = vmatmul.mubr.f32.gmra.mxu0 %v5050
    %v5118 = vpop.f32.mrf.mxu0
    %v5119 = vadd.f32 0.0, %v5118
    %v5120 = vpop.f32.mrf.mxu0
    %5121 = vdwg.mxu0
    %5122 = vmatprep.subr.mxu0 0.0
    %5123 = vmatpush1.msra.mxu0 %v5043
    %5124 = vmatprep.subr.mxu0 0.0
    %5125 = vmatpush1.msra.mxu0 %v5042
    %5126 = vmatprep.subr.mxu0 0.0
    %5127 = vmatpush1.msra.mxu0 %v5041
    %5128 = vmatprep.subr.mxu0 0.0
    %5129 = vmatpush1.msra.mxu0 %v5040
    %5130 = vmatprep.subr.mxu0 0.0
    %5131 = vmatpush1.msra.mxu0 %v5039
    %5132 = vmatprep.subr.mxu0 0.0
    %5133 = vmatpush1.msra.mxu0 %v5038
    %5134 = vmatprep.subr.mxu0 0.0
    %5135 = vmatpush1.msra.mxu0 %v5037
    %5136 = vmatprep.subr.mxu0 0.0
    %5137 = vmatpush1.msra.mxu0 %v5036
    %5138 = vmatprep.subr.mxu0 0.0
    %5139 = vmatpush1.msra.mxu0 %v5035
    %5140 = vmatprep.subr.mxu0 0.0
    %5141 = vmatpush1.msra.mxu0 %v5034
    %5142 = vmatprep.subr.mxu0 0.0
    %5143 = vmatpush1.msra.mxu0 %v5033
    %5144 = vmatprep.subr.mxu0 0.0
    %5145 = vmatpush1.msra.mxu0 %v5032
    %5146 = vmatprep.subr.mxu0 0.0
    %5147 = vmatpush1.msra.mxu0 %v5031
    %5148 = vmatprep.subr.mxu0 0.0
    %5149 = vmatpush1.msra.mxu0 %v5030
    %5150 = vmatprep.subr.mxu0 0.0
    %5151 = vmatpush1.msra.mxu0 %v5029
    %5152 = vmatprep.subr.mxu0 0.0
    %5153 = vmatpush1.msra.mxu0 %v5028
    %5154 = vmatprep.subr.mxu0 0.0
    %5155 = vmatpush2.msra.mxu0 0.0
    %5156 = vmatprep.subr.mxu0 0.0
    %5157 = vmatpush2.msra.mxu0 0.0
    %5158 = vmatprep.subr.mxu0 0.0
    %5159 = vmatpush2.msra.mxu0 0.0
    %5160 = vmatprep.subr.mxu0 0.0
    %5161 = vmatpush2.msra.mxu0 0.0
    %5162 = vmatprep.subr.mxu0 0.0
    %5163 = vmatpush2.msra.mxu0 0.0
    %5164 = vmatprep.subr.mxu0 0.0
    %5165 = vmatpush2.msra.mxu0 0.0
    %5166 = vmatprep.subr.mxu0 0.0
    %5167 = vmatpush2.msra.mxu0 0.0
    %5168 = vmatprep.subr.mxu0 0.0
    %5169 = vmatpush2.msra.mxu0 0.0
    %5170 = vmatprep.subr.mxu0 0.0
    %5171 = vmatpush2.msra.mxu0 0.0
    %5172 = vmatprep.subr.mxu0 0.0
    %5173 = vmatpush2.msra.mxu0 0.0
    %5174 = vmatprep.subr.mxu0 0.0
    %5175 = vmatpush2.msra.mxu0 0.0
    %5176 = vmatprep.subr.mxu0 0.0
    %5177 = vmatpush2.msra.mxu0 0.0
    %5178 = vmatprep.subr.mxu0 0.0
    %5179 = vmatpush2.msra.mxu0 0.0
    %5180 = vmatprep.subr.mxu0 0.0
    %5181 = vmatpush2.msra.mxu0 0.0
    %5182 = vmatprep.subr.mxu0 0.0
    %5183 = vmatpush2.msra.mxu0 0.0
    %5184 = vmatprep.subr.mxu0 0.0
    %5185 = vmatpush2.msra.mxu0 0.0
    %5186 = vmatprep.mubr.f32.mxu0 0.0
    %5187 = vmatmul.mubr.f32.gmra.mxu0 %v5027
    %v5188 = vpop.f32.mrf.mxu0
    %v5189 = vadd.f32 %v5119, %v5188
    %v5190 = vpop.f32.mrf.mxu0
    %5191 = vdwg.mxu0
    %v5192 = vld [vmem:[#allocation27] sm:$0x1]
    %v5194 = vlaneseq
    %v5195 = vshrl.u32 %v5194, 7
    %v5196 = vsub.s32 0, %v5195
    %v5197 = vrot.slane %v5192, %v5196
    %v5199 = vadd.f32 %v5189, %v5197
    %v5200 = vld [vmem:[#allocation9] sm:$0x3]
    %v5201 = vxor.u32 %v5199, 2147483648
    %v5202 = vmul.f32 %v5201, 1.442695
    %v5203 = vpow.pop %v5202
    %v5204 = vadd.f32 %v5203, 1.0
    %v5205 = vrcp.pop %v5204
    %v5206 = vmul.f32 1.0, %v5205
    %v5207 = vtanh.pop %v5199
    %5209 = vrot.lane.b32.xlu0 %v5200, 32
    %v5210 = vpop.permute.xlu0 %5209
    %v5212 = vmul.f32 %v5206, %v5210
    %5214 = vrot.lane.b32.xlu0 %v5207, 64
    %v5215 = vpop.permute.xlu0 %5214
    %v5217 = vmul.f32 %v5206, %v5215
    %5219 = vrot.lane.b32.xlu0 %v5217, 32
    %v5220 = vpop.permute.xlu0 %5219
    %v5222 = vadd.f32 %v5212, %v5220
    %v5223 = vtanh.pop %v5222
    %5225 = vrot.lane.b32.xlu0 %v5223, 64
    %v5226 = vpop.permute.xlu0 %5225
    %v5228 = vmul.f32 %v5206, %v5226
    %5230 = vrot.lane.b32.xlu0 %v5228, 32
    %v5231 = vpop.permute.xlu0 %5230
    %vm5233 = vcmask 254976
    %5234 = vst.msk [vmem:[#allocation33] sm:$0x3] %vm5233, %v5231
    %5236 = vrot.lane.b32.xlu0 %v5222, 96
    %v5237 = vpop.permute.xlu0 %5236
    %5239 = vst.msk [vmem:[#allocation35] sm:$0x3] %vm5233, %v5237
    %v5240 = vld [vmem:[%s55] sm:$0xff]
    %v5241 = vld [vmem:[%s55 + $0x8] sm:$0xff]
    %v5242 = vld [vmem:[%s55 + $0x10] sm:$0xff]
    %v5243 = vld [vmem:[%s55 + $0x18] sm:$0xff]
    %v5244 = vld [vmem:[%s4599] sm:$0x3]
    %v5245 = vld [vmem:[#allocation29] sm:$0xff]
    %v5246 = vld [vmem:[#allocation29 + $0x8] sm:$0xff]
    %v5247 = vld [vmem:[#allocation29 + $0x10] sm:$0xff]
    %v5248 = vld [vmem:[#allocation29 + $0x18] sm:$0xff]
    %v5250 = vsel %vm391, %v5244, 0
    %5252 = vmatprep.subr.mxu0 0.0
    %5253 = vmatpush1.msra.mxu0 0.0
    %5254 = vmatprep.subr.mxu0 0.0
    %5255 = vmatpush1.msra.mxu0 0.0
    %5256 = vmatprep.subr.mxu0 0.0
    %5257 = vmatpush1.msra.mxu0 0.0
    %5258 = vmatprep.subr.mxu0 0.0
    %5259 = vmatpush1.msra.mxu0 0.0
    %5260 = vmatprep.subr.mxu0 0.0
    %5261 = vmatpush1.msra.mxu0 0.0
    %5262 = vmatprep.subr.mxu0 0.0
    %5263 = vmatpush1.msra.mxu0 0.0
    %5264 = vmatprep.subr.mxu0 0.0
    %5265 = vmatpush1.msra.mxu0 0.0
    %5266 = vmatprep.subr.mxu0 0.0
    %5267 = vmatpush1.msra.mxu0 0.0
    %5268 = vmatprep.subr.mxu0 0.0
    %5269 = vmatpush1.msra.mxu0 0.0
    %5270 = vmatprep.subr.mxu0 0.0
    %5271 = vmatpush1.msra.mxu0 0.0
    %5272 = vmatprep.subr.mxu0 0.0
    %5273 = vmatpush1.msra.mxu0 0.0
    %5274 = vmatprep.subr.mxu0 0.0
    %5275 = vmatpush1.msra.mxu0 0.0
    %5276 = vmatprep.subr.mxu0 0.0
    %5277 = vmatpush1.msra.mxu0 %v5248
    %5278 = vmatprep.subr.mxu0 0.0
    %5279 = vmatpush1.msra.mxu0 %v5247
    %5280 = vmatprep.subr.mxu0 0.0
    %5281 = vmatpush1.msra.mxu0 %v5246
    %5282 = vmatprep.subr.mxu0 0.0
    %5283 = vmatpush1.msra.mxu0 %v5245
    %5284 = vmatprep.subr.mxu0 0.0
    %5285 = vmatpush2.msra.mxu0 0.0
    %5286 = vmatprep.subr.mxu0 0.0
    %5287 = vmatpush2.msra.mxu0 0.0
    %5288 = vmatprep.subr.mxu0 0.0
    %5289 = vmatpush2.msra.mxu0 0.0
    %5290 = vmatprep.subr.mxu0 0.0
    %5291 = vmatpush2.msra.mxu0 0.0
    %5292 = vmatprep.subr.mxu0 0.0
    %5293 = vmatpush2.msra.mxu0 0.0
    %5294 = vmatprep.subr.mxu0 0.0
    %5295 = vmatpush2.msra.mxu0 0.0
    %5296 = vmatprep.subr.mxu0 0.0
    %5297 = vmatpush2.msra.mxu0 0.0
    %5298 = vmatprep.subr.mxu0 0.0
    %5299 = vmatpush2.msra.mxu0 0.0
    %5300 = vmatprep.subr.mxu0 0.0
    %5301 = vmatpush2.msra.mxu0 0.0
    %5302 = vmatprep.subr.mxu0 0.0
    %5303 = vmatpush2.msra.mxu0 0.0
    %5304 = vmatprep.subr.mxu0 0.0
    %5305 = vmatpush2.msra.mxu0 0.0
    %5306 = vmatprep.subr.mxu0 0.0
    %5307 = vmatpush2.msra.mxu0 0.0
    %5308 = vmatprep.subr.mxu0 0.0
    %5309 = vmatpush2.msra.mxu0 0.0
    %5310 = vmatprep.subr.mxu0 0.0
    %5311 = vmatpush2.msra.mxu0 0.0
    %5312 = vmatprep.subr.mxu0 0.0
    %5313 = vmatpush2.msra.mxu0 0.0
    %5314 = vmatprep.subr.mxu0 0.0
    %5315 = vmatpush2.msra.mxu0 0.0
    %5316 = vmatprep.mubr.f32.mxu0 0.0
    %5317 = vmatmul.mubr.f32.gmra.mxu0 %v5250
    %v5318 = vpop.f32.mrf.mxu0
    %v5319 = vadd.f32 0.0, %v5318
    %v5320 = vpop.f32.mrf.mxu0
    %5321 = vdwg.mxu0
    %v5322 = vsel %vm391, %v5231, 0
    %5324 = vmatprep.subr.mxu0 0.0
    %5325 = vmatpush1.msra.mxu0 0.0
    %5326 = vmatprep.subr.mxu0 0.0
    %5327 = vmatpush1.msra.mxu0 0.0
    %5328 = vmatprep.subr.mxu0 0.0
    %5329 = vmatpush1.msra.mxu0 0.0
    %5330 = vmatprep.subr.mxu0 0.0
    %5331 = vmatpush1.msra.mxu0 0.0
    %5332 = vmatprep.subr.mxu0 0.0
    %5333 = vmatpush1.msra.mxu0 0.0
    %5334 = vmatprep.subr.mxu0 0.0
    %5335 = vmatpush1.msra.mxu0 0.0
    %5336 = vmatprep.subr.mxu0 0.0
    %5337 = vmatpush1.msra.mxu0 0.0
    %5338 = vmatprep.subr.mxu0 0.0
    %5339 = vmatpush1.msra.mxu0 0.0
    %5340 = vmatprep.subr.mxu0 0.0
    %5341 = vmatpush1.msra.mxu0 0.0
    %5342 = vmatprep.subr.mxu0 0.0
    %5343 = vmatpush1.msra.mxu0 0.0
    %5344 = vmatprep.subr.mxu0 0.0
    %5345 = vmatpush1.msra.mxu0 0.0
    %5346 = vmatprep.subr.mxu0 0.0
    %5347 = vmatpush1.msra.mxu0 0.0
    %5348 = vmatprep.subr.mxu0 0.0
    %5349 = vmatpush1.msra.mxu0 %v5243
    %5350 = vmatprep.subr.mxu0 0.0
    %5351 = vmatpush1.msra.mxu0 %v5242
    %5352 = vmatprep.subr.mxu0 0.0
    %5353 = vmatpush1.msra.mxu0 %v5241
    %5354 = vmatprep.subr.mxu0 0.0
    %5355 = vmatpush1.msra.mxu0 %v5240
    %5356 = vmatprep.subr.mxu0 0.0
    %5357 = vmatpush2.msra.mxu0 0.0
    %5358 = vmatprep.subr.mxu0 0.0
    %5359 = vmatpush2.msra.mxu0 0.0
    %5360 = vmatprep.subr.mxu0 0.0
    %5361 = vmatpush2.msra.mxu0 0.0
    %5362 = vmatprep.subr.mxu0 0.0
    %5363 = vmatpush2.msra.mxu0 0.0
    %5364 = vmatprep.subr.mxu0 0.0
    %5365 = vmatpush2.msra.mxu0 0.0
    %5366 = vmatprep.subr.mxu0 0.0
    %5367 = vmatpush2.msra.mxu0 0.0
    %5368 = vmatprep.subr.mxu0 0.0
    %5369 = vmatpush2.msra.mxu0 0.0
    %5370 = vmatprep.subr.mxu0 0.0
    %5371 = vmatpush2.msra.mxu0 0.0
    %5372 = vmatprep.subr.mxu0 0.0
    %5373 = vmatpush2.msra.mxu0 0.0
    %5374 = vmatprep.subr.mxu0 0.0
    %5375 = vmatpush2.msra.mxu0 0.0
    %5376 = vmatprep.subr.mxu0 0.0
    %5377 = vmatpush2.msra.mxu0 0.0
    %5378 = vmatprep.subr.mxu0 0.0
    %5379 = vmatpush2.msra.mxu0 0.0
    %5380 = vmatprep.subr.mxu0 0.0
    %5381 = vmatpush2.msra.mxu0 0.0
    %5382 = vmatprep.subr.mxu0 0.0
    %5383 = vmatpush2.msra.mxu0 0.0
    %5384 = vmatprep.subr.mxu0 0.0
    %5385 = vmatpush2.msra.mxu0 0.0
    %5386 = vmatprep.subr.mxu0 0.0
    %5387 = vmatpush2.msra.mxu0 0.0
    %5388 = vmatprep.mubr.f32.mxu0 0.0
    %5389 = vmatmul.mubr.f32.gmra.mxu0 %v5322
    %v5390 = vpop.f32.mrf.mxu0
    %v5391 = vadd.f32 %v5319, %v5390
    %v5392 = vpop.f32.mrf.mxu0
    %5393 = vdwg.mxu0
    %v5394 = vld [vmem:[%s59] sm:$0x1]
    %v5396 = vlaneseq
    %v5397 = vshrl.u32 %v5396, 7
    %v5398 = vsub.s32 0, %v5397
    %v5399 = vrot.slane %v5394, %v5398
    %v5401 = vadd.f32 %v5391, %v5399
    %s5402 = scalar_lea.vmem [#allocation9], 2
    %v5403 = vld [vmem:[%s5402] sm:$0x3]
    %v5404 = vxor.u32 %v5401, 2147483648
    %v5405 = vmul.f32 %v5404, 1.442695
    %v5406 = vpow.pop %v5405
    %v5407 = vadd.f32 %v5406, 1.0
    %v5408 = vrcp.pop %v5407
    %v5409 = vmul.f32 1.0, %v5408
    %v5410 = vtanh.pop %v5401
    %5412 = vrot.lane.b32.xlu0 %v5403, 32
    %v5413 = vpop.permute.xlu0 %5412
    %v5415 = vmul.f32 %v5409, %v5413
    %5417 = vrot.lane.b32.xlu0 %v5410, 64
    %v5418 = vpop.permute.xlu0 %5417
    %v5420 = vmul.f32 %v5409, %v5418
    %5422 = vrot.lane.b32.xlu0 %v5420, 32
    %v5423 = vpop.permute.xlu0 %5422
    %v5425 = vadd.f32 %v5415, %v5423
    %v5426 = vtanh.pop %v5425
    %5428 = vrot.lane.b32.xlu0 %v5426, 64
    %v5429 = vpop.permute.xlu0 %5428
    %v5431 = vmul.f32 %v5409, %v5429
    %5433 = vrot.lane.b32.xlu0 %v5431, 32
    %v5434 = vpop.permute.xlu0 %5433
    %s5436 = scalar_lea.vmem [#allocation33], 2
    %5437 = vst.msk [vmem:[%s5436] sm:$0x3] %vm5233, %v5434
    %5439 = vrot.lane.b32.xlu0 %v5425, 96
    %v5440 = vpop.permute.xlu0 %5439
    %s5442 = scalar_lea.vmem [#allocation35], 2
    %5443 = vst.msk [vmem:[%s5442] sm:$0x3] %vm5233, %v5440
    %v5444 = vld [vmem:[#allocation30] sm:$0xff]
    %v5445 = vld [vmem:[#allocation30 + $0x8] sm:$0xff]
    %v5446 = vld [vmem:[#allocation30 + $0x10] sm:$0xff]
    %v5447 = vld [vmem:[#allocation30 + $0x18] sm:$0xff]
    %v5448 = vld [vmem:[%s63] sm:$0x1]
    %v5450 = vlaneseq
    %v5451 = vshrl.u32 %v5450, 7
    %v5452 = vsub.s32 0, %v5451
    %v5453 = vrot.slane %v5448, %v5452
    %v5455 = vsel %vm391, %v5434, 0
    %5457 = vmatprep.subr.mxu0 0.0
    %5458 = vmatpush1.msra.mxu0 0.0
    %5459 = vmatprep.subr.mxu0 0.0
    %5460 = vmatpush1.msra.mxu0 0.0
    %5461 = vmatprep.subr.mxu0 0.0
    %5462 = vmatpush1.msra.mxu0 0.0
    %5463 = vmatprep.subr.mxu0 0.0
    %5464 = vmatpush1.msra.mxu0 0.0
    %5465 = vmatprep.subr.mxu0 0.0
    %5466 = vmatpush1.msra.mxu0 0.0
    %5467 = vmatprep.subr.mxu0 0.0
    %5468 = vmatpush1.msra.mxu0 0.0
    %5469 = vmatprep.subr.mxu0 0.0
    %5470 = vmatpush1.msra.mxu0 0.0
    %5471 = vmatprep.subr.mxu0 0.0
    %5472 = vmatpush1.msra.mxu0 0.0
    %5473 = vmatprep.subr.mxu0 0.0
    %5474 = vmatpush1.msra.mxu0 0.0
    %5475 = vmatprep.subr.mxu0 0.0
    %5476 = vmatpush1.msra.mxu0 0.0
    %5477 = vmatprep.subr.mxu0 0.0
    %5478 = vmatpush1.msra.mxu0 0.0
    %5479 = vmatprep.subr.mxu0 0.0
    %5480 = vmatpush1.msra.mxu0 0.0
    %5481 = vmatprep.subr.mxu0 0.0
    %5482 = vmatpush1.msra.mxu0 %v5447
    %5483 = vmatprep.subr.mxu0 0.0
    %5484 = vmatpush1.msra.mxu0 %v5446
    %5485 = vmatprep.subr.mxu0 0.0
    %5486 = vmatpush1.msra.mxu0 %v5445
    %5487 = vmatprep.subr.mxu0 0.0
    %5488 = vmatpush1.msra.mxu0 %v5444
    %5489 = vmatprep.subr.mxu0 0.0
    %5490 = vmatpush2.msra.mxu0 0.0
    %5491 = vmatprep.subr.mxu0 0.0
    %5492 = vmatpush2.msra.mxu0 0.0
    %5493 = vmatprep.subr.mxu0 0.0
    %5494 = vmatpush2.msra.mxu0 0.0
    %5495 = vmatprep.subr.mxu0 0.0
    %5496 = vmatpush2.msra.mxu0 0.0
    %5497 = vmatprep.subr.mxu0 0.0
    %5498 = vmatpush2.msra.mxu0 0.0
    %5499 = vmatprep.subr.mxu0 0.0
    %5500 = vmatpush2.msra.mxu0 0.0
    %5501 = vmatprep.subr.mxu0 0.0
    %5502 = vmatpush2.msra.mxu0 0.0
    %5503 = vmatprep.subr.mxu0 0.0
    %5504 = vmatpush2.msra.mxu0 0.0
    %5505 = vmatprep.subr.mxu0 0.0
    %5506 = vmatpush2.msra.mxu0 0.0
    %5507 = vmatprep.subr.mxu0 0.0
    %5508 = vmatpush2.msra.mxu0 0.0
    %5509 = vmatprep.subr.mxu0 0.0
    %5510 = vmatpush2.msra.mxu0 0.0
    %5511 = vmatprep.subr.mxu0 0.0
    %5512 = vmatpush2.msra.mxu0 0.0
    %5513 = vmatprep.subr.mxu0 0.0
    %5514 = vmatpush2.msra.mxu0 0.0
    %5515 = vmatprep.subr.mxu0 0.0
    %5516 = vmatpush2.msra.mxu0 0.0
    %5517 = vmatprep.subr.mxu0 0.0
    %5518 = vmatpush2.msra.mxu0 0.0
    %5519 = vmatprep.subr.mxu0 0.0
    %5520 = vmatpush2.msra.mxu0 0.0
    %5521 = vmatprep.mubr.f32.mxu0 0.0
    %5522 = vmatmul.mubr.f32.gmra.mxu0 %v5455
    %v5523 = vpop.f32.mrf.mxu0
    %v5524 = vadd.f32 %v5453, %v5523
    %v5525 = vpop.f32.mrf.mxu0
    %5526 = vdwg.mxu0
    %vm5527 = vcmask 320512
    %v5528 = vsel %vm5527, %v5524, -inf
    %5529 = vmax.xlane.f32.xlu0 %v5528
    %v5530 = vpop.xlane.xlu0 %5529
    %v5531 = vsub.f32 %v5524, %v5530
    %v5532 = vmul.f32 %v5531, 1.442695
    %v5533 = vpow.pop %v5532
    %v5534 = vsel %vm5527, %v5533, 0.0
    %5535 = vadd.xlane.f32.xlu0 %v5534
    %v5536 = vpop.xlane.xlu0 %5535
    %v5537 = vlog2.pop %v5536
    %v5538 = vmul.f32 %v5537, 0.6931472
    %v5539 = vsub.f32 %v5531, %v5538
    %5540 = vst.msk [vmem:[#allocation32] sm:$0x3] %vm5527, %v5539
    // Predicated region
    $region202: #{tpu_custom_call.1} parent=1 // pred_check
      _
    $region203: #{tpu_custom_call.1} parent=1 // pred_check_branch
      %5542 = sbr.rel (0) target = $region205
    $region204: #{tpu_custom_call.1} parent=1 // pred_region
      %s5544 = ssub.s32 32, 32
      %5545 = vsyncadd [#allocation5], %s5544
      %s5547 = sshll.u32 [#allocation32], 4
      %s5548 = int_to_ptr.vmem [resolvable:$true] %s5547
      %5550 = dma.vmem_to_hbm [thread:$0]  %s5548, 32, %s65, [#allocation5]
    $region205: #{tpu_custom_call.1} parent=1 // pred_fallthru
      _
    // Predicated region
    $region206: #{tpu_custom_call.1} parent=1 // pred_check
      _
    $region207: #{tpu_custom_call.1} parent=1 // pred_check_branch
      %5552 = sbr.rel (0) target = $region209
    $region208: #{tpu_custom_call.1} parent=1 // pred_region
      %s5554 = ssub.s32 64, 64
      %5555 = vsyncadd [#allocation34], %s5554
      %s5556 = sshll.u32 [#allocation33], 4
      %s5557 = int_to_ptr.vmem [resolvable:$true] %s5556
      %5562 = dma.vmem_to_hbm [thread:$0]  %s5557, 64, %s67, [#allocation34], 32, 32, 2
    $region209: #{tpu_custom_call.1} parent=1 // pred_fallthru
      _
    // Predicated region
    $region210: #{tpu_custom_call.1} parent=1 // pred_check
      _
    $region211: #{tpu_custom_call.1} parent=1 // pred_check_branch
      %5564 = sbr.rel (0) target = $region213
    $region212: #{tpu_custom_call.1} parent=1 // pred_region
      %s5566 = ssub.s32 64, 64
      %5567 = vsyncadd [#allocation34], %s5566
      %s5568 = sshll.u32 [#allocation35], 4
      %s5569 = int_to_ptr.vmem [resolvable:$true] %s5568
      %5574 = dma.vmem_to_hbm [thread:$0]  %s5569, 64, %s69, [#allocation34], 32, 32, 2
    $region213: #{tpu_custom_call.1} parent=1 // pred_fallthru
      _
    // Predicated region
    $region214: #{tpu_custom_call.1} parent=1 // pred_check
      _
    $region215: #{tpu_custom_call.1} parent=1 // pred_check_branch
      %5576 = sbr.rel (0) target = $region217
    $region216: #{tpu_custom_call.1} parent=1 // pred_region
      %s5578 = ssub.s32 256, 256
      %5579 = vsyncadd [#allocation37], %s5578
      %s5580 = sshll.u32 [#allocation36], 4
      %s5581 = int_to_ptr.vmem [resolvable:$true] %s5580
      %5586 = dma.vmem_to_hbm [thread:$0]  %s5581, 256, %s71, [#allocation37], 128, 128, 8
    $region217: #{tpu_custom_call.1} parent=1 // pred_fallthru
      _
    // Predicated region
    $region218: #{tpu_custom_call.1} parent=1 // pred_check
      _
    $region219: #{tpu_custom_call.1} parent=1 // pred_check_branch
      %5588 = sbr.rel (0) target = $region221
    $region220: #{tpu_custom_call.1} parent=1 // pred_region
      %s5590 = ssub.s32 256, 256
      %5591 = vsyncadd [#allocation37], %s5590
      %s5592 = sshll.u32 [#allocation38], 4
      %s5593 = int_to_ptr.vmem [resolvable:$true] %s5592
      %5598 = dma.vmem_to_hbm [thread:$0]  %s5593, 256, %s73, [#allocation37], 128, 128, 8
    $region221: #{tpu_custom_call.1} parent=1 // pred_fallthru
      _
    // Predicated region
    $region222: #{tpu_custom_call.1} parent=1 // pred_check
      _
    $region223: #{tpu_custom_call.1} parent=1 // pred_check_branch
      %5600 = sbr.rel (0) target = $region225
    $region224: #{tpu_custom_call.1} parent=1 // pred_region
      %s5602 = ssub.s32 256, 256
      %5603 = vsyncadd [#allocation40], %s5602
      %s5604 = sshll.u32 [#allocation39], 4
      %s5605 = int_to_ptr.vmem [resolvable:$true] %s5604
      %5610 = dma.vmem_to_hbm [thread:$0]  %s5605, 256, %s75, [#allocation40], 128, 128, 8
    $region225: #{tpu_custom_call.1} parent=1 // pred_fallthru
      _
    // Predicated region
    $region226: #{tpu_custom_call.1} parent=1 // pred_check
      _
    $region227: #{tpu_custom_call.1} parent=1 // pred_check_branch
      %5612 = sbr.rel (0) target = $region229
    $region228: #{tpu_custom_call.1} parent=1 // pred_region
      %5613 = dma.done [#allocation5], 32
    $region229: #{tpu_custom_call.1} parent=1 // pred_fallthru
      _
    // Predicated region
    $region230: #{tpu_custom_call.1} parent=1 // pred_check
      _
    $region231: #{tpu_custom_call.1} parent=1 // pred_check_branch
      %5615 = sbr.rel (0) target = $region233
    $region232: #{tpu_custom_call.1} parent=1 // pred_region
      %5616 = dma.done [#allocation34], 64
    $region233: #{tpu_custom_call.1} parent=1 // pred_fallthru
      _
    // Predicated region
    $region234: #{tpu_custom_call.1} parent=1 // pred_check
      _
    $region235: #{tpu_custom_call.1} parent=1 // pred_check_branch
      %5618 = sbr.rel (0) target = $region237
    $region236: #{tpu_custom_call.1} parent=1 // pred_region
      %5619 = dma.done [#allocation34], 64
    $region237: #{tpu_custom_call.1} parent=1 // pred_fallthru
      _
    // Predicated region
    $region238: #{tpu_custom_call.1} parent=1 // pred_check
      _
    $region239: #{tpu_custom_call.1} parent=1 // pred_check_branch
      %5621 = sbr.rel (0) target = $region241
    $region240: #{tpu_custom_call.1} parent=1 // pred_region
      %5622 = dma.done [#allocation37], 256
    $region241: #{tpu_custom_call.1} parent=1 // pred_fallthru
      _
    // Predicated region
    $region242: #{tpu_custom_call.1} parent=1 // pred_check
      _
    $region243: #{tpu_custom_call.1} parent=1 // pred_check_branch
      %5624 = sbr.rel (0) target = $region245
    $region244: #{tpu_custom_call.1} parent=1 // pred_region
      %5625 = dma.done [#allocation37], 256
    $region245: #{tpu_custom_call.1} parent=1 // pred_fallthru
      _
    // Predicated region
    $region246: #{tpu_custom_call.1} parent=1 // pred_check
      _
    $region247: #{tpu_custom_call.1} parent=1 // pred_check_branch
      %5627 = sbr.rel (0) target = $region249
    $region248: #{tpu_custom_call.1} parent=1 // pred_region
      %5628 = dma.done [#allocation40], 256
    $region249: #{tpu_custom_call.1} parent=1 // pred_fallthru
      _
    %5629 = vsyncpa [#allocation4], 1
    %5630 = vsyncpa [#allocation7], 1
    %5631 = vsyncpa [#allocation10], 1
    %5632 = vsyncpa [#allocation13], 1
    %5633 = vsyncpa [#allocation16], 1
    %5634 = vsyncpa [#allocation19], 1
    %5635 = vsyncpa [#allocation22], 1
    %5636 = vsyncpa [#allocation25], 1
    %5637 = vsyncpa [#allocation28], 1
    %5638 = vsyncpa [#allocation31], 1
    %5639 = vsyncpa [#allocation5], 1
    %5640 = vsyncpa [#allocation34], 1
    %5641 = vsyncpa [#allocation37], 1
    %5642 = vsyncpa [#allocation40], 1

</llo_original>
